<compile_context>
chip_gen: v7x
topology: tpu7x:2x2x1
jax: 0.10.0
libtpu: 0.0.40
codegen_flags: <defaults>
</compile_context>

<pallas_src>
import jax
import jax.numpy as jnp
from jax.experimental import pallas as pl
from jax.experimental.pallas import tpu as pltpu


# ----------------------------- small in-kernel helpers -----------------------------
def _layernorm(z, gamma, beta, eps=1e-5):
    mu = jnp.mean(z, axis=-1, keepdims=True)
    zc = z - mu
    var = jnp.mean(zc * zc, axis=-1, keepdims=True)
    return zc * jax.lax.rsqrt(var + eps) * gamma + beta


def _dot_small_k(a, w):
    # a: (..., K) with tiny static K, w: (K, N)  ->  a @ w, via VPU broadcast-mul-add.
    out = a[..., 0:1] * w[0:1]
    for k in range(1, w.shape[0]):
        out = out + a[..., k:k + 1] * w[k:k + 1]
    return out


def _dot_small_n(a, wt):
    # a: (..., H), wt: (N, H) with tiny static N  ->  a @ wt.T, via lane reductions.
    cols = [jnp.sum(a * wt[c:c + 1], axis=-1, keepdims=True) for c in range(wt.shape[0])]
    return cols[0] if len(cols) == 1 else jnp.concatenate(cols, axis=-1)


# ----------------------------------- kernel ----------------------------------------
def _gegnn_layer_kernel(
    h_ref, uh_ref, bh_ref, vh_ref, ah_ref, e_ref, xa_ref, xi_ref, m_ref,
    WC_ref, PH_ref, PP_ref,
    ho_ref, eo_ref, xo_ref,
):
    V, Hd = vh_ref.shape[1], vh_ref.shape[2]
    TQ = e_ref.shape[1]
    C2 = xa_ref.shape[2]
    hp = C2 // 2
    f32 = jnp.float32

    # ---- packed small parameters ----------------------------------------------------
    PH = PH_ref[...]                        # (3*hp + 4, Hd)
    PP = PP_ref[...]                        # (2*hp + 2, hp)
    dw = PH[0:hp]                           # d weight                 (hp, Hd)
    ewT = PH[hp:2 * hp]                     # e-proj weight            (hp, Hd)
    HwhT = PH[2 * hp:3 * hp]                # H weight, h part         (hp, Hd)
    lnhg = PH[3 * hp + 0:3 * hp + 1]        # LayerNorm(h) gamma       (1, Hd)
    lnhb = PH[3 * hp + 1:3 * hp + 2]
    lneg = PH[3 * hp + 2:3 * hp + 3]        # LayerNorm(e) gamma
    lneb = PH[3 * hp + 3:3 * hp + 4]
    DwT = PP[0:hp]                          # D weight (in, out)       (hp, hp)
    Hwd = PP[hp:2 * hp]                     # H weight, distance part  (hp, hp)
    eb = PP[2 * hp:2 * hp + 1]              # e-proj bias              (1, hp)
    Hb = PP[2 * hp + 1:2 * hp + 2]          # H bias                   (1, hp)

    # ---- per-step tiles ---------------------------------------------------------------
    h_i = h_ref[0]                          # (TQ, Hd)   h_in rows i
    Uh_i = uh_ref[0]                        # (TQ, Hd)
    Bh_i = bh_ref[0]                        # (TQ, Hd)
    Vh_a = vh_ref[0]                        # (V, Hd)
    Ah_a = ah_ref[0]                        # (V, Hd)    A*h + d-bias + C-bias (folded)
    x_a = xa_ref[0]                         # (V, C2)
    x_i = xi_ref[0]                         # (TQ, C2)
    e_blk = e_ref[0]                        # (TQ, V, Hd) bf16
    mask = m_ref[0].astype(f32)             # (TQ, V)    1.0 on kept edges, 0.0 on masked

    # C * e : one (TQ*V, Hd) x (Hd, Hd) MXU matmul (bf16 operands, f32 accumulation).
    Ce = jnp.dot(e_blk.reshape(TQ * V, Hd), WC_ref[...],
                 preferred_element_type=f32).reshape(TQ, V, Hd)

    # Pairwise coordinate differences (x_i - x_j) per coordinate group (no (TQ,V,2hp) temp).
    d0 = x_i[:, None, 0:hp] - x_a[None, :, 0:hp]            # (TQ, V, hp)
    d1 = x_i[:, None, hp:C2] - x_a[None, :, hp:C2]          # (TQ, V, hp)
    dist = jnp.sqrt(d0 * d0 + d1 * d1 + 2e-8)               # (TQ, V, hp)

    # e_ij = A*h_j + B*h_i + C*e_ij + d(|x_i-x_j|)   (all biases pre-folded into Ah_a)
    e_new = Ah_a[None, :, :] + Bh_i[:, None, :] + Ce + _dot_small_k(dist, dw)
    gates = jax.nn.sigmoid(e_new)
    mg = mask[:, :, None] * gates                            # reused for the aggregation

    # Point attention (E -> hp projection), masked, then coordinate deltas (sum over j).
    pa = jax.nn.sigmoid(_dot_small_n(e_new, ewT) + eb) * mask[:, :, None]   # (TQ, V, hp)
    xd0 = jnp.sum(pa * d0, axis=1)                           # (TQ, hp)
    xd1 = jnp.sum(pa * d1, axis=1)                           # (TQ, hp)

    # Edge output (e_new is dead after this).
    e_act = jnp.maximum(_layernorm(e_new, lneg, lneb), 0.0)
    eo_ref[0] = (e_blk.astype(f32) + e_act).astype(eo_ref.dtype)

    # Gated 'sum' aggregation over neighbours j + node output.
    agg = jnp.sum(mg * Vh_a[None, :, :], axis=1)             # (TQ, Hd)
    h_act = jnp.maximum(_layernorm(Uh_i + agg, lnhg, lnhb), 0.0)
    ho_ref[0] = h_i + h_act

    # Equivariant coordinate update.
    Dx0 = _dot_small_k(xd0, DwT)                             # (TQ, hp)
    Dx1 = _dot_small_k(xd1, DwT)
    dist2 = jnp.sqrt(xd0 * xd0 + xd1 * xd1 + 1e-4)           # (TQ, hp)
    g2 = jax.nn.sigmoid(_dot_small_k(dist2, Hwd) + _dot_small_n(h_i, HwhT) + Hb)
    xo_ref[0] = x_i + jnp.concatenate([Dx0 * g2, Dx1 * g2], axis=1)


# ----------------------------------- wrappers ---------------------------------------
def _vmem_capacity_bytes():
    """Per-core VMEM capacity (generation-aware); conservative fallback = 64 MiB (v7x)."""
    try:
        cap = int(pltpu.get_tpu_info().vmem_capacity_bytes)
        if cap > 0:
            return cap
    except Exception:
        pass
    return 64 << 20


def _pick_tq(V, Hd, hp, budget_bytes):
    """Receiver-tile rows: largest multiple of 8 dividing V whose working set fits the budget.

    Per-row working-set model (bytes per neighbour j, per Hd lane):
      e in  (bf16, double-buffered)  : 4
      e out (bf16, double-buffered)  : 4
      f32 temporaries (Ce, e_new, gates, mask*gates, e_act, residual) : ~24
    plus d0/d1/pa (f32, hp lanes each).
    """
    if V % 8 != 0:
        return V                      # fall back: whole receiver axis in one tile
    per_row = V * (32 * Hd + 12 * hp)
    max_rows = max(8, budget_bytes // per_row)
    tq = 8
    for cand in range(8, V + 1, 8):
        if V % cand == 0 and cand <= max_rows:
            tq = cand
    return tq


def _pack_small_params(p):
    # Hd-lane params:  [dw(hp) | ewT(hp) | HwhT(hp) | lnhg | lnhb | lneg | lneb]
    PH = jnp.concatenate([p["dw"], p["ewT"], p["HwhT"],
                          p["lnhg"], p["lnhb"], p["lneg"], p["lneb"]], axis=0)
    # hp-lane params:  [DwT(hp) | Hwd(hp) | eb | Hb]
    PP = jnp.concatenate([p["DwT"], p["Hwd"], p["eb"], p["Hb"]], axis=0)
    return PH, PP


def gegnn_layer_pallas(h, e, x, mask, p, tq=None):
    """One GEGNN layer.  h, x : f32; e, mask : bf16.  Returns (h', e'(bf16), x')."""
    B, V, Hd = h.shape
    C2 = x.shape[-1]
    hp = C2 // 2
    f32, bf16 = jnp.float32, jnp.bfloat16

    cap = _vmem_capacity_bytes()
    budget = cap // 4                                   # edge-slab + temporaries budget
    vmem_limit = min(int(cap * 0.65), 100 << 20)
    TQ = tq if tq is not None else _pick_tq(V, Hd, hp, budget)
    assert V % TQ == 0
    n_i = V // TQ

    # Hoisted node projections: single fused (B*V, Hd) x (Hd, 4*Hd) matmul.
    W5, b5 = p["W5"], p["b5"]
    Wn = jnp.concatenate([W5[0], W5[1], W5[2], W5[3]], axis=1)     # (Hd, 4Hd)
    bn = jnp.concatenate([b5[0], b5[1], b5[2], b5[3]], axis=1)     # (1, 4Hd)
    proj = jnp.dot(h, Wn) + bn                                     # (B, V, 4Hd)
    Uh = proj[..., 0:Hd]
    Vh = proj[..., Hd:2 * Hd]
    Ah = proj[..., 2 * Hd:3 * Hd] + p["db"] + b5[4]                # fold d-bias & C-bias
    Bh = proj[..., 3 * Hd:4 * Hd]
    WC = W5[4].astype(bf16)                                        # MXU consumes bf16 anyway
    PH, PP = _pack_small_params(p)

    def _const(shape):
        n = len(shape)
        return pl.BlockSpec(shape, lambda *_: (0,) * n)

    in_specs = [
        pl.BlockSpec((1, TQ, Hd), lambda b, i: (b, i, 0)),          # h rows i
        pl.BlockSpec((1, TQ, Hd), lambda b, i: (b, i, 0)),          # U*h rows i
        pl.BlockSpec((1, TQ, Hd), lambda b, i: (b, i, 0)),          # B*h rows i
        pl.BlockSpec((1, V, Hd), lambda b, i: (b, 0, 0)),           # V*h all nodes
        pl.BlockSpec((1, V, Hd), lambda b, i: (b, 0, 0)),           # A*h all nodes (+biases)
        pl.BlockSpec((1, TQ, V, Hd), lambda b, i: (b, i, 0, 0)),    # e slab (bf16)
        pl.BlockSpec((1, V, C2), lambda b, i: (b, 0, 0)),           # x all nodes
        pl.BlockSpec((1, TQ, C2), lambda b, i: (b, i, 0)),          # x rows i
        pl.BlockSpec((1, TQ, V), lambda b, i: (b, i, 0)),           # mask rows i (bf16)
        _const((Hd, Hd)),     # W_C (bf16)
        _const(PH.shape),     # packed Hd-lane params
        _const(PP.shape),     # packed hp-lane params
    ]
    out_specs = (
        pl.BlockSpec((1, TQ, Hd), lambda b, i: (b, i, 0)),          # h out
        pl.BlockSpec((1, TQ, V, Hd), lambda b, i: (b, i, 0, 0)),    # e out (bf16)
        pl.BlockSpec((1, TQ, C2), lambda b, i: (b, i, 0)),          # x out
    )
    out_shape = (
        jax.ShapeDtypeStruct((B, V, Hd), f32),
        jax.ShapeDtypeStruct((B, V, V, Hd), bf16),
        jax.ShapeDtypeStruct((B, V, C2), f32),
    )
    grid_spec = pltpu.PrefetchScalarGridSpec(
        num_scalar_prefetch=0,
        grid=(B, n_i),
        in_specs=in_specs,
        out_specs=out_specs,
    )
    fn = pl.pallas_call(
        _gegnn_layer_kernel,
        out_shape=out_shape,
        grid_spec=grid_spec,
        compiler_params=pltpu.CompilerParams(
            dimension_semantics=("parallel", "parallel"),   # both axes shard across TCs (v7x)
            vmem_limit_bytes=vmem_limit),
    )
    return fn(h, Uh, Bh, Vh, Ah, e, x, x, mask, WC, PH, PP)


def gegnn_encoder_pallas(h, graph, pos, emb, layer_params, num_coordinates):
    g = graph.astype(jnp.float32)
    # init_embed_edges: Embedding(2, H) lookup on the 0/1 adjacency; edges kept in bf16.
    e = ((1.0 - g)[..., None] * emb[0] + g[..., None] * emb[1]).astype(jnp.bfloat16)
    # neighbour mask (1.0 == keep) precomputed once, shipped in bf16.
    mask = (1.0 - g).astype(jnp.bfloat16)
    # pos (B,V,2) -> kernel coordinate layout (B,V,2*hp): [d0-groups | d1-groups].
    x = jnp.repeat(pos, num_coordinates, axis=-1)
    for p in layer_params:
        h, e, x = gegnn_layer_pallas(h, e, x, mask, p)
    return h


# ------------------------------- pure-JAX reference ---------------------------------
def _gegnn_layer_ref(h, e, x, g, p):
    h_in, e_in, x_in = h, e, x
    W5, b5 = p["W5"], p["b5"][:, 0, :]
    Uh = h @ W5[0] + b5[0]
    Vh = h @ W5[1] + b5[1]
    Ah = h @ W5[2] + b5[2]
    Bh = h @ W5[3] + b5[3]
    Ce = jnp.einsum("buvh,hk->buvk", e, W5[4]) + b5[4]
    dvec = x_in[:, :, None, :, :] - x_in[:, None, :, :, :]          # [b,i,j] = x_i - x_j
    dist = jnp.sqrt(jnp.sum(dvec * dvec, axis=-1) + 2e-8)
    e_new = (Ah[:, None, :, :] + Bh[:, :, None, :] + Ce
             + jnp.einsum("buvc,ch->buvh", dist, p["dw"]) + p["db"][0])
    gates = jax.nn.sigmoid(e_new)
    pa = jax.nn.sigmoid(jnp.einsum("buvh,ch->buvc", e_new, p["ewT"]) + p["eb"][0])
    pa = pa * (1.0 - g)[..., None]
    xdelta = jnp.sum(pa[..., None] * dvec, axis=2)                   # (B,V,hp,2)
    agg = jnp.sum((1.0 - g)[..., None] * gates * Vh[:, None, :, :], axis=2)
    h_new = Uh + agg

    def ln(z, gamma, beta):
        mu = jnp.mean(z, axis=-1, keepdims=True)
        zc = z - mu
        var = jnp.mean(zc * zc, axis=-1, keepdims=True)
        return zc / jnp.sqrt(var + 1e-5) * gamma + beta

    h_act = jax.nn.relu(ln(h_new, p["lnhg"][0], p["lnhb"][0]))
    e_act = jax.nn.relu(ln(e_new, p["lneg"][0], p["lneb"][0]))
    Dx = jnp.stack([jnp.einsum("bvc,cd->bvd", xdelta[..., 0], p["DwT"]),
                    jnp.einsum("bvc,cd->bvd", xdelta[..., 1], p["DwT"])], axis=-1)
    dist2 = jnp.sqrt(jnp.sum(xdelta * xdelta, axis=-1) + 1e-4)
    g2 = jax.nn.sigmoid(jnp.einsum("bvc,cd->bvd", dist2, p["Hwd"])
                        + jnp.einsum("bvh,ch->bvc", h_in, p["HwhT"]) + p["Hb"][0])
    return h_in + h_act, e_in + e_act, x_in + Dx * g2[..., None]


def gegnn_encoder_ref(h, graph, pos, emb, layer_params, hp):
    B, V, _ = h.shape
    g = graph.astype(jnp.float32)
    e = (1.0 - g)[..., None] * emb[0] + g[..., None] * emb[1]
    # mirror the kernel's bf16 edge storage so the comparison isolates kernel math
    e = e.astype(jnp.bfloat16).astype(jnp.float32)
    x = jnp.broadcast_to(pos[:, :, None, :], (B, V, hp, 2))
    for p in layer_params:
        h, e, x = _gegnn_layer_ref(h, e, x, g, p)
        e = e.astype(jnp.bfloat16).astype(jnp.float32)
    return h


# ------------------------------------- params ---------------------------------------
def init_layer_params(key, Hd, hp):
    ks = jax.random.split(key, 10)
    sH = 1.0 / float(Hd) ** 0.5
    f32 = jnp.float32
    return {
        "W5": jax.random.normal(ks[0], (5, Hd, Hd), f32) * sH,    # [U, V, A, B, C] (in, out)
        "b5": jax.random.normal(ks[1], (5, 1, Hd), f32) * 0.1,
        "dw": jax.random.normal(ks[2], (hp, Hd), f32) * 0.3,
        "db": jax.random.normal(ks[3], (1, Hd), f32) * 0.1,
        "ewT": jax.random.normal(ks[4], (hp, Hd), f32) * sH,
        "eb": jax.random.normal(ks[5], (1, hp), f32) * 0.1,
        "DwT": jax.random.normal(ks[6], (hp, hp), f32) * 0.5,
        "Hwd": jax.random.normal(ks[7], (hp, hp), f32) * 0.5,
        "HwhT": jax.random.normal(ks[8], (hp, Hd), f32) * sH,
        "Hb": jax.random.normal(ks[9], (1, hp), f32) * 0.1,
        "lnhg": jnp.ones((1, Hd), f32),
        "lnhb": jnp.zeros((1, Hd), f32),
        "lneg": jnp.ones((1, Hd), f32),
        "lneb": jnp.zeros((1, Hd), f32),
    }


if __name__ == "__main__":
    B, V, Hd, hp, n_layers = 2, 8, 32, 1, 2
    key = jax.random.PRNGKey(0)
    k_h, k_g, k_p, k_e, k_l = jax.random.split(key, 5)
    h = jax.random.normal(k_h, (B, V, Hd), jnp.float32)
    graph = jax.random.uniform(k_g, (B, V, V)) > 0.5          # bool adjacency mask
    pos = jax.random.uniform(k_p, (B, V, 2), jnp.float32)
    emb = jax.random.normal(k_e, (2, Hd), jnp.float32) * 0.5  # init_embed_edges table
    layer_params = [init_layer_params(k, Hd, hp) for k in jax.random.split(k_l, n_layers)]

    run = jax.jit(gegnn_encoder_pallas, static_argnames=("num_coordinates",))
    out = run(h, graph, pos, emb, layer_params, num_coordinates=hp)
    out = jax.block_until_ready(out)

    ref = gegnn_encoder_ref(h, graph, pos, emb, layer_params, hp)
    err = float(jnp.max(jnp.abs(out - ref)))
    # Kernel and reference both use default MXU precision and bf16 edge storage.
    assert err < 2e-2, f"mismatch vs reference: {err}"
    print("KERNEL_OK")
</pallas_src>

<mosaic_0001>
module attributes {stable_mosaic.version = 11 : i64} {
  func.func @_gegnn_layer_kernel(%arg0: i32, %arg1: i32, %arg2: memref<1x8x32xf32, #tpu.memory_space<vmem>>, %arg3: memref<1x8x32xf32, #tpu.memory_space<vmem>>, %arg4: memref<1x8x32xf32, #tpu.memory_space<vmem>>, %arg5: memref<1x8x32xf32, #tpu.memory_space<vmem>>, %arg6: memref<1x8x32xf32, #tpu.memory_space<vmem>>, %arg7: memref<1x8x8x32xbf16, #tpu.memory_space<vmem>>, %arg8: memref<1x8x2xf32, #tpu.memory_space<vmem>>, %arg9: memref<1x8x2xf32, #tpu.memory_space<vmem>>, %arg10: memref<1x8x8xbf16, #tpu.memory_space<vmem>>, %arg11: memref<32x32xbf16, #tpu.memory_space<vmem>>, %arg12: memref<7x32xf32, #tpu.memory_space<vmem>>, %arg13: memref<4x1xf32, #tpu.memory_space<vmem>>, %arg14: memref<1x8x32xf32, #tpu.memory_space<vmem>>, %arg15: memref<1x8x8x32xbf16, #tpu.memory_space<vmem>>, %arg16: memref<1x8x2xf32, #tpu.memory_space<vmem>>) attributes {dimension_semantics = [#tpu.dimension_semantics<parallel>, #tpu.dimension_semantics<parallel>], iteration_bounds = array<i64: 2, 1>, scalar_prefetch = 0 : i64, scratch_operands = 0 : i64, tpu.core_type = #tpu.core_type<tc>, window_params = [{transform_indices = @transform_0, window_bounds = array<i64: 1, 8, 32>}, {transform_indices = @transform_1, window_bounds = array<i64: 1, 8, 32>}, {transform_indices = @transform_2, window_bounds = array<i64: 1, 8, 32>}, {transform_indices = @transform_3, window_bounds = array<i64: 1, 8, 32>}, {transform_indices = @transform_4, window_bounds = array<i64: 1, 8, 32>}, {transform_indices = @transform_5, window_bounds = array<i64: 1, 8, 8, 32>}, {transform_indices = @transform_6, window_bounds = array<i64: 1, 8, 2>}, {transform_indices = @transform_7, window_bounds = array<i64: 1, 8, 2>}, {transform_indices = @transform_8, window_bounds = array<i64: 1, 8, 8>}, {pipeline_mode = #tpu.pipeline_mode<synchronous>, transform_indices = @transform_9, window_bounds = array<i64: 32, 32>}, {pipeline_mode = #tpu.pipeline_mode<synchronous>, transform_indices = @transform_10, window_bounds = array<i64: 7, 32>}, {pipeline_mode = #tpu.pipeline_mode<synchronous>, transform_indices = @transform_11, window_bounds = array<i64: 4, 1>}, {transform_indices = @transform_12, window_bounds = array<i64: 1, 8, 32>}, {transform_indices = @transform_13, window_bounds = array<i64: 1, 8, 8, 32>}, {transform_indices = @transform_14, window_bounds = array<i64: 1, 8, 2>}]} {
    %c0 = arith.constant 0 : index
    %c0_0 = arith.constant 0 : index
    %0 = vector.load %arg12[%c0, %c0_0] : memref<7x32xf32, #tpu.memory_space<vmem>>, vector<7x32xf32>
    %c0_1 = arith.constant 0 : index
    %c0_2 = arith.constant 0 : index
    %1 = vector.load %arg13[%c0_1, %c0_2] : memref<4x1xf32, #tpu.memory_space<vmem>>, vector<4x1xf32>
    %2 = vector.extract_strided_slice %0 {offsets = [0, 0], sizes = [1, 32], strides = [1, 1]} : vector<7x32xf32> to vector<1x32xf32>
    %3 = vector.extract_strided_slice %0 {offsets = [1, 0], sizes = [1, 32], strides = [1, 1]} : vector<7x32xf32> to vector<1x32xf32>
    %4 = vector.extract_strided_slice %0 {offsets = [2, 0], sizes = [1, 32], strides = [1, 1]} : vector<7x32xf32> to vector<1x32xf32>
    %5 = vector.extract_strided_slice %0 {offsets = [3, 0], sizes = [1, 32], strides = [1, 1]} : vector<7x32xf32> to vector<1x32xf32>
    %6 = vector.extract_strided_slice %0 {offsets = [4, 0], sizes = [1, 32], strides = [1, 1]} : vector<7x32xf32> to vector<1x32xf32>
    %7 = vector.extract_strided_slice %0 {offsets = [5, 0], sizes = [1, 32], strides = [1, 1]} : vector<7x32xf32> to vector<1x32xf32>
    %8 = vector.extract_strided_slice %0 {offsets = [6, 0], sizes = [1, 32], strides = [1, 1]} : vector<7x32xf32> to vector<1x32xf32>
    %9 = vector.extract_strided_slice %1 {offsets = [0, 0], sizes = [1, 1], strides = [1, 1]} : vector<4x1xf32> to vector<1x1xf32>
    %10 = vector.extract_strided_slice %1 {offsets = [1, 0], sizes = [1, 1], strides = [1, 1]} : vector<4x1xf32> to vector<1x1xf32>
    %11 = vector.extract_strided_slice %1 {offsets = [2, 0], sizes = [1, 1], strides = [1, 1]} : vector<4x1xf32> to vector<1x1xf32>
    %12 = vector.extract_strided_slice %1 {offsets = [3, 0], sizes = [1, 1], strides = [1, 1]} : vector<4x1xf32> to vector<1x1xf32>
    %c0_3 = arith.constant 0 : index
    %c0_4 = arith.constant 0 : index
    %c0_5 = arith.constant 0 : index
    %13 = vector.load %arg2[%c0_3, %c0_4, %c0_5] : memref<1x8x32xf32, #tpu.memory_space<vmem>>, vector<1x8x32xf32>
    %14 = vector.shape_cast %13 : vector<1x8x32xf32> to vector<8x32xf32>
    %c0_6 = arith.constant 0 : index
    %c0_7 = arith.constant 0 : index
    %c0_8 = arith.constant 0 : index
    %15 = vector.load %arg3[%c0_6, %c0_7, %c0_8] : memref<1x8x32xf32, #tpu.memory_space<vmem>>, vector<1x8x32xf32>
    %16 = vector.shape_cast %15 : vector<1x8x32xf32> to vector<8x32xf32>
    %c0_9 = arith.constant 0 : index
    %c0_10 = arith.constant 0 : index
    %c0_11 = arith.constant 0 : index
    %17 = vector.load %arg4[%c0_9, %c0_10, %c0_11] : memref<1x8x32xf32, #tpu.memory_space<vmem>>, vector<1x8x32xf32>
    %18 = vector.shape_cast %17 : vector<1x8x32xf32> to vector<8x32xf32>
    %c0_12 = arith.constant 0 : index
    %c0_13 = arith.constant 0 : index
    %c0_14 = arith.constant 0 : index
    %19 = vector.load %arg5[%c0_12, %c0_13, %c0_14] : memref<1x8x32xf32, #tpu.memory_space<vmem>>, vector<1x8x32xf32>
    %20 = vector.shape_cast %19 : vector<1x8x32xf32> to vector<8x32xf32>
    %c0_15 = arith.constant 0 : index
    %c0_16 = arith.constant 0 : index
    %c0_17 = arith.constant 0 : index
    %21 = vector.load %arg6[%c0_15, %c0_16, %c0_17] : memref<1x8x32xf32, #tpu.memory_space<vmem>>, vector<1x8x32xf32>
    %22 = vector.shape_cast %21 : vector<1x8x32xf32> to vector<8x32xf32>
    %c0_18 = arith.constant 0 : index
    %c0_19 = arith.constant 0 : index
    %c0_20 = arith.constant 0 : index
    %23 = vector.load %arg8[%c0_18, %c0_19, %c0_20] : memref<1x8x2xf32, #tpu.memory_space<vmem>>, vector<1x8x2xf32>
    %24 = vector.shape_cast %23 : vector<1x8x2xf32> to vector<8x2xf32>
    %c0_21 = arith.constant 0 : index
    %c0_22 = arith.constant 0 : index
    %c0_23 = arith.constant 0 : index
    %25 = vector.load %arg9[%c0_21, %c0_22, %c0_23] : memref<1x8x2xf32, #tpu.memory_space<vmem>>, vector<1x8x2xf32>
    %26 = vector.shape_cast %25 : vector<1x8x2xf32> to vector<8x2xf32>
    %c0_24 = arith.constant 0 : index
    %c0_25 = arith.constant 0 : index
    %c0_26 = arith.constant 0 : index
    %c0_27 = arith.constant 0 : index
    %27 = vector.load %arg7[%c0_24, %c0_25, %c0_26, %c0_27] : memref<1x8x8x32xbf16, #tpu.memory_space<vmem>>, vector<1x8x8x32xbf16>
    %28 = vector.shape_cast %27 : vector<1x8x8x32xbf16> to vector<8x8x32xbf16>
    %c0_28 = arith.constant 0 : index
    %c0_29 = arith.constant 0 : index
    %c0_30 = arith.constant 0 : index
    %29 = vector.load %arg10[%c0_28, %c0_29, %c0_30] : memref<1x8x8xbf16, #tpu.memory_space<vmem>>, vector<1x8x8xbf16>
    %30 = vector.shape_cast %29 : vector<1x8x8xbf16> to vector<8x8xbf16>
    %31 = arith.extf %30 : vector<8x8xbf16> to vector<8x8xf32>
    %32 = vector.shape_cast %28 : vector<8x8x32xbf16> to vector<64x32xbf16>
    %c0_31 = arith.constant 0 : index
    %c0_32 = arith.constant 0 : index
    %33 = vector.load %arg11[%c0_31, %c0_32] : memref<32x32xbf16, #tpu.memory_space<vmem>>, vector<32x32xbf16>
    %cst = arith.constant dense<0.000000e+00> : vector<64x32xf32>
    %34 = tpu.matmul %32, %33, %cst {dimension_numbers = #tpu.dot_dimension_numbers<[1], [0], [0], [1], [0, 0, 1, 1], [], []>} : vector<64x32xbf16>, vector<32x32xbf16>, vector<64x32xf32> -> vector<64x32xf32>
    %35 = vector.shape_cast %34 : vector<64x32xf32> to vector<8x8x32xf32>
    %36 = vector.extract_strided_slice %26 {offsets = [0, 0], sizes = [8, 1], strides = [1, 1]} : vector<8x2xf32> to vector<8x1xf32>
    %37 = vector.shape_cast %36 : vector<8x1xf32> to vector<8x1x1xf32>
    %38 = vector.extract_strided_slice %24 {offsets = [0, 0], sizes = [8, 1], strides = [1, 1]} : vector<8x2xf32> to vector<8x1xf32>
    %39 = vector.shape_cast %38 : vector<8x1xf32> to vector<1x8x1xf32>
    %40 = vector.broadcast %37 : vector<8x1x1xf32> to vector<8x8x1xf32>
    %41 = vector.broadcast %39 : vector<1x8x1xf32> to vector<8x8x1xf32>
    %42 = arith.subf %40, %41 : vector<8x8x1xf32>
    %43 = vector.extract_strided_slice %26 {offsets = [0, 1], sizes = [8, 1], strides = [1, 1]} : vector<8x2xf32> to vector<8x1xf32>
    %44 = vector.shape_cast %43 : vector<8x1xf32> to vector<8x1x1xf32>
    %45 = vector.extract_strided_slice %24 {offsets = [0, 1], sizes = [8, 1], strides = [1, 1]} : vector<8x2xf32> to vector<8x1xf32>
    %46 = vector.shape_cast %45 : vector<8x1xf32> to vector<1x8x1xf32>
    %47 = vector.broadcast %44 : vector<8x1x1xf32> to vector<8x8x1xf32>
    %48 = vector.broadcast %46 : vector<1x8x1xf32> to vector<8x8x1xf32>
    %49 = arith.subf %47, %48 : vector<8x8x1xf32>
    %50 = arith.mulf %42, %42 : vector<8x8x1xf32>
    %51 = arith.mulf %49, %49 : vector<8x8x1xf32>
    %52 = arith.addf %50, %51 : vector<8x8x1xf32>
    %cst_33 = arith.constant 2.000000e-08 : f32
    %53 = vector.broadcast %cst_33 : f32 to vector<8x8x1xf32>
    %54 = arith.addf %52, %53 : vector<8x8x1xf32>
    %55 = math.sqrt %54 : vector<8x8x1xf32>
    %56 = vector.shape_cast %22 : vector<8x32xf32> to vector<1x8x32xf32>
    %57 = vector.shape_cast %18 : vector<8x32xf32> to vector<8x1x32xf32>
    %58 = vector.broadcast %56 : vector<1x8x32xf32> to vector<8x8x32xf32>
    %59 = vector.broadcast %57 : vector<8x1x32xf32> to vector<8x8x32xf32>
    %60 = arith.addf %58, %59 : vector<8x8x32xf32>
    %61 = arith.addf %60, %35 : vector<8x8x32xf32>
    %62 = vector.shape_cast %2 : vector<1x32xf32> to vector<1x1x32xf32>
    %63 = vector.broadcast %55 : vector<8x8x1xf32> to vector<8x8x32xf32>
    %64 = vector.broadcast %62 : vector<1x1x32xf32> to vector<8x8x32xf32>
    %65 = arith.mulf %63, %64 : vector<8x8x32xf32>
    %66 = arith.addf %61, %65 : vector<8x8x32xf32>
    %67 = arith.negf %66 : vector<8x8x32xf32>
    %68 = math.exp %67 : vector<8x8x32xf32>
    %cst_34 = arith.constant 1.000000e+00 : f32
    %69 = vector.broadcast %cst_34 : f32 to vector<8x8x32xf32>
    %70 = arith.addf %69, %68 : vector<8x8x32xf32>
    %71 = arith.divf %69, %70 : vector<8x8x32xf32>
    %72 = vector.shape_cast %31 : vector<8x8xf32> to vector<8x8x1xf32>
    %73 = vector.broadcast %72 : vector<8x8x1xf32> to vector<8x8x32xf32>
    %74 = arith.mulf %73, %71 : vector<8x8x32xf32>
    %75 = vector.shape_cast %3 : vector<1x32xf32> to vector<1x1x32xf32>
    %76 = vector.broadcast %75 : vector<1x1x32xf32> to vector<8x8x32xf32>
    %77 = arith.mulf %66, %76 : vector<8x8x32xf32>
    %cst_35 = arith.constant dense<0.000000e+00> : vector<8x8xf32>
    %78 = vector.multi_reduction <add>, %77, %cst_35 [2] : vector<8x8x32xf32> to vector<8x8xf32>
    %79 = vector.shape_cast %78 : vector<8x8xf32> to vector<8x8x1xf32>
    %80 = vector.shape_cast %11 : vector<1x1xf32> to vector<1x1x1xf32>
    %81 = vector.broadcast %80 : vector<1x1x1xf32> to vector<8x8x1xf32>
    %82 = arith.addf %79, %81 : vector<8x8x1xf32>
    %83 = arith.negf %82 : vector<8x8x1xf32>
    %84 = math.exp %83 : vector<8x8x1xf32>
    %cst_36 = arith.constant 1.000000e+00 : f32
    %85 = vector.broadcast %cst_36 : f32 to vector<8x8x1xf32>
    %86 = arith.addf %85, %84 : vector<8x8x1xf32>
    %87 = arith.divf %85, %86 : vector<8x8x1xf32>
    %88 = vector.shape_cast %31 : vector<8x8xf32> to vector<8x8x1xf32>
    %89 = arith.mulf %87, %88 : vector<8x8x1xf32>
    %90 = arith.mulf %89, %42 : vector<8x8x1xf32>
    %cst_37 = arith.constant dense<0.000000e+00> : vector<8x1xf32>
    %91 = vector.multi_reduction <add>, %90, %cst_37 [1] : vector<8x8x1xf32> to vector<8x1xf32>
    %92 = arith.mulf %89, %49 : vector<8x8x1xf32>
    %cst_38 = arith.constant dense<0.000000e+00> : vector<8x1xf32>
    %93 = vector.multi_reduction <add>, %92, %cst_38 [1] : vector<8x8x1xf32> to vector<8x1xf32>
    %cst_39 = arith.constant dense<0.000000e+00> : vector<8x8xf32>
    %94 = vector.multi_reduction <add>, %66, %cst_39 [2] : vector<8x8x32xf32> to vector<8x8xf32>
    %95 = vector.shape_cast %94 : vector<8x8xf32> to vector<8x8x1xf32>
    %cst_40 = arith.constant 3.200000e+01 : f32
    %96 = vector.broadcast %cst_40 : f32 to vector<8x8x1xf32>
    %97 = arith.divf %95, %96 : vector<8x8x1xf32>
    %98 = vector.broadcast %97 : vector<8x8x1xf32> to vector<8x8x32xf32>
    %99 = arith.subf %66, %98 : vector<8x8x32xf32>
    %100 = arith.mulf %99, %99 : vector<8x8x32xf32>
    %cst_41 = arith.constant dense<0.000000e+00> : vector<8x8xf32>
    %101 = vector.multi_reduction <add>, %100, %cst_41 [2] : vector<8x8x32xf32> to vector<8x8xf32>
    %102 = vector.shape_cast %101 : vector<8x8xf32> to vector<8x8x1xf32>
    %cst_42 = arith.constant 3.200000e+01 : f32
    %103 = vector.broadcast %cst_42 : f32 to vector<8x8x1xf32>
    %104 = arith.divf %102, %103 : vector<8x8x1xf32>
    %cst_43 = arith.constant 9.99999974E-6 : f32
    %105 = vector.broadcast %cst_43 : f32 to vector<8x8x1xf32>
    %106 = arith.addf %104, %105 : vector<8x8x1xf32>
    %107 = math.rsqrt %106 : vector<8x8x1xf32>
    %108 = vector.broadcast %107 : vector<8x8x1xf32> to vector<8x8x32xf32>
    %109 = arith.mulf %99, %108 : vector<8x8x32xf32>
    %110 = vector.shape_cast %7 : vector<1x32xf32> to vector<1x1x32xf32>
    %111 = vector.broadcast %110 : vector<1x1x32xf32> to vector<8x8x32xf32>
    %112 = arith.mulf %109, %111 : vector<8x8x32xf32>
    %113 = vector.shape_cast %8 : vector<1x32xf32> to vector<1x1x32xf32>
    %114 = vector.broadcast %113 : vector<1x1x32xf32> to vector<8x8x32xf32>
    %115 = arith.addf %112, %114 : vector<8x8x32xf32>
    %cst_44 = arith.constant 0.000000e+00 : f32
    %116 = vector.broadcast %cst_44 : f32 to vector<8x8x32xf32>
    %117 = arith.maximumf %115, %116 : vector<8x8x32xf32>
    %118 = arith.extf %28 : vector<8x8x32xbf16> to vector<8x8x32xf32>
    %119 = arith.addf %118, %117 : vector<8x8x32xf32>
    %120 = arith.truncf %119 : vector<8x8x32xf32> to vector<8x8x32xbf16>
    %c0_45 = arith.constant 0 : index
    %c0_46 = arith.constant 0 : index
    %c0_47 = arith.constant 0 : index
    %c0_48 = arith.constant 0 : index
    %121 = vector.load %arg15[%c0_45, %c0_46, %c0_47, %c0_48] : memref<1x8x8x32xbf16, #tpu.memory_space<vmem>>, vector<1x8x8x32xbf16>
    %122 = vector.shape_cast %121 : vector<1x8x8x32xbf16> to vector<8x8x32xbf16>
    %123 = vector.shape_cast %120 : vector<8x8x32xbf16> to vector<1x8x8x32xbf16>
    tpu.vector_store %arg15[%c0_45, %c0_46, %c0_47, %c0_48], %123 {strides = array<i32>} : memref<1x8x8x32xbf16, #tpu.memory_space<vmem>>, vector<1x8x8x32xbf16>,
    %124 = vector.shape_cast %20 : vector<8x32xf32> to vector<1x8x32xf32>
    %125 = vector.broadcast %124 : vector<1x8x32xf32> to vector<8x8x32xf32>
    %126 = arith.mulf %74, %125 : vector<8x8x32xf32>
    %cst_49 = arith.constant dense<0.000000e+00> : vector<8x32xf32>
    %127 = vector.multi_reduction <add>, %126, %cst_49 [1] : vector<8x8x32xf32> to vector<8x32xf32>
    %128 = arith.addf %16, %127 : vector<8x32xf32>
    %cst_50 = arith.constant dense<0.000000e+00> : vector<8xf32>
    %129 = vector.multi_reduction <add>, %128, %cst_50 [1] : vector<8x32xf32> to vector<8xf32>
    %130 = vector.shape_cast %129 : vector<8xf32> to vector<8x1xf32>
    %cst_51 = arith.constant 3.200000e+01 : f32
    %131 = vector.broadcast %cst_51 : f32 to vector<8x1xf32>
    %132 = arith.divf %130, %131 : vector<8x1xf32>
    %133 = vector.broadcast %132 : vector<8x1xf32> to vector<8x32xf32>
    %134 = arith.subf %128, %133 : vector<8x32xf32>
    %135 = arith.mulf %134, %134 : vector<8x32xf32>
    %cst_52 = arith.constant dense<0.000000e+00> : vector<8xf32>
    %136 = vector.multi_reduction <add>, %135, %cst_52 [1] : vector<8x32xf32> to vector<8xf32>
    %137 = vector.shape_cast %136 : vector<8xf32> to vector<8x1xf32>
    %cst_53 = arith.constant 3.200000e+01 : f32
    %138 = vector.broadcast %cst_53 : f32 to vector<8x1xf32>
    %139 = arith.divf %137, %138 : vector<8x1xf32>
    %cst_54 = arith.constant 9.99999974E-6 : f32
    %140 = vector.broadcast %cst_54 : f32 to vector<8x1xf32>
    %141 = arith.addf %139, %140 : vector<8x1xf32>
    %142 = math.rsqrt %141 : vector<8x1xf32>
    %143 = vector.broadcast %142 : vector<8x1xf32> to vector<8x32xf32>
    %144 = arith.mulf %134, %143 : vector<8x32xf32>
    %145 = vector.broadcast %5 : vector<1x32xf32> to vector<8x32xf32>
    %146 = arith.mulf %144, %145 : vector<8x32xf32>
    %147 = vector.broadcast %6 : vector<1x32xf32> to vector<8x32xf32>
    %148 = arith.addf %146, %147 : vector<8x32xf32>
    %cst_55 = arith.constant 0.000000e+00 : f32
    %149 = vector.broadcast %cst_55 : f32 to vector<8x32xf32>
    %150 = arith.maximumf %148, %149 : vector<8x32xf32>
    %151 = arith.addf %14, %150 : vector<8x32xf32>
    %c0_56 = arith.constant 0 : index
    %c0_57 = arith.constant 0 : index
    %c0_58 = arith.constant 0 : index
    %152 = vector.load %arg14[%c0_56, %c0_57, %c0_58] : memref<1x8x32xf32, #tpu.memory_space<vmem>>, vector<1x8x32xf32>
    %153 = vector.shape_cast %152 : vector<1x8x32xf32> to vector<8x32xf32>
    %154 = vector.shape_cast %151 : vector<8x32xf32> to vector<1x8x32xf32>
    tpu.vector_store %arg14[%c0_56, %c0_57, %c0_58], %154 {strides = array<i32>} : memref<1x8x32xf32, #tpu.memory_space<vmem>>, vector<1x8x32xf32>,
    %155 = vector.broadcast %9 : vector<1x1xf32> to vector<8x1xf32>
    %156 = arith.mulf %91, %155 : vector<8x1xf32>
    %157 = vector.broadcast %9 : vector<1x1xf32> to vector<8x1xf32>
    %158 = arith.mulf %93, %157 : vector<8x1xf32>
    %159 = arith.mulf %91, %91 : vector<8x1xf32>
    %160 = arith.mulf %93, %93 : vector<8x1xf32>
    %161 = arith.addf %159, %160 : vector<8x1xf32>
    %cst_59 = arith.constant 9.99999974E-5 : f32
    %162 = vector.broadcast %cst_59 : f32 to vector<8x1xf32>
    %163 = arith.addf %161, %162 : vector<8x1xf32>
    %164 = math.sqrt %163 : vector<8x1xf32>
    %165 = vector.broadcast %10 : vector<1x1xf32> to vector<8x1xf32>
    %166 = arith.mulf %164, %165 : vector<8x1xf32>
    %167 = vector.broadcast %4 : vector<1x32xf32> to vector<8x32xf32>
    %168 = arith.mulf %14, %167 : vector<8x32xf32>
    %cst_60 = arith.constant dense<0.000000e+00> : vector<8xf32>
    %169 = vector.multi_reduction <add>, %168, %cst_60 [1] : vector<8x32xf32> to vector<8xf32>
    %170 = vector.shape_cast %169 : vector<8xf32> to vector<8x1xf32>
    %171 = arith.addf %166, %170 : vector<8x1xf32>
    %172 = vector.broadcast %12 : vector<1x1xf32> to vector<8x1xf32>
    %173 = arith.addf %171, %172 : vector<8x1xf32>
    %174 = arith.negf %173 : vector<8x1xf32>
    %175 = math.exp %174 : vector<8x1xf32>
    %cst_61 = arith.constant 1.000000e+00 : f32
    %176 = vector.broadcast %cst_61 : f32 to vector<8x1xf32>
    %177 = arith.addf %176, %175 : vector<8x1xf32>
    %178 = arith.divf %176, %177 : vector<8x1xf32>
    %179 = arith.mulf %156, %178 : vector<8x1xf32>
    %180 = arith.mulf %158, %178 : vector<8x1xf32>
    %181 = tpu.concatenate %179, %180 in 1 : vector<8x1xf32>, vector<8x1xf32> -> vector<8x2xf32>
    %182 = arith.addf %26, %181 : vector<8x2xf32>
    %c0_62 = arith.constant 0 : index
    %c0_63 = arith.constant 0 : index
    %c0_64 = arith.constant 0 : index
    %183 = vector.load %arg16[%c0_62, %c0_63, %c0_64] : memref<1x8x2xf32, #tpu.memory_space<vmem>>, vector<1x8x2xf32>
    %184 = vector.shape_cast %183 : vector<1x8x2xf32> to vector<8x2xf32>
    %185 = vector.shape_cast %182 : vector<8x2xf32> to vector<1x8x2xf32>
    tpu.vector_store %arg16[%c0_62, %c0_63, %c0_64], %185 {strides = array<i32>} : memref<1x8x2xf32, #tpu.memory_space<vmem>>, vector<1x8x2xf32>,
    return
  }
  func.func @transform_0(%arg0: i32, %arg1: i32) -> (i32, i32, i32) {
    %c0_i32 = arith.constant 0 : i32
    %c0_i32_0 = arith.constant 0 : i32
    return %arg0, %arg1, %c0_i32 : i32, i32, i32
  }
  func.func @transform_1(%arg0: i32, %arg1: i32) -> (i32, i32, i32) {
    %c0_i32 = arith.constant 0 : i32
    %c0_i32_0 = arith.constant 0 : i32
    return %arg0, %arg1, %c0_i32 : i32, i32, i32
  }
  func.func @transform_2(%arg0: i32, %arg1: i32) -> (i32, i32, i32) {
    %c0_i32 = arith.constant 0 : i32
    %c0_i32_0 = arith.constant 0 : i32
    return %arg0, %arg1, %c0_i32 : i32, i32, i32
  }
  func.func @transform_3(%arg0: i32, %arg1: i32) -> (i32, i32, i32) {
    %c0_i32 = arith.constant 0 : i32
    %c0_i32_0 = arith.constant 0 : i32
    %c0_i32_1 = arith.constant 0 : i32
    return %arg0, %c0_i32, %c0_i32_0 : i32, i32, i32
  }
  func.func @transform_4(%arg0: i32, %arg1: i32) -> (i32, i32, i32) {
    %c0_i32 = arith.constant 0 : i32
    %c0_i32_0 = arith.constant 0 : i32
    %c0_i32_1 = arith.constant 0 : i32
    return %arg0, %c0_i32, %c0_i32_0 : i32, i32, i32
  }
  func.func @transform_5(%arg0: i32, %arg1: i32) -> (i32, i32, i32, i32) {
    %c0_i32 = arith.constant 0 : i32
    %c0_i32_0 = arith.constant 0 : i32
    %c0_i32_1 = arith.constant 0 : i32
    return %arg0, %arg1, %c0_i32, %c0_i32_0 : i32, i32, i32, i32
  }
  func.func @transform_6(%arg0: i32, %arg1: i32) -> (i32, i32, i32) {
    %c0_i32 = arith.constant 0 : i32
    %c0_i32_0 = arith.constant 0 : i32
    %c0_i32_1 = arith.constant 0 : i32
    return %arg0, %c0_i32, %c0_i32_0 : i32, i32, i32
  }
  func.func @transform_7(%arg0: i32, %arg1: i32) -> (i32, i32, i32) {
    %c0_i32 = arith.constant 0 : i32
    %c0_i32_0 = arith.constant 0 : i32
    return %arg0, %arg1, %c0_i32 : i32, i32, i32
  }
  func.func @transform_8(%arg0: i32, %arg1: i32) -> (i32, i32, i32) {
    %c0_i32 = arith.constant 0 : i32
    %c0_i32_0 = arith.constant 0 : i32
    return %arg0, %arg1, %c0_i32 : i32, i32, i32
  }
  func.func @transform_9(%arg0: i32, %arg1: i32) -> (i32, i32) {
    %c0_i32 = arith.constant 0 : i32
    %c0_i32_0 = arith.constant 0 : i32
    %c0_i32_1 = arith.constant 0 : i32
    return %c0_i32, %c0_i32_0 : i32, i32
  }
  func.func @transform_10(%arg0: i32, %arg1: i32) -> (i32, i32) {
    %c0_i32 = arith.constant 0 : i32
    %c0_i32_0 = arith.constant 0 : i32
    %c0_i32_1 = arith.constant 0 : i32
    return %c0_i32, %c0_i32_0 : i32, i32
  }
  func.func @transform_11(%arg0: i32, %arg1: i32) -> (i32, i32) {
    %c0_i32 = arith.constant 0 : i32
    %c0_i32_0 = arith.constant 0 : i32
    %c0_i32_1 = arith.constant 0 : i32
    return %c0_i32, %c0_i32_0 : i32, i32
  }
  func.func @transform_12(%arg0: i32, %arg1: i32) -> (i32, i32, i32) {
    %c0_i32 = arith.constant 0 : i32
    %c0_i32_0 = arith.constant 0 : i32
    return %arg0, %arg1, %c0_i32 : i32, i32, i32
  }
  func.func @transform_13(%arg0: i32, %arg1: i32) -> (i32, i32, i32, i32) {
    %c0_i32 = arith.constant 0 : i32
    %c0_i32_0 = arith.constant 0 : i32
    %c0_i32_1 = arith.constant 0 : i32
    return %arg0, %arg1, %c0_i32, %c0_i32_0 : i32, i32, i32, i32
  }
  func.func @transform_14(%arg0: i32, %arg1: i32) -> (i32, i32, i32) {
    %c0_i32 = arith.constant 0 : i32
    %c0_i32_0 = arith.constant 0 : i32
    return %arg0, %arg1, %c0_i32 : i32, i32, i32
  }
}

module attributes {stable_mosaic.version = 11 : i64} {
  func.func @_gegnn_layer_kernel(%arg0: i32, %arg1: i32, %arg2: memref<1x8x32xf32, #tpu.memory_space<vmem>>, %arg3: memref<1x8x32xf32, #tpu.memory_space<vmem>>, %arg4: memref<1x8x32xf32, #tpu.memory_space<vmem>>, %arg5: memref<1x8x32xf32, #tpu.memory_space<vmem>>, %arg6: memref<1x8x32xf32, #tpu.memory_space<vmem>>, %arg7: memref<1x8x8x32xbf16, #tpu.memory_space<vmem>>, %arg8: memref<1x8x2xf32, #tpu.memory_space<vmem>>, %arg9: memref<1x8x2xf32, #tpu.memory_space<vmem>>, %arg10: memref<1x8x8xbf16, #tpu.memory_space<vmem>>, %arg11: memref<32x32xbf16, #tpu.memory_space<vmem>>, %arg12: memref<7x32xf32, #tpu.memory_space<vmem>>, %arg13: memref<4x1xf32, #tpu.memory_space<vmem>>, %arg14: memref<1x8x32xf32, #tpu.memory_space<vmem>>, %arg15: memref<1x8x8x32xbf16, #tpu.memory_space<vmem>>, %arg16: memref<1x8x2xf32, #tpu.memory_space<vmem>>) attributes {dimension_semantics = [#tpu.dimension_semantics<parallel>, #tpu.dimension_semantics<parallel>], iteration_bounds = array<i64: 2, 1>, scalar_prefetch = 0 : i64, scratch_operands = 0 : i64, tpu.core_type = #tpu.core_type<tc>, window_params = [{transform_indices = @transform_0, window_bounds = array<i64: 1, 8, 32>}, {transform_indices = @transform_1, window_bounds = array<i64: 1, 8, 32>}, {transform_indices = @transform_2, window_bounds = array<i64: 1, 8, 32>}, {transform_indices = @transform_3, window_bounds = array<i64: 1, 8, 32>}, {transform_indices = @transform_4, window_bounds = array<i64: 1, 8, 32>}, {transform_indices = @transform_5, window_bounds = array<i64: 1, 8, 8, 32>}, {transform_indices = @transform_6, window_bounds = array<i64: 1, 8, 2>}, {transform_indices = @transform_7, window_bounds = array<i64: 1, 8, 2>}, {transform_indices = @transform_8, window_bounds = array<i64: 1, 8, 8>}, {pipeline_mode = #tpu.pipeline_mode<synchronous>, transform_indices = @transform_9, window_bounds = array<i64: 32, 32>}, {pipeline_mode = #tpu.pipeline_mode<synchronous>, transform_indices = @transform_10, window_bounds = array<i64: 7, 32>}, {pipeline_mode = #tpu.pipeline_mode<synchronous>, transform_indices = @transform_11, window_bounds = array<i64: 4, 1>}, {transform_indices = @transform_12, window_bounds = array<i64: 1, 8, 32>}, {transform_indices = @transform_13, window_bounds = array<i64: 1, 8, 8, 32>}, {transform_indices = @transform_14, window_bounds = array<i64: 1, 8, 2>}]} {
    %c0 = arith.constant 0 : index
    %c0_0 = arith.constant 0 : index
    %0 = vector.load %arg12[%c0, %c0_0] : memref<7x32xf32, #tpu.memory_space<vmem>>, vector<7x32xf32>
    %c0_1 = arith.constant 0 : index
    %c0_2 = arith.constant 0 : index
    %1 = vector.load %arg13[%c0_1, %c0_2] : memref<4x1xf32, #tpu.memory_space<vmem>>, vector<4x1xf32>
    %2 = vector.extract_strided_slice %0 {offsets = [0, 0], sizes = [1, 32], strides = [1, 1]} : vector<7x32xf32> to vector<1x32xf32>
    %3 = vector.extract_strided_slice %0 {offsets = [1, 0], sizes = [1, 32], strides = [1, 1]} : vector<7x32xf32> to vector<1x32xf32>
    %4 = vector.extract_strided_slice %0 {offsets = [2, 0], sizes = [1, 32], strides = [1, 1]} : vector<7x32xf32> to vector<1x32xf32>
    %5 = vector.extract_strided_slice %0 {offsets = [3, 0], sizes = [1, 32], strides = [1, 1]} : vector<7x32xf32> to vector<1x32xf32>
    %6 = vector.extract_strided_slice %0 {offsets = [4, 0], sizes = [1, 32], strides = [1, 1]} : vector<7x32xf32> to vector<1x32xf32>
    %7 = vector.extract_strided_slice %0 {offsets = [5, 0], sizes = [1, 32], strides = [1, 1]} : vector<7x32xf32> to vector<1x32xf32>
    %8 = vector.extract_strided_slice %0 {offsets = [6, 0], sizes = [1, 32], strides = [1, 1]} : vector<7x32xf32> to vector<1x32xf32>
    %9 = vector.extract_strided_slice %1 {offsets = [0, 0], sizes = [1, 1], strides = [1, 1]} : vector<4x1xf32> to vector<1x1xf32>
    %10 = vector.extract_strided_slice %1 {offsets = [1, 0], sizes = [1, 1], strides = [1, 1]} : vector<4x1xf32> to vector<1x1xf32>
    %11 = vector.extract_strided_slice %1 {offsets = [2, 0], sizes = [1, 1], strides = [1, 1]} : vector<4x1xf32> to vector<1x1xf32>
    %12 = vector.extract_strided_slice %1 {offsets = [3, 0], sizes = [1, 1], strides = [1, 1]} : vector<4x1xf32> to vector<1x1xf32>
    %c0_3 = arith.constant 0 : index
    %c0_4 = arith.constant 0 : index
    %c0_5 = arith.constant 0 : index
    %13 = vector.load %arg2[%c0_3, %c0_4, %c0_5] : memref<1x8x32xf32, #tpu.memory_space<vmem>>, vector<1x8x32xf32>
    %14 = vector.shape_cast %13 : vector<1x8x32xf32> to vector<8x32xf32>
    %c0_6 = arith.constant 0 : index
    %c0_7 = arith.constant 0 : index
    %c0_8 = arith.constant 0 : index
    %15 = vector.load %arg3[%c0_6, %c0_7, %c0_8] : memref<1x8x32xf32, #tpu.memory_space<vmem>>, vector<1x8x32xf32>
    %16 = vector.shape_cast %15 : vector<1x8x32xf32> to vector<8x32xf32>
    %c0_9 = arith.constant 0 : index
    %c0_10 = arith.constant 0 : index
    %c0_11 = arith.constant 0 : index
    %17 = vector.load %arg4[%c0_9, %c0_10, %c0_11] : memref<1x8x32xf32, #tpu.memory_space<vmem>>, vector<1x8x32xf32>
    %18 = vector.shape_cast %17 : vector<1x8x32xf32> to vector<8x32xf32>
    %c0_12 = arith.constant 0 : index
    %c0_13 = arith.constant 0 : index
    %c0_14 = arith.constant 0 : index
    %19 = vector.load %arg5[%c0_12, %c0_13, %c0_14] : memref<1x8x32xf32, #tpu.memory_space<vmem>>, vector<1x8x32xf32>
    %20 = vector.shape_cast %19 : vector<1x8x32xf32> to vector<8x32xf32>
    %c0_15 = arith.constant 0 : index
    %c0_16 = arith.constant 0 : index
    %c0_17 = arith.constant 0 : index
    %21 = vector.load %arg6[%c0_15, %c0_16, %c0_17] : memref<1x8x32xf32, #tpu.memory_space<vmem>>, vector<1x8x32xf32>
    %22 = vector.shape_cast %21 : vector<1x8x32xf32> to vector<8x32xf32>
    %c0_18 = arith.constant 0 : index
    %c0_19 = arith.constant 0 : index
    %c0_20 = arith.constant 0 : index
    %23 = vector.load %arg8[%c0_18, %c0_19, %c0_20] : memref<1x8x2xf32, #tpu.memory_space<vmem>>, vector<1x8x2xf32>
    %24 = vector.shape_cast %23 : vector<1x8x2xf32> to vector<8x2xf32>
    %c0_21 = arith.constant 0 : index
    %c0_22 = arith.constant 0 : index
    %c0_23 = arith.constant 0 : index
    %25 = vector.load %arg9[%c0_21, %c0_22, %c0_23] : memref<1x8x2xf32, #tpu.memory_space<vmem>>, vector<1x8x2xf32>
    %26 = vector.shape_cast %25 : vector<1x8x2xf32> to vector<8x2xf32>
    %c0_24 = arith.constant 0 : index
    %c0_25 = arith.constant 0 : index
    %c0_26 = arith.constant 0 : index
    %c0_27 = arith.constant 0 : index
    %27 = vector.load %arg7[%c0_24, %c0_25, %c0_26, %c0_27] : memref<1x8x8x32xbf16, #tpu.memory_space<vmem>>, vector<1x8x8x32xbf16>
    %28 = vector.shape_cast %27 : vector<1x8x8x32xbf16> to vector<8x8x32xbf16>
    %c0_28 = arith.constant 0 : index
    %c0_29 = arith.constant 0 : index
    %c0_30 = arith.constant 0 : index
    %29 = vector.load %arg10[%c0_28, %c0_29, %c0_30] : memref<1x8x8xbf16, #tpu.memory_space<vmem>>, vector<1x8x8xbf16>
    %30 = vector.shape_cast %29 : vector<1x8x8xbf16> to vector<8x8xbf16>
    %31 = arith.extf %30 : vector<8x8xbf16> to vector<8x8xf32>
    %32 = vector.shape_cast %28 : vector<8x8x32xbf16> to vector<64x32xbf16>
    %c0_31 = arith.constant 0 : index
    %c0_32 = arith.constant 0 : index
    %33 = vector.load %arg11[%c0_31, %c0_32] : memref<32x32xbf16, #tpu.memory_space<vmem>>, vector<32x32xbf16>
    %cst = arith.constant dense<0.000000e+00> : vector<64x32xf32>
    %34 = tpu.matmul %32, %33, %cst {dimension_numbers = #tpu.dot_dimension_numbers<[1], [0], [0], [1], [0, 0, 1, 1], [], []>} : vector<64x32xbf16>, vector<32x32xbf16>, vector<64x32xf32> -> vector<64x32xf32>
    %35 = vector.shape_cast %34 : vector<64x32xf32> to vector<8x8x32xf32>
    %36 = vector.extract_strided_slice %26 {offsets = [0, 0], sizes = [8, 1], strides = [1, 1]} : vector<8x2xf32> to vector<8x1xf32>
    %37 = vector.shape_cast %36 : vector<8x1xf32> to vector<8x1x1xf32>
    %38 = vector.extract_strided_slice %24 {offsets = [0, 0], sizes = [8, 1], strides = [1, 1]} : vector<8x2xf32> to vector<8x1xf32>
    %39 = vector.shape_cast %38 : vector<8x1xf32> to vector<1x8x1xf32>
    %40 = vector.broadcast %37 : vector<8x1x1xf32> to vector<8x8x1xf32>
    %41 = vector.broadcast %39 : vector<1x8x1xf32> to vector<8x8x1xf32>
    %42 = arith.subf %40, %41 : vector<8x8x1xf32>
    %43 = vector.extract_strided_slice %26 {offsets = [0, 1], sizes = [8, 1], strides = [1, 1]} : vector<8x2xf32> to vector<8x1xf32>
    %44 = vector.shape_cast %43 : vector<8x1xf32> to vector<8x1x1xf32>
    %45 = vector.extract_strided_slice %24 {offsets = [0, 1], sizes = [8, 1], strides = [1, 1]} : vector<8x2xf32> to vector<8x1xf32>
    %46 = vector.shape_cast %45 : vector<8x1xf32> to vector<1x8x1xf32>
    %47 = vector.broadcast %44 : vector<8x1x1xf32> to vector<8x8x1xf32>
    %48 = vector.broadcast %46 : vector<1x8x1xf32> to vector<8x8x1xf32>
    %49 = arith.subf %47, %48 : vector<8x8x1xf32>
    %50 = arith.mulf %42, %42 : vector<8x8x1xf32>
    %51 = arith.mulf %49, %49 : vector<8x8x1xf32>
    %52 = arith.addf %50, %51 : vector<8x8x1xf32>
    %cst_33 = arith.constant 2.000000e-08 : f32
    %53 = vector.broadcast %cst_33 : f32 to vector<8x8x1xf32>
    %54 = arith.addf %52, %53 : vector<8x8x1xf32>
    %55 = math.sqrt %54 : vector<8x8x1xf32>
    %56 = vector.shape_cast %22 : vector<8x32xf32> to vector<1x8x32xf32>
    %57 = vector.shape_cast %18 : vector<8x32xf32> to vector<8x1x32xf32>
    %58 = vector.broadcast %56 : vector<1x8x32xf32> to vector<8x8x32xf32>
    %59 = vector.broadcast %57 : vector<8x1x32xf32> to vector<8x8x32xf32>
    %60 = arith.addf %58, %59 : vector<8x8x32xf32>
    %61 = arith.addf %60, %35 : vector<8x8x32xf32>
    %62 = vector.shape_cast %2 : vector<1x32xf32> to vector<1x1x32xf32>
    %63 = vector.broadcast %55 : vector<8x8x1xf32> to vector<8x8x32xf32>
    %64 = vector.broadcast %62 : vector<1x1x32xf32> to vector<8x8x32xf32>
    %65 = arith.mulf %63, %64 : vector<8x8x32xf32>
    %66 = arith.addf %61, %65 : vector<8x8x32xf32>
    %67 = arith.negf %66 : vector<8x8x32xf32>
    %68 = math.exp %67 : vector<8x8x32xf32>
    %cst_34 = arith.constant 1.000000e+00 : f32
    %69 = vector.broadcast %cst_34 : f32 to vector<8x8x32xf32>
    %70 = arith.addf %69, %68 : vector<8x8x32xf32>
    %71 = arith.divf %69, %70 : vector<8x8x32xf32>
    %72 = vector.shape_cast %31 : vector<8x8xf32> to vector<8x8x1xf32>
    %73 = vector.broadcast %72 : vector<8x8x1xf32> to vector<8x8x32xf32>
    %74 = arith.mulf %73, %71 : vector<8x8x32xf32>
    %75 = vector.shape_cast %3 : vector<1x32xf32> to vector<1x1x32xf32>
    %76 = vector.broadcast %75 : vector<1x1x32xf32> to vector<8x8x32xf32>
    %77 = arith.mulf %66, %76 : vector<8x8x32xf32>
    %cst_35 = arith.constant dense<0.000000e+00> : vector<8x8xf32>
    %78 = vector.multi_reduction <add>, %77, %cst_35 [2] : vector<8x8x32xf32> to vector<8x8xf32>
    %79 = vector.shape_cast %78 : vector<8x8xf32> to vector<8x8x1xf32>
    %80 = vector.shape_cast %11 : vector<1x1xf32> to vector<1x1x1xf32>
    %81 = vector.broadcast %80 : vector<1x1x1xf32> to vector<8x8x1xf32>
    %82 = arith.addf %79, %81 : vector<8x8x1xf32>
    %83 = arith.negf %82 : vector<8x8x1xf32>
    %84 = math.exp %83 : vector<8x8x1xf32>
    %cst_36 = arith.constant 1.000000e+00 : f32
    %85 = vector.broadcast %cst_36 : f32 to vector<8x8x1xf32>
    %86 = arith.addf %85, %84 : vector<8x8x1xf32>
    %87 = arith.divf %85, %86 : vector<8x8x1xf32>
    %88 = vector.shape_cast %31 : vector<8x8xf32> to vector<8x8x1xf32>
    %89 = arith.mulf %87, %88 : vector<8x8x1xf32>
    %90 = arith.mulf %89, %42 : vector<8x8x1xf32>
    %cst_37 = arith.constant dense<0.000000e+00> : vector<8x1xf32>
    %91 = vector.multi_reduction <add>, %90, %cst_37 [1] : vector<8x8x1xf32> to vector<8x1xf32>
    %92 = arith.mulf %89, %49 : vector<8x8x1xf32>
    %cst_38 = arith.constant dense<0.000000e+00> : vector<8x1xf32>
    %93 = vector.multi_reduction <add>, %92, %cst_38 [1] : vector<8x8x1xf32> to vector<8x1xf32>
    %cst_39 = arith.constant dense<0.000000e+00> : vector<8x8xf32>
    %94 = vector.multi_reduction <add>, %66, %cst_39 [2] : vector<8x8x32xf32> to vector<8x8xf32>
    %95 = vector.shape_cast %94 : vector<8x8xf32> to vector<8x8x1xf32>
    %cst_40 = arith.constant 3.200000e+01 : f32
    %96 = vector.broadcast %cst_40 : f32 to vector<8x8x1xf32>
    %97 = arith.divf %95, %96 : vector<8x8x1xf32>
    %98 = vector.broadcast %97 : vector<8x8x1xf32> to vector<8x8x32xf32>
    %99 = arith.subf %66, %98 : vector<8x8x32xf32>
    %100 = arith.mulf %99, %99 : vector<8x8x32xf32>
    %cst_41 = arith.constant dense<0.000000e+00> : vector<8x8xf32>
    %101 = vector.multi_reduction <add>, %100, %cst_41 [2] : vector<8x8x32xf32> to vector<8x8xf32>
    %102 = vector.shape_cast %101 : vector<8x8xf32> to vector<8x8x1xf32>
    %cst_42 = arith.constant 3.200000e+01 : f32
    %103 = vector.broadcast %cst_42 : f32 to vector<8x8x1xf32>
    %104 = arith.divf %102, %103 : vector<8x8x1xf32>
    %cst_43 = arith.constant 9.99999974E-6 : f32
    %105 = vector.broadcast %cst_43 : f32 to vector<8x8x1xf32>
    %106 = arith.addf %104, %105 : vector<8x8x1xf32>
    %107 = math.rsqrt %106 : vector<8x8x1xf32>
    %108 = vector.broadcast %107 : vector<8x8x1xf32> to vector<8x8x32xf32>
    %109 = arith.mulf %99, %108 : vector<8x8x32xf32>
    %110 = vector.shape_cast %7 : vector<1x32xf32> to vector<1x1x32xf32>
    %111 = vector.broadcast %110 : vector<1x1x32xf32> to vector<8x8x32xf32>
    %112 = arith.mulf %109, %111 : vector<8x8x32xf32>
    %113 = vector.shape_cast %8 : vector<1x32xf32> to vector<1x1x32xf32>
    %114 = vector.broadcast %113 : vector<1x1x32xf32> to vector<8x8x32xf32>
    %115 = arith.addf %112, %114 : vector<8x8x32xf32>
    %cst_44 = arith.constant 0.000000e+00 : f32
    %116 = vector.broadcast %cst_44 : f32 to vector<8x8x32xf32>
    %117 = arith.maximumf %115, %116 : vector<8x8x32xf32>
    %118 = arith.extf %28 : vector<8x8x32xbf16> to vector<8x8x32xf32>
    %119 = arith.addf %118, %117 : vector<8x8x32xf32>
    %120 = arith.truncf %119 : vector<8x8x32xf32> to vector<8x8x32xbf16>
    %c0_45 = arith.constant 0 : index
    %c0_46 = arith.constant 0 : index
    %c0_47 = arith.constant 0 : index
    %c0_48 = arith.constant 0 : index
    %121 = vector.load %arg15[%c0_45, %c0_46, %c0_47, %c0_48] : memref<1x8x8x32xbf16, #tpu.memory_space<vmem>>, vector<1x8x8x32xbf16>
    %122 = vector.shape_cast %121 : vector<1x8x8x32xbf16> to vector<8x8x32xbf16>
    %123 = vector.shape_cast %120 : vector<8x8x32xbf16> to vector<1x8x8x32xbf16>
    tpu.vector_store %arg15[%c0_45, %c0_46, %c0_47, %c0_48], %123 {strides = array<i32>} : memref<1x8x8x32xbf16, #tpu.memory_space<vmem>>, vector<1x8x8x32xbf16>,
    %124 = vector.shape_cast %20 : vector<8x32xf32> to vector<1x8x32xf32>
    %125 = vector.broadcast %124 : vector<1x8x32xf32> to vector<8x8x32xf32>
    %126 = arith.mulf %74, %125 : vector<8x8x32xf32>
    %cst_49 = arith.constant dense<0.000000e+00> : vector<8x32xf32>
    %127 = vector.multi_reduction <add>, %126, %cst_49 [1] : vector<8x8x32xf32> to vector<8x32xf32>
    %128 = arith.addf %16, %127 : vector<8x32xf32>
    %cst_50 = arith.constant dense<0.000000e+00> : vector<8xf32>
    %129 = vector.multi_reduction <add>, %128, %cst_50 [1] : vector<8x32xf32> to vector<8xf32>
    %130 = vector.shape_cast %129 : vector<8xf32> to vector<8x1xf32>
    %cst_51 = arith.constant 3.200000e+01 : f32
    %131 = vector.broadcast %cst_51 : f32 to vector<8x1xf32>
    %132 = arith.divf %130, %131 : vector<8x1xf32>
    %133 = vector.broadcast %132 : vector<8x1xf32> to vector<8x32xf32>
    %134 = arith.subf %128, %133 : vector<8x32xf32>
    %135 = arith.mulf %134, %134 : vector<8x32xf32>
    %cst_52 = arith.constant dense<0.000000e+00> : vector<8xf32>
    %136 = vector.multi_reduction <add>, %135, %cst_52 [1] : vector<8x32xf32> to vector<8xf32>
    %137 = vector.shape_cast %136 : vector<8xf32> to vector<8x1xf32>
    %cst_53 = arith.constant 3.200000e+01 : f32
    %138 = vector.broadcast %cst_53 : f32 to vector<8x1xf32>
    %139 = arith.divf %137, %138 : vector<8x1xf32>
    %cst_54 = arith.constant 9.99999974E-6 : f32
    %140 = vector.broadcast %cst_54 : f32 to vector<8x1xf32>
    %141 = arith.addf %139, %140 : vector<8x1xf32>
    %142 = math.rsqrt %141 : vector<8x1xf32>
    %143 = vector.broadcast %142 : vector<8x1xf32> to vector<8x32xf32>
    %144 = arith.mulf %134, %143 : vector<8x32xf32>
    %145 = vector.broadcast %5 : vector<1x32xf32> to vector<8x32xf32>
    %146 = arith.mulf %144, %145 : vector<8x32xf32>
    %147 = vector.broadcast %6 : vector<1x32xf32> to vector<8x32xf32>
    %148 = arith.addf %146, %147 : vector<8x32xf32>
    %cst_55 = arith.constant 0.000000e+00 : f32
    %149 = vector.broadcast %cst_55 : f32 to vector<8x32xf32>
    %150 = arith.maximumf %148, %149 : vector<8x32xf32>
    %151 = arith.addf %14, %150 : vector<8x32xf32>
    %c0_56 = arith.constant 0 : index
    %c0_57 = arith.constant 0 : index
    %c0_58 = arith.constant 0 : index
    %152 = vector.load %arg14[%c0_56, %c0_57, %c0_58] : memref<1x8x32xf32, #tpu.memory_space<vmem>>, vector<1x8x32xf32>
    %153 = vector.shape_cast %152 : vector<1x8x32xf32> to vector<8x32xf32>
    %154 = vector.shape_cast %151 : vector<8x32xf32> to vector<1x8x32xf32>
    tpu.vector_store %arg14[%c0_56, %c0_57, %c0_58], %154 {strides = array<i32>} : memref<1x8x32xf32, #tpu.memory_space<vmem>>, vector<1x8x32xf32>,
    %155 = vector.broadcast %9 : vector<1x1xf32> to vector<8x1xf32>
    %156 = arith.mulf %91, %155 : vector<8x1xf32>
    %157 = vector.broadcast %9 : vector<1x1xf32> to vector<8x1xf32>
    %158 = arith.mulf %93, %157 : vector<8x1xf32>
    %159 = arith.mulf %91, %91 : vector<8x1xf32>
    %160 = arith.mulf %93, %93 : vector<8x1xf32>
    %161 = arith.addf %159, %160 : vector<8x1xf32>
    %cst_59 = arith.constant 9.99999974E-5 : f32
    %162 = vector.broadcast %cst_59 : f32 to vector<8x1xf32>
    %163 = arith.addf %161, %162 : vector<8x1xf32>
    %164 = math.sqrt %163 : vector<8x1xf32>
    %165 = vector.broadcast %10 : vector<1x1xf32> to vector<8x1xf32>
    %166 = arith.mulf %164, %165 : vector<8x1xf32>
    %167 = vector.broadcast %4 : vector<1x32xf32> to vector<8x32xf32>
    %168 = arith.mulf %14, %167 : vector<8x32xf32>
    %cst_60 = arith.constant dense<0.000000e+00> : vector<8xf32>
    %169 = vector.multi_reduction <add>, %168, %cst_60 [1] : vector<8x32xf32> to vector<8xf32>
    %170 = vector.shape_cast %169 : vector<8xf32> to vector<8x1xf32>
    %171 = arith.addf %166, %170 : vector<8x1xf32>
    %172 = vector.broadcast %12 : vector<1x1xf32> to vector<8x1xf32>
    %173 = arith.addf %171, %172 : vector<8x1xf32>
    %174 = arith.negf %173 : vector<8x1xf32>
    %175 = math.exp %174 : vector<8x1xf32>
    %cst_61 = arith.constant 1.000000e+00 : f32
    %176 = vector.broadcast %cst_61 : f32 to vector<8x1xf32>
    %177 = arith.addf %176, %175 : vector<8x1xf32>
    %178 = arith.divf %176, %177 : vector<8x1xf32>
    %179 = arith.mulf %156, %178 : vector<8x1xf32>
    %180 = arith.mulf %158, %178 : vector<8x1xf32>
    %181 = tpu.concatenate %179, %180 in 1 : vector<8x1xf32>, vector<8x1xf32> -> vector<8x2xf32>
    %182 = arith.addf %26, %181 : vector<8x2xf32>
    %c0_62 = arith.constant 0 : index
    %c0_63 = arith.constant 0 : index
    %c0_64 = arith.constant 0 : index
    %183 = vector.load %arg16[%c0_62, %c0_63, %c0_64] : memref<1x8x2xf32, #tpu.memory_space<vmem>>, vector<1x8x2xf32>
    %184 = vector.shape_cast %183 : vector<1x8x2xf32> to vector<8x2xf32>
    %185 = vector.shape_cast %182 : vector<8x2xf32> to vector<1x8x2xf32>
    tpu.vector_store %arg16[%c0_62, %c0_63, %c0_64], %185 {strides = array<i32>} : memref<1x8x2xf32, #tpu.memory_space<vmem>>, vector<1x8x2xf32>,
    return
  }
  func.func @transform_0(%arg0: i32, %arg1: i32) -> (i32, i32, i32) {
    %c0_i32 = arith.constant 0 : i32
    %c0_i32_0 = arith.constant 0 : i32
    return %arg0, %arg1, %c0_i32 : i32, i32, i32
  }
  func.func @transform_1(%arg0: i32, %arg1: i32) -> (i32, i32, i32) {
    %c0_i32 = arith.constant 0 : i32
    %c0_i32_0 = arith.constant 0 : i32
    return %arg0, %arg1, %c0_i32 : i32, i32, i32
  }
  func.func @transform_2(%arg0: i32, %arg1: i32) -> (i32, i32, i32) {
    %c0_i32 = arith.constant 0 : i32
    %c0_i32_0 = arith.constant 0 : i32
    return %arg0, %arg1, %c0_i32 : i32, i32, i32
  }
  func.func @transform_3(%arg0: i32, %arg1: i32) -> (i32, i32, i32) {
    %c0_i32 = arith.constant 0 : i32
    %c0_i32_0 = arith.constant 0 : i32
    %c0_i32_1 = arith.constant 0 : i32
    return %arg0, %c0_i32, %c0_i32_0 : i32, i32, i32
  }
  func.func @transform_4(%arg0: i32, %arg1: i32) -> (i32, i32, i32) {
    %c0_i32 = arith.constant 0 : i32
    %c0_i32_0 = arith.constant 0 : i32
    %c0_i32_1 = arith.constant 0 : i32
    return %arg0, %c0_i32, %c0_i32_0 : i32, i32, i32
  }
  func.func @transform_5(%arg0: i32, %arg1: i32) -> (i32, i32, i32, i32) {
    %c0_i32 = arith.constant 0 : i32
    %c0_i32_0 = arith.constant 0 : i32
    %c0_i32_1 = arith.constant 0 : i32
    return %arg0, %arg1, %c0_i32, %c0_i32_0 : i32, i32, i32, i32
  }
  func.func @transform_6(%arg0: i32, %arg1: i32) -> (i32, i32, i32) {
    %c0_i32 = arith.constant 0 : i32
    %c0_i32_0 = arith.constant 0 : i32
    %c0_i32_1 = arith.constant 0 : i32
    return %arg0, %c0_i32, %c0_i32_0 : i32, i32, i32
  }
  func.func @transform_7(%arg0: i32, %arg1: i32) -> (i32, i32, i32) {
    %c0_i32 = arith.constant 0 : i32
    %c0_i32_0 = arith.constant 0 : i32
    return %arg0, %arg1, %c0_i32 : i32, i32, i32
  }
  func.func @transform_8(%arg0: i32, %arg1: i32) -> (i32, i32, i32) {
    %c0_i32 = arith.constant 0 : i32
    %c0_i32_0 = arith.constant 0 : i32
    return %arg0, %arg1, %c0_i32 : i32, i32, i32
  }
  func.func @transform_9(%arg0: i32, %arg1: i32) -> (i32, i32) {
    %c0_i32 = arith.constant 0 : i32
    %c0_i32_0 = arith.constant 0 : i32
    %c0_i32_1 = arith.constant 0 : i32
    return %c0_i32, %c0_i32_0 : i32, i32
  }
  func.func @transform_10(%arg0: i32, %arg1: i32) -> (i32, i32) {
    %c0_i32 = arith.constant 0 : i32
    %c0_i32_0 = arith.constant 0 : i32
    %c0_i32_1 = arith.constant 0 : i32
    return %c0_i32, %c0_i32_0 : i32, i32
  }
  func.func @transform_11(%arg0: i32, %arg1: i32) -> (i32, i32) {
    %c0_i32 = arith.constant 0 : i32
    %c0_i32_0 = arith.constant 0 : i32
    %c0_i32_1 = arith.constant 0 : i32
    return %c0_i32, %c0_i32_0 : i32, i32
  }
  func.func @transform_12(%arg0: i32, %arg1: i32) -> (i32, i32, i32) {
    %c0_i32 = arith.constant 0 : i32
    %c0_i32_0 = arith.constant 0 : i32
    return %arg0, %arg1, %c0_i32 : i32, i32, i32
  }
  func.func @transform_13(%arg0: i32, %arg1: i32) -> (i32, i32, i32, i32) {
    %c0_i32 = arith.constant 0 : i32
    %c0_i32_0 = arith.constant 0 : i32
    %c0_i32_1 = arith.constant 0 : i32
    return %arg0, %arg1, %c0_i32, %c0_i32_0 : i32, i32, i32, i32
  }
  func.func @transform_14(%arg0: i32, %arg1: i32) -> (i32, i32, i32) {
    %c0_i32 = arith.constant 0 : i32
    %c0_i32_0 = arith.constant 0 : i32
    return %arg0, %arg1, %c0_i32 : i32, i32, i32
  }
}

</mosaic_0001>

<llo_original>
// kernel: gegnn_encoder_pallas.3
$region0: #{gegnn_encoder_pallas.3}
  #allocation0 [shape = 'u32[]', space=smem, size = 0x4, offset = 0x4, fixed_abs, tag = 'smem constant byte address 0x4 - core index']
  #allocation1 [shape = 'u32[144,128]{1,0:T(1,128)}', space=vmem, size = 0x12000, scoped, tag = 'internal scratch']
  %s0 = inlined_call_operand.vmem [shape: f32[2,8,32], index: 0, kind: input, shape index: {}]
  %s1 = inlined_call_operand.vmem [shape: f32[2,8,32], index: 1, kind: input, shape index: {}]
  %s2 = inlined_call_operand.vmem [shape: f32[2,8,32], index: 2, kind: input, shape index: {}]
  %s3 = inlined_call_operand.vmem [shape: f32[2,8,32], index: 3, kind: input, shape index: {}]
  %s4 = inlined_call_operand.vmem [shape: f32[2,8,32], index: 4, kind: input, shape index: {}]
  %s5 = inlined_call_operand.vmem [shape: bf16[2,8,8,32], index: 5, kind: input, shape index: {}]
  %s6 = inlined_call_operand.vmem [shape: f32[2,8,2], index: 6, kind: input, shape index: {}, may-alias: {6,7}]
  %s7 = inlined_call_operand.vmem [shape: f32[2,8,2], index: 7, kind: input, shape index: {}, may-alias: {6,7}]
  %s8 = inlined_call_operand.vmem [shape: bf16[2,8,8], index: 8, kind: input, shape index: {}]
  %s9 = inlined_call_operand.vmem [shape: bf16[32,32], index: 9, kind: input, shape index: {}]
  %s10 = inlined_call_operand.vmem [shape: f32[7,32], index: 10, kind: input, shape index: {}]
  %s11 = inlined_call_operand.vmem [shape: f32[4,1], index: 11, kind: input, shape index: {}]
  %s12 = inlined_call_operand.hbm [shape: f32[2,8,32], index: 12, kind: output, shape index: {0}]
  %s13 = inlined_call_operand.hbm [shape: bf16[2,8,8,32], index: 13, kind: output, shape index: {1}]
  %s14 = inlined_call_operand.hbm [shape: f32[2,8,2], index: 14, kind: output, shape index: {2}]
  %15 = xla_tuple %s12, %s13, %s14
  %s16 = sld [smem:[#allocation0]]
  $region97: #{gegnn_encoder_pallas.3} parent=0
    _
  %s18 = ssub.s32 1, %s16
  %s19 = scalar_select 0, %s18, %s16
  $region1: #{gegnn_encoder_pallas.3} parent=0
    #allocation2 [shape = 'u8[8192]{0}', space=vmem, size = 0x2000, scoped, tag = 'output window, operand 0']
    #allocation3 [shape = 's32[2]{0}', space=sflag, size = 0x8, scoped, tag = 'scoped memory for gegnn_encoder_pallas.3']
    #allocation4 [shape = 'u8[32768]{0}', space=vmem, size = 0x8000, scoped, tag = 'output window, operand 1']
    #allocation5 [shape = 's32[2]{0}', space=sflag, size = 0x8, scoped, tag = 'scoped memory for gegnn_encoder_pallas.3']
    #allocation6 [shape = 'u8[8192]{0}', space=vmem, size = 0x2000, scoped, tag = 'output window, operand 2']
    %20 = vsyncpa [#allocation3], 0
    %s21 = scalar_lea.sflag [#allocation3], 1
    %22 = vsyncpa %s21, 0
    %23 = vsyncpa [#allocation5], 0
    %s24 = scalar_lea.sflag [#allocation5], 1
    %25 = vsyncpa %s24, 0
    loop: start=0, step=1, limit=4
    $region2: #{gegnn_encoder_pallas.3} parent=1 // loop_pre_header
      _
    $region3: #{gegnn_encoder_pallas.3} parent=1 // loop_header
      %s27 = sphi 0, %s31
      %p28 = scmp.ge.s32.totalorder %s27, 4
      %s34 = sphi 0, %s46
      %s35 = sphi 0, %s42
      %s36 = sphi 0, %s34
      %s37 = sphi 0, %s35
      %s38 = sphi 0, %s36
      %s39 = sphi 0, %s37
      %s51 = sphi 0, %s53
      %s54 = sphi 0, %s51
      %s55 = sphi 0, %s54
      %s71 = sphi 0, %s55
      %s79 = sphi 0, %s81
      %s82 = sphi 0, %s79
      %s83 = sphi 0, %s82
      %s99 = sphi 0, %s83
      %s107 = sphi 0, %s109
      %s110 = sphi 0, %s107
      %s111 = sphi 0, %s110
      %s127 = sphi 0, %s111
      %s133 = sphi 0, %s135
      %s136 = sphi 0, %s133
      %s137 = sphi 0, %s136
      %s153 = sphi 0, %s137
      %s159 = sphi 0, %s161
      %s162 = sphi 0, %s159
      %s163 = sphi 0, %s162
      %s179 = sphi 0, %s163
      %s187 = sphi 0, %s189
      %s190 = sphi 0, %s187
      %s191 = sphi 0, %s190
      %s207 = sphi 0, %s191
      %s213 = sphi 0, %s215
      %s216 = sphi 0, %s213
      %s217 = sphi 0, %s216
      %s233 = sphi 0, %s217
      %s241 = sphi 0, %s243
      %s244 = sphi 0, %s241
      %s245 = sphi 0, %s244
      %s261 = sphi 0, %s245
      %s269 = sphi 0, %s271
      %s272 = sphi 0, %s269
      %s273 = sphi 0, %s272
      %s289 = sphi 0, %s273
      %s293 = sphi 0, %s293
      %s295 = sphi 0, %s293
      %s296 = sphi 0, %s295
      %s310 = sphi 0, %s296
      %s314 = sphi 0, %s314
      %s316 = sphi 0, %s314
      %s317 = sphi 0, %s316
      %s331 = sphi 0, %s317
      %s335 = sphi 0, %s335
      %s337 = sphi 0, %s335
      %s338 = sphi 0, %s337
      %s352 = sphi 0, %s338
      %s360 = sphi 0, %s362
      %s363 = sphi 0, %s360
      %s364 = sphi 0, %s363
      %s380 = sphi 0, %s364
      %s388 = sphi 0, %s390
      %s391 = sphi 0, %s388
      %s392 = sphi 0, %s391
      %s408 = sphi 0, %s392
      %s416 = sphi 0, %s418
      %s419 = sphi 0, %s416
      %s420 = sphi 0, %s419
      %s436 = sphi 0, %s420
    $region4: #{gegnn_encoder_pallas.3} parent=1 // loop_header_branch
      %30 = sbr.rel (%p28) target = $region8
    $region5: #{gegnn_encoder_pallas.3} parent=1 // loop_body
      %s32 = ssub.s32 %s27, 1
      %s33 = ssub.s32 %s27, 2
      %s40 = sadd.s32 1, %s35
      %p41 = scmp.ge.s32.totalorder %s40, 1
      %s42 = scalar_select %p41, 0, %s40
      %s43 = sadd.s32 1, %s34
      %s44 = scalar_select %p41, %s43, %s34
      %p45 = scmp.ge.s32.totalorder %s44, 2
      %s46 = scalar_select %p45, 0, %s44
      %s47 = ssub.s32 %s34, %s46
      %s48 = ssub.s32 %s35, %s42
      %s49 = sor.u32 %s47, %s48
      %p50 = scmp.eq.s32.totalorder %s49, 0
      %s52 = sadd.s32 %s51, 1
      %s53 = scalar_select %p50, %s51, %s52
      %p56 = pneg %p50
      %p57 = scmp.eq.s32.totalorder %s27, 1
      %p58 = por %p56, %p57
      %p59 = scmp.ne.s32.totalorder %s51, %s54
      %p60 = scmp.eq.s32.totalorder %s27, 0
      %p61 = por %p59, %p60
      %p62 = scmp.ne.s32.totalorder %s51, %s54
      %p63 = scmp.eq.s32.totalorder %s32, 1
      %p64 = por %p62, %p63
      %p65 = scmp.ne.s32.totalorder %s54, %s55
      %p66 = scmp.eq.s32.totalorder %s32, 0
      %p67 = por %p65, %p66
      %p68 = scmp.ne.s32.totalorder %s54, %s55
      %p69 = scmp.eq.s32.totalorder %s33, 1
      %p70 = por %p68, %p69
      %p72 = scmp.ne.s32.totalorder %s55, %s71
      %p73 = scmp.eq.s32.totalorder %s33, 0
      %p74 = por %p72, %p73
      %s75 = ssub.s32 %s34, %s46
      %s76 = ssub.s32 %s35, %s42
      %s77 = sor.u32 %s75, %s76
      %p78 = scmp.eq.s32.totalorder %s77, 0
      %s80 = sadd.s32 %s79, 1
      %s81 = scalar_select %p78, %s79, %s80
      %p84 = pneg %p78
      %p85 = scmp.eq.s32.totalorder %s27, 1
      %p86 = por %p84, %p85
      %p87 = scmp.ne.s32.totalorder %s79, %s82
      %p88 = scmp.eq.s32.totalorder %s27, 0
      %p89 = por %p87, %p88
      %p90 = scmp.ne.s32.totalorder %s79, %s82
      %p91 = scmp.eq.s32.totalorder %s32, 1
      %p92 = por %p90, %p91
      %p93 = scmp.ne.s32.totalorder %s82, %s83
      %p94 = scmp.eq.s32.totalorder %s32, 0
      %p95 = por %p93, %p94
      %p96 = scmp.ne.s32.totalorder %s82, %s83
      %p97 = scmp.eq.s32.totalorder %s33, 1
      %p98 = por %p96, %p97
      %p100 = scmp.ne.s32.totalorder %s83, %s99
      %p101 = scmp.eq.s32.totalorder %s33, 0
      %p102 = por %p100, %p101
      %s103 = ssub.s32 %s34, %s46
      %s104 = ssub.s32 %s35, %s42
      %s105 = sor.u32 %s103, %s104
      %p106 = scmp.eq.s32.totalorder %s105, 0
      %s108 = sadd.s32 %s107, 1
      %s109 = scalar_select %p106, %s107, %s108
      %p112 = pneg %p106
      %p113 = scmp.eq.s32.totalorder %s27, 1
      %p114 = por %p112, %p113
      %p115 = scmp.ne.s32.totalorder %s107, %s110
      %p116 = scmp.eq.s32.totalorder %s27, 0
      %p117 = por %p115, %p116
      %p118 = scmp.ne.s32.totalorder %s107, %s110
      %p119 = scmp.eq.s32.totalorder %s32, 1
      %p120 = por %p118, %p119
      %p121 = scmp.ne.s32.totalorder %s110, %s111
      %p122 = scmp.eq.s32.totalorder %s32, 0
      %p123 = por %p121, %p122
      %p124 = scmp.ne.s32.totalorder %s110, %s111
      %p125 = scmp.eq.s32.totalorder %s33, 1
      %p126 = por %p124, %p125
      %p128 = scmp.ne.s32.totalorder %s111, %s127
      %p129 = scmp.eq.s32.totalorder %s33, 0
      %p130 = por %p128, %p129
      %s131 = ssub.s32 %s34, %s46
      %p132 = scmp.eq.s32.totalorder %s131, 0
      %s134 = sadd.s32 %s133, 1
      %s135 = scalar_select %p132, %s133, %s134
      %p138 = pneg %p132
      %p139 = scmp.eq.s32.totalorder %s27, 1
      %p140 = por %p138, %p139
      %p141 = scmp.ne.s32.totalorder %s133, %s136
      %p142 = scmp.eq.s32.totalorder %s27, 0
      %p143 = por %p141, %p142
      %p144 = scmp.ne.s32.totalorder %s133, %s136
      %p145 = scmp.eq.s32.totalorder %s32, 1
      %p146 = por %p144, %p145
      %p147 = scmp.ne.s32.totalorder %s136, %s137
      %p148 = scmp.eq.s32.totalorder %s32, 0
      %p149 = por %p147, %p148
      %p150 = scmp.ne.s32.totalorder %s136, %s137
      %p151 = scmp.eq.s32.totalorder %s33, 1
      %p152 = por %p150, %p151
      %p154 = scmp.ne.s32.totalorder %s137, %s153
      %p155 = scmp.eq.s32.totalorder %s33, 0
      %p156 = por %p154, %p155
      %s157 = ssub.s32 %s34, %s46
      %p158 = scmp.eq.s32.totalorder %s157, 0
      %s160 = sadd.s32 %s159, 1
      %s161 = scalar_select %p158, %s159, %s160
      %p164 = pneg %p158
      %p165 = scmp.eq.s32.totalorder %s27, 1
      %p166 = por %p164, %p165
      %p167 = scmp.ne.s32.totalorder %s159, %s162
      %p168 = scmp.eq.s32.totalorder %s27, 0
      %p169 = por %p167, %p168
      %p170 = scmp.ne.s32.totalorder %s159, %s162
      %p171 = scmp.eq.s32.totalorder %s32, 1
      %p172 = por %p170, %p171
      %p173 = scmp.ne.s32.totalorder %s162, %s163
      %p174 = scmp.eq.s32.totalorder %s32, 0
      %p175 = por %p173, %p174
      %p176 = scmp.ne.s32.totalorder %s162, %s163
      %p177 = scmp.eq.s32.totalorder %s33, 1
      %p178 = por %p176, %p177
      %p180 = scmp.ne.s32.totalorder %s163, %s179
      %p181 = scmp.eq.s32.totalorder %s33, 0
      %p182 = por %p180, %p181
      %s183 = ssub.s32 %s34, %s46
      %s184 = ssub.s32 %s35, %s42
      %s185 = sor.u32 %s183, %s184
      %p186 = scmp.eq.s32.totalorder %s185, 0
      %s188 = sadd.s32 %s187, 1
      %s189 = scalar_select %p186, %s187, %s188
      %p192 = pneg %p186
      %p193 = scmp.eq.s32.totalorder %s27, 1
      %p194 = por %p192, %p193
      %p195 = scmp.ne.s32.totalorder %s187, %s190
      %p196 = scmp.eq.s32.totalorder %s27, 0
      %p197 = por %p195, %p196
      %p198 = scmp.ne.s32.totalorder %s187, %s190
      %p199 = scmp.eq.s32.totalorder %s32, 1
      %p200 = por %p198, %p199
      %p201 = scmp.ne.s32.totalorder %s190, %s191
      %p202 = scmp.eq.s32.totalorder %s32, 0
      %p203 = por %p201, %p202
      %p204 = scmp.ne.s32.totalorder %s190, %s191
      %p205 = scmp.eq.s32.totalorder %s33, 1
      %p206 = por %p204, %p205
      %p208 = scmp.ne.s32.totalorder %s191, %s207
      %p209 = scmp.eq.s32.totalorder %s33, 0
      %p210 = por %p208, %p209
      %s211 = ssub.s32 %s34, %s46
      %p212 = scmp.eq.s32.totalorder %s211, 0
      %s214 = sadd.s32 %s213, 1
      %s215 = scalar_select %p212, %s213, %s214
      %p218 = pneg %p212
      %p219 = scmp.eq.s32.totalorder %s27, 1
      %p220 = por %p218, %p219
      %p221 = scmp.ne.s32.totalorder %s213, %s216
      %p222 = scmp.eq.s32.totalorder %s27, 0
      %p223 = por %p221, %p222
      %p224 = scmp.ne.s32.totalorder %s213, %s216
      %p225 = scmp.eq.s32.totalorder %s32, 1
      %p226 = por %p224, %p225
      %p227 = scmp.ne.s32.totalorder %s216, %s217
      %p228 = scmp.eq.s32.totalorder %s32, 0
      %p229 = por %p227, %p228
      %p230 = scmp.ne.s32.totalorder %s216, %s217
      %p231 = scmp.eq.s32.totalorder %s33, 1
      %p232 = por %p230, %p231
      %p234 = scmp.ne.s32.totalorder %s217, %s233
      %p235 = scmp.eq.s32.totalorder %s33, 0
      %p236 = por %p234, %p235
      %s237 = ssub.s32 %s34, %s46
      %s238 = ssub.s32 %s35, %s42
      %s239 = sor.u32 %s237, %s238
      %p240 = scmp.eq.s32.totalorder %s239, 0
      %s242 = sadd.s32 %s241, 1
      %s243 = scalar_select %p240, %s241, %s242
      %p246 = pneg %p240
      %p247 = scmp.eq.s32.totalorder %s27, 1
      %p248 = por %p246, %p247
      %p249 = scmp.ne.s32.totalorder %s241, %s244
      %p250 = scmp.eq.s32.totalorder %s27, 0
      %p251 = por %p249, %p250
      %p252 = scmp.ne.s32.totalorder %s241, %s244
      %p253 = scmp.eq.s32.totalorder %s32, 1
      %p254 = por %p252, %p253
      %p255 = scmp.ne.s32.totalorder %s244, %s245
      %p256 = scmp.eq.s32.totalorder %s32, 0
      %p257 = por %p255, %p256
      %p258 = scmp.ne.s32.totalorder %s244, %s245
      %p259 = scmp.eq.s32.totalorder %s33, 1
      %p260 = por %p258, %p259
      %p262 = scmp.ne.s32.totalorder %s245, %s261
      %p263 = scmp.eq.s32.totalorder %s33, 0
      %p264 = por %p262, %p263
      %s265 = ssub.s32 %s34, %s46
      %s266 = ssub.s32 %s35, %s42
      %s267 = sor.u32 %s265, %s266
      %p268 = scmp.eq.s32.totalorder %s267, 0
      %s270 = sadd.s32 %s269, 1
      %s271 = scalar_select %p268, %s269, %s270
      %p274 = pneg %p268
      %p275 = scmp.eq.s32.totalorder %s27, 1
      %p276 = por %p274, %p275
      %p277 = scmp.ne.s32.totalorder %s269, %s272
      %p278 = scmp.eq.s32.totalorder %s27, 0
      %p279 = por %p277, %p278
      %p280 = scmp.ne.s32.totalorder %s269, %s272
      %p281 = scmp.eq.s32.totalorder %s32, 1
      %p282 = por %p280, %p281
      %p283 = scmp.ne.s32.totalorder %s272, %s273
      %p284 = scmp.eq.s32.totalorder %s32, 0
      %p285 = por %p283, %p284
      %p286 = scmp.ne.s32.totalorder %s272, %s273
      %p287 = scmp.eq.s32.totalorder %s33, 1
      %p288 = por %p286, %p287
      %p290 = scmp.ne.s32.totalorder %s273, %s289
      %p291 = scmp.eq.s32.totalorder %s33, 0
      %p292 = por %p290, %p291
      %s294 = sadd.s32 %s293, 1
      %p297 = scmp.eq.s32.totalorder %s27, 1
      %p298 = scmp.ne.s32.totalorder %s293, %s295
      %p299 = scmp.eq.s32.totalorder %s27, 0
      %p300 = por %p298, %p299
      %p301 = scmp.ne.s32.totalorder %s293, %s295
      %p302 = scmp.eq.s32.totalorder %s32, 1
      %p303 = por %p301, %p302
      %p304 = scmp.ne.s32.totalorder %s295, %s296
      %p305 = scmp.eq.s32.totalorder %s32, 0
      %p306 = por %p304, %p305
      %p307 = scmp.ne.s32.totalorder %s295, %s296
      %p308 = scmp.eq.s32.totalorder %s33, 1
      %p309 = por %p307, %p308
      %p311 = scmp.ne.s32.totalorder %s296, %s310
      %p312 = scmp.eq.s32.totalorder %s33, 0
      %p313 = por %p311, %p312
      %s315 = sadd.s32 %s314, 1
      %p318 = scmp.eq.s32.totalorder %s27, 1
      %p319 = scmp.ne.s32.totalorder %s314, %s316
      %p320 = scmp.eq.s32.totalorder %s27, 0
      %p321 = por %p319, %p320
      %p322 = scmp.ne.s32.totalorder %s314, %s316
      %p323 = scmp.eq.s32.totalorder %s32, 1
      %p324 = por %p322, %p323
      %p325 = scmp.ne.s32.totalorder %s316, %s317
      %p326 = scmp.eq.s32.totalorder %s32, 0
      %p327 = por %p325, %p326
      %p328 = scmp.ne.s32.totalorder %s316, %s317
      %p329 = scmp.eq.s32.totalorder %s33, 1
      %p330 = por %p328, %p329
      %p332 = scmp.ne.s32.totalorder %s317, %s331
      %p333 = scmp.eq.s32.totalorder %s33, 0
      %p334 = por %p332, %p333
      %s336 = sadd.s32 %s335, 1
      %p339 = scmp.eq.s32.totalorder %s27, 1
      %p340 = scmp.ne.s32.totalorder %s335, %s337
      %p341 = scmp.eq.s32.totalorder %s27, 0
      %p342 = por %p340, %p341
      %p343 = scmp.ne.s32.totalorder %s335, %s337
      %p344 = scmp.eq.s32.totalorder %s32, 1
      %p345 = por %p343, %p344
      %p346 = scmp.ne.s32.totalorder %s337, %s338
      %p347 = scmp.eq.s32.totalorder %s32, 0
      %p348 = por %p346, %p347
      %p349 = scmp.ne.s32.totalorder %s337, %s338
      %p350 = scmp.eq.s32.totalorder %s33, 1
      %p351 = por %p349, %p350
      %p353 = scmp.ne.s32.totalorder %s338, %s352
      %p354 = scmp.eq.s32.totalorder %s33, 0
      %p355 = por %p353, %p354
      %s356 = ssub.s32 %s34, %s46
      %s357 = ssub.s32 %s35, %s42
      %s358 = sor.u32 %s356, %s357
      %p359 = scmp.eq.s32.totalorder %s358, 0
      %s361 = sadd.s32 %s360, 1
      %s362 = scalar_select %p359, %s360, %s361
      %p365 = pneg %p359
      %p366 = scmp.eq.s32.totalorder %s27, 1
      %p367 = por %p365, %p366
      %p368 = scmp.ne.s32.totalorder %s360, %s363
      %p369 = scmp.eq.s32.totalorder %s27, 0
      %p370 = por %p368, %p369
      %p371 = scmp.ne.s32.totalorder %s360, %s363
      %p372 = scmp.eq.s32.totalorder %s32, 1
      %p373 = por %p371, %p372
      %p374 = scmp.ne.s32.totalorder %s363, %s364
      %p375 = scmp.eq.s32.totalorder %s32, 0
      %p376 = por %p374, %p375
      %p377 = scmp.ne.s32.totalorder %s363, %s364
      %p378 = scmp.eq.s32.totalorder %s33, 1
      %p379 = por %p377, %p378
      %p381 = scmp.ne.s32.totalorder %s364, %s380
      %p382 = scmp.eq.s32.totalorder %s33, 0
      %p383 = por %p381, %p382
      %s384 = ssub.s32 %s34, %s46
      %s385 = ssub.s32 %s35, %s42
      %s386 = sor.u32 %s384, %s385
      %p387 = scmp.eq.s32.totalorder %s386, 0
      %s389 = sadd.s32 %s388, 1
      %s390 = scalar_select %p387, %s388, %s389
      %p393 = pneg %p387
      %p394 = scmp.eq.s32.totalorder %s27, 1
      %p395 = por %p393, %p394
      %p396 = scmp.ne.s32.totalorder %s388, %s391
      %p397 = scmp.eq.s32.totalorder %s27, 0
      %p398 = por %p396, %p397
      %p399 = scmp.ne.s32.totalorder %s388, %s391
      %p400 = scmp.eq.s32.totalorder %s32, 1
      %p401 = por %p399, %p400
      %p402 = scmp.ne.s32.totalorder %s391, %s392
      %p403 = scmp.eq.s32.totalorder %s32, 0
      %p404 = por %p402, %p403
      %p405 = scmp.ne.s32.totalorder %s391, %s392
      %p406 = scmp.eq.s32.totalorder %s33, 1
      %p407 = por %p405, %p406
      %p409 = scmp.ne.s32.totalorder %s392, %s408
      %p410 = scmp.eq.s32.totalorder %s33, 0
      %p411 = por %p409, %p410
      %s412 = ssub.s32 %s34, %s46
      %s413 = ssub.s32 %s35, %s42
      %s414 = sor.u32 %s412, %s413
      %p415 = scmp.eq.s32.totalorder %s414, 0
      %s417 = sadd.s32 %s416, 1
      %s418 = scalar_select %p415, %s416, %s417
      %p421 = pneg %p415
      %p422 = scmp.eq.s32.totalorder %s27, 1
      %p423 = por %p421, %p422
      %p424 = scmp.ne.s32.totalorder %s416, %s419
      %p425 = scmp.eq.s32.totalorder %s27, 0
      %p426 = por %p424, %p425
      %p427 = scmp.ne.s32.totalorder %s416, %s419
      %p428 = scmp.eq.s32.totalorder %s32, 1
      %p429 = por %p427, %p428
      %p430 = scmp.ne.s32.totalorder %s419, %s420
      %p431 = scmp.eq.s32.totalorder %s32, 0
      %p432 = por %p430, %p431
      %p433 = scmp.ne.s32.totalorder %s419, %s420
      %p434 = scmp.eq.s32.totalorder %s33, 1
      %p435 = por %p433, %p434
      %p437 = scmp.ne.s32.totalorder %s420, %s436
      %p438 = scmp.eq.s32.totalorder %s33, 0
      %p439 = por %p437, %p438
      %p440 = scmp.le.s32.totalorder 1, %s27
      %p441 = scmp.lt.s32.totalorder %s27, 3
      %p442 = pnand %p440, %p441
      %p443 = pneg %p442
      // Predicated region
      $region9: #{gegnn_encoder_pallas.3} parent=5 // pred_check
        _
      $region10: #{gegnn_encoder_pallas.3} parent=5 // pred_check_branch
        %445 = sbr.rel (%p442) target = $region12
      $region11: #{gegnn_encoder_pallas.3} parent=5 // pred_region
        %s446 = ssub.s32 %s27, 1
        // Predicated region
        $region13: #{gegnn_encoder_pallas.3} parent=11 // pred_check
          %p447 = pneg %p306
        $region14: #{gegnn_encoder_pallas.3} parent=11 // pred_check_branch
          %449 = sbr.rel (%p447) target = $region16
        $region15: #{gegnn_encoder_pallas.3} parent=11 // pred_region
          _
        $region16: #{gegnn_encoder_pallas.3} parent=11 // pred_fallthru
          _
        // Predicated region
        $region17: #{gegnn_encoder_pallas.3} parent=11 // pred_check
          %p450 = pneg %p327
        $region18: #{gegnn_encoder_pallas.3} parent=11 // pred_check_branch
          %452 = sbr.rel (%p450) target = $region20
        $region19: #{gegnn_encoder_pallas.3} parent=11 // pred_region
          _
        $region20: #{gegnn_encoder_pallas.3} parent=11 // pred_fallthru
          _
        // Predicated region
        $region21: #{gegnn_encoder_pallas.3} parent=11 // pred_check
          %p453 = pneg %p348
        $region22: #{gegnn_encoder_pallas.3} parent=11 // pred_check_branch
          %455 = sbr.rel (%p453) target = $region24
        $region23: #{gegnn_encoder_pallas.3} parent=11 // pred_region
          _
        $region24: #{gegnn_encoder_pallas.3} parent=11 // pred_fallthru
          _
      $region12: #{gegnn_encoder_pallas.3} parent=5 // pred_fallthru
        _
      %p456 = scmp.lt.s32.totalorder %s27, 2
      // Predicated region
      $region25: #{gegnn_encoder_pallas.3} parent=5 // pred_check
        %p457 = pneg %p456
      $region26: #{gegnn_encoder_pallas.3} parent=5 // pred_check_branch
        %459 = sbr.rel (%p457) target = $region28
      $region27: #{gegnn_encoder_pallas.3} parent=5 // pred_region
        // Predicated region
        $region29: #{gegnn_encoder_pallas.3} parent=27 // pred_check
          %p460 = pneg %p61
        $region30: #{gegnn_encoder_pallas.3} parent=27 // pred_check_branch
          %462 = sbr.rel (%p460) target = $region32
        $region31: #{gegnn_encoder_pallas.3} parent=27 // pred_region
          %p463 = scmp.lt.s32.totalorder %s34, 1
          %s464 = scalar_select %p463, %s34, 1
          %p465 = scmp.lt.s32.totalorder %s35, 0
          %s466 = scalar_select %p465, %s35, 0
          %s467 = sadd.s32 %s466, %s464
          %s468 = smul.addr %s467, 8
          %s469 = scalar_lea.vmem %s0, %s468
        $region32: #{gegnn_encoder_pallas.3} parent=27 // pred_fallthru
          _
        // Predicated region
        $region33: #{gegnn_encoder_pallas.3} parent=27 // pred_check
          %p470 = pneg %p89
        $region34: #{gegnn_encoder_pallas.3} parent=27 // pred_check_branch
          %472 = sbr.rel (%p470) target = $region36
        $region35: #{gegnn_encoder_pallas.3} parent=27 // pred_region
          %p473 = scmp.lt.s32.totalorder %s34, 1
          %s474 = scalar_select %p473, %s34, 1
          %p475 = scmp.lt.s32.totalorder %s35, 0
          %s476 = scalar_select %p475, %s35, 0
          %s477 = sadd.s32 %s476, %s474
          %s478 = smul.addr %s477, 8
          %s479 = scalar_lea.vmem %s1, %s478
        $region36: #{gegnn_encoder_pallas.3} parent=27 // pred_fallthru
          _
        // Predicated region
        $region37: #{gegnn_encoder_pallas.3} parent=27 // pred_check
          %p480 = pneg %p117
        $region38: #{gegnn_encoder_pallas.3} parent=27 // pred_check_branch
          %482 = sbr.rel (%p480) target = $region40
        $region39: #{gegnn_encoder_pallas.3} parent=27 // pred_region
          %p483 = scmp.lt.s32.totalorder %s34, 1
          %s484 = scalar_select %p483, %s34, 1
          %p485 = scmp.lt.s32.totalorder %s35, 0
          %s486 = scalar_select %p485, %s35, 0
          %s487 = sadd.s32 %s486, %s484
          %s488 = smul.addr %s487, 8
          %s489 = scalar_lea.vmem %s2, %s488
        $region40: #{gegnn_encoder_pallas.3} parent=27 // pred_fallthru
          _
        // Predicated region
        $region41: #{gegnn_encoder_pallas.3} parent=27 // pred_check
          %p490 = pneg %p143
        $region42: #{gegnn_encoder_pallas.3} parent=27 // pred_check_branch
          %492 = sbr.rel (%p490) target = $region44
        $region43: #{gegnn_encoder_pallas.3} parent=27 // pred_region
          %p493 = scmp.lt.s32.totalorder %s34, 1
          %s494 = scalar_select %p493, %s34, 1
          %s495 = smul.addr %s494, 8
          %s496 = scalar_lea.vmem %s3, %s495
        $region44: #{gegnn_encoder_pallas.3} parent=27 // pred_fallthru
          _
        // Predicated region
        $region45: #{gegnn_encoder_pallas.3} parent=27 // pred_check
          %p497 = pneg %p169
        $region46: #{gegnn_encoder_pallas.3} parent=27 // pred_check_branch
          %499 = sbr.rel (%p497) target = $region48
        $region47: #{gegnn_encoder_pallas.3} parent=27 // pred_region
          %p500 = scmp.lt.s32.totalorder %s34, 1
          %s501 = scalar_select %p500, %s34, 1
          %s502 = smul.addr %s501, 8
          %s503 = scalar_lea.vmem %s4, %s502
        $region48: #{gegnn_encoder_pallas.3} parent=27 // pred_fallthru
          _
        // Predicated region
        $region49: #{gegnn_encoder_pallas.3} parent=27 // pred_check
          %p504 = pneg %p197
        $region50: #{gegnn_encoder_pallas.3} parent=27 // pred_check_branch
          %506 = sbr.rel (%p504) target = $region52
        $region51: #{gegnn_encoder_pallas.3} parent=27 // pred_region
          %s507 = smul.u32 8, %s35
          %p508 = scmp.lt.s32.totalorder %s34, 1
          %s509 = scalar_select %p508, %s34, 1
          %p510 = scmp.lt.s32.totalorder %s507, 7
          %s511 = scalar_select %p510, %s507, 7
          %s512 = smul.addr %s509, 8
          %s513 = sadd.s32 %s511, %s512
          %s514 = smul.addr %s513, 4
          %s515 = scalar_lea.vmem %s5, %s514
          %s516 = smul.u32 8, %s35
        $region52: #{gegnn_encoder_pallas.3} parent=27 // pred_fallthru
          _
        // Predicated region
        $region53: #{gegnn_encoder_pallas.3} parent=27 // pred_check
          %p517 = pneg %p223
        $region54: #{gegnn_encoder_pallas.3} parent=27 // pred_check_branch
          %519 = sbr.rel (%p517) target = $region56
        $region55: #{gegnn_encoder_pallas.3} parent=27 // pred_region
          %p520 = scmp.lt.s32.totalorder %s34, 1
          %s521 = scalar_select %p520, %s34, 1
          %s522 = smul.addr %s521, 8
          %s523 = scalar_lea.vmem %s6, %s522
        $region56: #{gegnn_encoder_pallas.3} parent=27 // pred_fallthru
          _
        // Predicated region
        $region57: #{gegnn_encoder_pallas.3} parent=27 // pred_check
          %p524 = pneg %p251
        $region58: #{gegnn_encoder_pallas.3} parent=27 // pred_check_branch
          %526 = sbr.rel (%p524) target = $region60
        $region59: #{gegnn_encoder_pallas.3} parent=27 // pred_region
          %p527 = scmp.lt.s32.totalorder %s34, 1
          %s528 = scalar_select %p527, %s34, 1
          %p529 = scmp.lt.s32.totalorder %s35, 0
          %s530 = scalar_select %p529, %s35, 0
          %s531 = sadd.s32 %s530, %s528
          %s532 = smul.addr %s531, 8
          %s533 = scalar_lea.vmem %s7, %s532
        $region60: #{gegnn_encoder_pallas.3} parent=27 // pred_fallthru
          _
        // Predicated region
        $region61: #{gegnn_encoder_pallas.3} parent=27 // pred_check
          %p534 = pneg %p279
        $region62: #{gegnn_encoder_pallas.3} parent=27 // pred_check_branch
          %536 = sbr.rel (%p534) target = $region64
        $region63: #{gegnn_encoder_pallas.3} parent=27 // pred_region
          %p537 = scmp.lt.s32.totalorder %s34, 1
          %s538 = scalar_select %p537, %s34, 1
          %p539 = scmp.lt.s32.totalorder %s35, 0
          %s540 = scalar_select %p539, %s35, 0
          %s541 = sadd.s32 %s540, %s538
          %s542 = smul.addr %s541, 4
          %s543 = scalar_lea.vmem %s8, %s542
        $region64: #{gegnn_encoder_pallas.3} parent=27 // pred_fallthru
          _
      $region28: #{gegnn_encoder_pallas.3} parent=5 // pred_fallthru
        _
      %p544 = scmp.le.s32.totalorder 1, %s27
      %p545 = scmp.lt.s32.totalorder %s27, 3
      %p546 = pnand %p544, %p545
      %p547 = pneg %p546
      // Predicated region
      $region65: #{gegnn_encoder_pallas.3} parent=5 // pred_check
        _
      $region66: #{gegnn_encoder_pallas.3} parent=5 // pred_check_branch
        %549 = sbr.rel (%p546) target = $region68
      $region67: #{gegnn_encoder_pallas.3} parent=5 // pred_region
        %s550 = ssub.s32 %s27, 1
        %p551 = scmp.lt.s32.totalorder %s36, 1
        %s552 = scalar_select %p551, %s36, 1
        %p553 = scmp.lt.s32.totalorder %s37, 0
        %s554 = scalar_select %p553, %s37, 0
        %s555 = sadd.s32 %s554, %s552
        %s556 = smul.addr %s555, 8
        %s557 = scalar_lea.vmem %s0, %s556
        %p558 = pneg %p67
        %p559 = pneg %p64
        %p560 = scmp.lt.s32.totalorder %s36, 1
        %s561 = scalar_select %p560, %s36, 1
        %p562 = scmp.lt.s32.totalorder %s37, 0
        %s563 = scalar_select %p562, %s37, 0
        %s564 = sadd.s32 %s563, %s561
        %s565 = smul.addr %s564, 8
        %s566 = scalar_lea.vmem %s1, %s565
        %p567 = pneg %p95
        %p568 = pneg %p92
        %p569 = scmp.lt.s32.totalorder %s36, 1
        %s570 = scalar_select %p569, %s36, 1
        %p571 = scmp.lt.s32.totalorder %s37, 0
        %s572 = scalar_select %p571, %s37, 0
        %s573 = sadd.s32 %s572, %s570
        %s574 = smul.addr %s573, 8
        %s575 = scalar_lea.vmem %s2, %s574
        %p576 = pneg %p123
        %p577 = pneg %p120
        %p578 = scmp.lt.s32.totalorder %s36, 1
        %s579 = scalar_select %p578, %s36, 1
        %s580 = smul.addr %s579, 8
        %s581 = scalar_lea.vmem %s3, %s580
        %p582 = pneg %p149
        %p583 = pneg %p146
        %p584 = scmp.lt.s32.totalorder %s36, 1
        %s585 = scalar_select %p584, %s36, 1
        %s586 = smul.addr %s585, 8
        %s587 = scalar_lea.vmem %s4, %s586
        %p588 = pneg %p175
        %p589 = pneg %p172
        %s590 = smul.u32 8, %s37
        %p591 = scmp.lt.s32.totalorder %s36, 1
        %s592 = scalar_select %p591, %s36, 1
        %p593 = scmp.lt.s32.totalorder %s590, 7
        %s594 = scalar_select %p593, %s590, 7
        %s595 = smul.addr %s592, 8
        %s596 = sadd.s32 %s594, %s595
        %s597 = smul.addr %s596, 4
        %s598 = scalar_lea.vmem %s5, %s597
        %p599 = pneg %p203
        %p600 = pneg %p200
        %p601 = scmp.lt.s32.totalorder %s36, 1
        %s602 = scalar_select %p601, %s36, 1
        %s603 = smul.addr %s602, 8
        %s604 = scalar_lea.vmem %s6, %s603
        %p605 = pneg %p229
        %p606 = pneg %p226
        %p607 = scmp.lt.s32.totalorder %s36, 1
        %s608 = scalar_select %p607, %s36, 1
        %p609 = scmp.lt.s32.totalorder %s37, 0
        %s610 = scalar_select %p609, %s37, 0
        %s611 = sadd.s32 %s610, %s608
        %s612 = smul.addr %s611, 8
        %s613 = scalar_lea.vmem %s7, %s612
        %p614 = pneg %p257
        %p615 = pneg %p254
        %p616 = scmp.lt.s32.totalorder %s36, 1
        %s617 = scalar_select %p616, %s36, 1
        %p618 = scmp.lt.s32.totalorder %s37, 0
        %s619 = scalar_select %p618, %s37, 0
        %s620 = sadd.s32 %s619, %s617
        %s621 = smul.addr %s620, 4
        %s622 = scalar_lea.vmem %s8, %s621
        %p623 = pneg %p285
        %p624 = pneg %p282
        %p625 = pneg %p306
        %p626 = pneg %p303
        %p627 = pneg %p327
        %p628 = pneg %p324
        %p629 = pneg %p348
        %p630 = pneg %p345
        %p631 = pneg %p376
        %p632 = pneg %p373
        %s633 = sand.u32 %s363, 1
        %s634 = scalar_lea.sflag [#allocation3], %s633
        %s635 = sand.u32 %s363, 1
        %s636 = smul.addr %s635, 8
        %s637 = scalar_lea.vmem [#allocation2], %s636
        %p638 = pneg %p404
        %p639 = pneg %p401
        %s640 = sand.u32 %s32, 1
        %s641 = scalar_lea.sflag [#allocation5], %s640
        %s642 = sand.u32 %s391, 1
        %s643 = smul.addr %s642, 32
        %s644 = scalar_lea.vmem [#allocation4], %s643
        %p645 = pneg %p432
        %p646 = pneg %p429
        %s647 = sand.u32 %s32, 1
        %s648 = scalar_lea.sflag [#allocation5], %s647
        %s649 = sand.u32 %s419, 1
        %s650 = smul.addr %s649, 8
        %s651 = scalar_lea.vmem [#allocation6], %s650
        %p652 = scmp.lt.s32.totalorder %s36, 1
        %s653 = scalar_select %p652, %s36, 1
        %p654 = scmp.lt.s32.totalorder %s37, 0
        %s655 = scalar_select %p654, %s37, 0
        %s656 = sadd.s32 %s655, %s653
        %s657 = smul.addr %s656, 8
        %s658 = scalar_lea.vmem %s0, %s657
        %p659 = scmp.lt.s32.totalorder %s36, 1
        %s660 = scalar_select %p659, %s36, 1
        %p661 = scmp.lt.s32.totalorder %s37, 0
        %s662 = scalar_select %p661, %s37, 0
        %s663 = sadd.s32 %s662, %s660
        %s664 = smul.addr %s663, 8
        %s665 = scalar_lea.vmem %s1, %s664
        %p666 = scmp.lt.s32.totalorder %s36, 1
        %s667 = scalar_select %p666, %s36, 1
        %p668 = scmp.lt.s32.totalorder %s37, 0
        %s669 = scalar_select %p668, %s37, 0
        %s670 = sadd.s32 %s669, %s667
        %s671 = smul.addr %s670, 8
        %s672 = scalar_lea.vmem %s2, %s671
        %p673 = scmp.lt.s32.totalorder %s36, 1
        %s674 = scalar_select %p673, %s36, 1
        %s675 = smul.addr %s674, 8
        %s676 = scalar_lea.vmem %s3, %s675
        %p677 = scmp.lt.s32.totalorder %s36, 1
        %s678 = scalar_select %p677, %s36, 1
        %s679 = smul.addr %s678, 8
        %s680 = scalar_lea.vmem %s4, %s679
        %s681 = smul.u32 8, %s37
        %p682 = scmp.lt.s32.totalorder %s36, 1
        %s683 = scalar_select %p682, %s36, 1
        %p684 = scmp.lt.s32.totalorder %s681, 7
        %s685 = scalar_select %p684, %s681, 7
        %s686 = smul.addr %s683, 8
        %s687 = sadd.s32 %s685, %s686
        %s688 = smul.addr %s687, 4
        %s689 = scalar_lea.vmem %s5, %s688
        %s690 = smul.u32 8, %s37
        %p691 = scmp.lt.s32.totalorder %s36, 1
        %s692 = scalar_select %p691, %s36, 1
        %s693 = smul.addr %s692, 8
        %s694 = scalar_lea.vmem %s6, %s693
        %p695 = scmp.lt.s32.totalorder %s36, 1
        %s696 = scalar_select %p695, %s36, 1
        %p697 = scmp.lt.s32.totalorder %s37, 0
        %s698 = scalar_select %p697, %s37, 0
        %s699 = sadd.s32 %s698, %s696
        %s700 = smul.addr %s699, 8
        %s701 = scalar_lea.vmem %s7, %s700
        %p702 = scmp.lt.s32.totalorder %s36, 1
        %s703 = scalar_select %p702, %s36, 1
        %p704 = scmp.lt.s32.totalorder %s37, 0
        %s705 = scalar_select %p704, %s37, 0
        %s706 = sadd.s32 %s705, %s703
        %s707 = smul.addr %s706, 4
        %s708 = scalar_lea.vmem %s8, %s707
        %s709 = smul.u32 8, %s37
        %v711 = vld [vmem:[%s10] sm:$0x7f]
        %v712 = vld [vmem:[%s11] sm:$0xf]
        %v713 = vld [vmem:[%s658] sm:$0xff]
        %v714 = vld [vmem:[%s665] sm:$0xff]
        %v715 = vld [vmem:[%s672] sm:$0xff]
        %v716 = vld [vmem:[%s676] sm:$0xff]
        %v717 = vld [vmem:[%s680] sm:$0xff]
        %v718 = vld [vmem:[%s694] sm:$0xff]
        %v719 = vld [vmem:[%s701] sm:$0xff]
        %v720 = vld [vmem:[%s689] sm:$0xf]
        %v721 = vld [vmem:[%s689 + $0x4] sm:$0xf]
        %v722 = vld [vmem:[%s689 + $0x8] sm:$0xf]
        %v723 = vld [vmem:[%s689 + $0xc] sm:$0xf]
        %v724 = vld [vmem:[%s689 + $0x10] sm:$0xf]
        %v725 = vld [vmem:[%s689 + $0x14] sm:$0xf]
        %v726 = vld [vmem:[%s689 + $0x18] sm:$0xf]
        %v727 = vld [vmem:[%s689 + $0x1c] sm:$0xf]
        %v728 = vld [vmem:[%s708] sm:$0xf]
        %v729 = vunpack.c.l.bf16 %v728
        %v730 = vld [vmem:[%s9] sm:$0xf]
        %v731 = vld [vmem:[%s9 + $0x4] sm:$0xf]
        %v732 = vld [vmem:[%s9 + $0x8] sm:$0xf]
        %v733 = vld [vmem:[%s9 + $0xc] sm:$0xf]
        %v742 = vunpack.c.l.b16 %v720
        %v743 = vunpack.c.l.b16 %v721
        %v744 = vunpack.c.l.b16 %v722
        %v745 = vunpack.c.l.b16 %v723
        %v746 = vunpack.c.l.b16 %v724
        %v747 = vunpack.c.l.b16 %v725
        %v748 = vunpack.c.l.b16 %v726
        %v749 = vunpack.c.l.b16 %v727
        %v750 = vpack.c.b16 %v743, %v742
        %v751 = vpack.c.b16 %v745, %v744
        %v752 = vpack.c.b16 %v747, %v746
        %v753 = vpack.c.b16 %v749, %v748
        %v758 = vunpack.c.l.b16 %v730
        %v759 = vunpack.c.l.b16 %v731
        %v760 = vunpack.c.l.b16 %v732
        %v761 = vunpack.c.l.b16 %v733
        %v762 = vpack.c.b16 %v759, %v758
        %v763 = vpack.c.b16 %v761, %v760
        %vm766 = vcmask 261120
        %v768 = vsel %vm766, %v750, 0
        %v771 = vsel %vm766, %v751, 0
        %v774 = vsel %vm766, %v752, 0
        %v777 = vsel %vm766, %v753, 0
        %779 = vmatprep.subr.bf16.mxu0 0
        %780 = vmatpush1.bf16.msra.mxu0 %v762
        %781 = vmatprep.subr.bf16.mxu0 0
        %782 = vmatpush1.bf16.msra.mxu0 %v763
        %783 = vmatprep.subr.bf16.mxu0 0
        %784 = vmatpush1.bf16.msra.mxu0 0
        %785 = vmatprep.subr.bf16.mxu0 0
        %786 = vmatpush1.bf16.msra.mxu0 0
        %787 = vmatprep.subr.bf16.mxu0 0
        %788 = vmatpush1.bf16.msra.mxu0 0
        %789 = vmatprep.subr.bf16.mxu0 0
        %790 = vmatpush1.bf16.msra.mxu0 0
        %791 = vmatprep.subr.bf16.mxu0 0
        %792 = vmatpush1.bf16.msra.mxu0 0
        %793 = vmatprep.subr.bf16.mxu0 0
        %794 = vmatpush1.bf16.msra.mxu0 0
        %795 = vmatprep.subr.bf16.mxu0 0
        %796 = vmatpush1.bf16.msra.mxu0 0
        %797 = vmatprep.subr.bf16.mxu0 0
        %798 = vmatpush1.bf16.msra.mxu0 0
        %799 = vmatprep.subr.bf16.mxu0 0
        %800 = vmatpush1.bf16.msra.mxu0 0
        %801 = vmatprep.subr.bf16.mxu0 0
        %802 = vmatpush1.bf16.msra.mxu0 0
        %803 = vmatprep.subr.bf16.mxu0 0
        %804 = vmatpush1.bf16.msra.mxu0 0
        %805 = vmatprep.subr.bf16.mxu0 0
        %806 = vmatpush1.bf16.msra.mxu0 0
        %807 = vmatprep.subr.bf16.mxu0 0
        %808 = vmatpush1.bf16.msra.mxu0 0
        %809 = vmatprep.subr.bf16.mxu0 0
        %810 = vmatpush1.bf16.msra.mxu0 0
        %811 = vmatprep.mubr.bf16.mxu0 0
        %812 = vmatmul.mubr.bf16.gmra.mrb[0].mxu0 %v768
        %v813 = vpop.f32.mrb[0].mxu0
        %v814 = vadd.f32 0.0, %v813
        %v815 = vpop.f32.mrb[0].mxu0
        %v816 = vpop.f32.mrb[0].mxu0
        %v817 = vadd.f32 0.0, %v816
        %v818 = vpop.f32.mrb[0].mxu0
        %819 = vmatprep.mubr.bf16.mxu0 0
        %820 = vmatmul.mubr.bf16.gmra.mrb[0].mxu0 %v771
        %v821 = vpop.f32.mrb[0].mxu0
        %v822 = vadd.f32 0.0, %v821
        %v823 = vpop.f32.mrb[0].mxu0
        %v824 = vpop.f32.mrb[0].mxu0
        %v825 = vadd.f32 0.0, %v824
        %v826 = vpop.f32.mrb[0].mxu0
        %827 = vmatprep.mubr.bf16.mxu0 0
        %828 = vmatmul.mubr.bf16.gmra.mrb[0].mxu0 %v774
        %v829 = vpop.f32.mrb[0].mxu0
        %v830 = vadd.f32 0.0, %v829
        %v831 = vpop.f32.mrb[0].mxu0
        %v832 = vpop.f32.mrb[0].mxu0
        %v833 = vadd.f32 0.0, %v832
        %v834 = vpop.f32.mrb[0].mxu0
        %835 = vmatprep.mubr.bf16.mxu0 0
        %836 = vmatmul.mubr.bf16.gmra.mrb[0].mxu0 %v777
        %v837 = vpop.f32.mrb[0].mxu0
        %v838 = vadd.f32 0.0, %v837
        %v839 = vpop.f32.mrb[0].mxu0
        %v840 = vpop.f32.mrb[0].mxu0
        %v841 = vadd.f32 0.0, %v840
        %v842 = vpop.f32.mrb[0].mxu0
        %843 = vdwg.mxu0
        %v845 = vcombine.high %v719, %v719
        %v847 = vunpack.c.l.s4 1966171168
        %v848 = vunpack.c.0.s8 %v847
        %v849 = vlaneseq
        %v850 = vshrl.u32 %v849, 7
        %v851 = vsub.s32 %v848, %v850
        %v852 = vrot.slane %v719, %v851
        %v854 = vunpack.c.l.s4 1966171168
        %v855 = vunpack.c.0.s8 %v854
        %v856 = vlaneseq
        %v857 = vshrl.u32 %v856, 7
        %v858 = vsub.s32 %v855, %v857
        %v859 = vrot.slane %v845, %v858
        %v860 = vcombine.high %v852, %v852
        %v861 = vcombine.high %v859, %v859
        %v863 = vunpack.c.l.s4 1966171168
        %v864 = vunpack.c.0.s8 %v863
        %v865 = vlaneseq
        %v866 = vshrl.u32 %v865, 7
        %v867 = vsub.s32 %v864, %v866
        %v868 = vrot.slane %v852, %v867
        %v870 = vunpack.c.l.s4 1966171168
        %v871 = vunpack.c.0.s8 %v870
        %v872 = vlaneseq
        %v873 = vshrl.u32 %v872, 7
        %v874 = vsub.s32 %v871, %v873
        %v875 = vrot.slane %v859, %v874
        %v877 = vunpack.c.l.s4 1966171168
        %v878 = vunpack.c.0.s8 %v877
        %v879 = vlaneseq
        %v880 = vshrl.u32 %v879, 7
        %v881 = vsub.s32 %v878, %v880
        %v882 = vrot.slane %v860, %v881
        %v884 = vunpack.c.l.s4 1966171168
        %v885 = vunpack.c.0.s8 %v884
        %v886 = vlaneseq
        %v887 = vshrl.u32 %v886, 7
        %v888 = vsub.s32 %v885, %v887
        %v889 = vrot.slane %v861, %v888
        %v890 = vcombine.high %v868, %v868
        %v891 = vcombine.high %v875, %v875
        %v892 = vcombine.high %v882, %v882
        %v893 = vcombine.high %v889, %v889
        %v894 = vlaneseq
        %v895 = vshrl.u32 %v894, 7
        %v896 = vsub.s32 0, %v895
        %v897 = vrot.slane %v868, %v896
        %v898 = vlaneseq
        %v899 = vshrl.u32 %v898, 7
        %v900 = vsub.s32 0, %v899
        %v901 = vrot.slane %v882, %v900
        %v902 = vlaneseq
        %v903 = vshrl.u32 %v902, 7
        %v904 = vsub.s32 0, %v903
        %v905 = vrot.slane %v890, %v904
        %v906 = vlaneseq
        %v907 = vshrl.u32 %v906, 7
        %v908 = vsub.s32 0, %v907
        %v909 = vrot.slane %v892, %v908
        %v910 = vlaneseq
        %v911 = vshrl.u32 %v910, 7
        %v912 = vsub.s32 0, %v911
        %v913 = vrot.slane %v875, %v912
        %v914 = vlaneseq
        %v915 = vshrl.u32 %v914, 7
        %v916 = vsub.s32 0, %v915
        %v917 = vrot.slane %v889, %v916
        %v918 = vlaneseq
        %v919 = vshrl.u32 %v918, 7
        %v920 = vsub.s32 0, %v919
        %v921 = vrot.slane %v891, %v920
        %v922 = vlaneseq
        %v923 = vshrl.u32 %v922, 7
        %v924 = vsub.s32 0, %v923
        %v925 = vrot.slane %v893, %v924
        %v934 = vsub.f32 %v897, %v718
        %v935 = vsub.f32 %v901, %v718
        %v936 = vsub.f32 %v905, %v718
        %v937 = vsub.f32 %v909, %v718
        %v938 = vsub.f32 %v913, %v718
        %v939 = vsub.f32 %v917, %v718
        %v940 = vsub.f32 %v921, %v718
        %v941 = vsub.f32 %v925, %v718
        %v942 = vmul.f32 %v934, %v934
        %v943 = vmul.f32 %v935, %v935
        %v944 = vmul.f32 %v936, %v936
        %v945 = vmul.f32 %v937, %v937
        %v946 = vmul.f32 %v938, %v938
        %v947 = vmul.f32 %v939, %v939
        %v948 = vmul.f32 %v940, %v940
        %v949 = vmul.f32 %v941, %v941
        %958 = vrot.lane.b32.xlu0 %v942, 127
        %v959 = vpop.permute.xlu0 %958
        %960 = vrot.lane.b32.xlu0 %v943, 127
        %v961 = vpop.permute.xlu0 %960
        %962 = vrot.lane.b32.xlu0 %v944, 127
        %v963 = vpop.permute.xlu0 %962
        %964 = vrot.lane.b32.xlu0 %v945, 127
        %v965 = vpop.permute.xlu0 %964
        %966 = vrot.lane.b32.xlu0 %v946, 127
        %v967 = vpop.permute.xlu0 %966
        %968 = vrot.lane.b32.xlu0 %v947, 127
        %v969 = vpop.permute.xlu0 %968
        %970 = vrot.lane.b32.xlu0 %v948, 127
        %v971 = vpop.permute.xlu0 %970
        %972 = vrot.lane.b32.xlu0 %v949, 127
        %v973 = vpop.permute.xlu0 %972
        %v982 = vadd.f32 %v942, %v959
        %v983 = vadd.f32 %v943, %v961
        %v984 = vadd.f32 %v944, %v963
        %v985 = vadd.f32 %v945, %v965
        %v986 = vadd.f32 %v946, %v967
        %v987 = vadd.f32 %v947, %v969
        %v988 = vadd.f32 %v948, %v971
        %v989 = vadd.f32 %v949, %v973
        %v990 = vadd.f32 %v982, 2e-08
        %v991 = vadd.f32 %v983, 2e-08
        %v992 = vadd.f32 %v984, 2e-08
        %v993 = vadd.f32 %v985, 2e-08
        %v994 = vadd.f32 %v986, 2e-08
        %v995 = vadd.f32 %v987, 2e-08
        %v996 = vadd.f32 %v988, 2e-08
        %v997 = vadd.f32 %v989, 2e-08
        %v998 = vrsqrt.pop %v990
        %v999 = vmul.f32 %v990, %v998
        %vm1000 = vcmp.eq.f32.partialorder %v990, inf
        %v1001 = vsel %vm1000, %v990, %v999
        %vm1002 = vcmp.eq.f32.partialorder %v990, 0.0
        %v1003 = vand.u32 %v990, 2147483648
        %v1004 = vsel %vm1002, %v1003, %v1001
        %v1005 = vrsqrt.pop %v991
        %v1006 = vmul.f32 %v991, %v1005
        %vm1007 = vcmp.eq.f32.partialorder %v991, inf
        %v1008 = vsel %vm1007, %v991, %v1006
        %vm1009 = vcmp.eq.f32.partialorder %v991, 0.0
        %v1010 = vand.u32 %v991, 2147483648
        %v1011 = vsel %vm1009, %v1010, %v1008
        %v1012 = vrsqrt.pop %v992
        %v1013 = vmul.f32 %v992, %v1012
        %vm1014 = vcmp.eq.f32.partialorder %v992, inf
        %v1015 = vsel %vm1014, %v992, %v1013
        %vm1016 = vcmp.eq.f32.partialorder %v992, 0.0
        %v1017 = vand.u32 %v992, 2147483648
        %v1018 = vsel %vm1016, %v1017, %v1015
        %v1019 = vrsqrt.pop %v993
        %v1020 = vmul.f32 %v993, %v1019
        %vm1021 = vcmp.eq.f32.partialorder %v993, inf
        %v1022 = vsel %vm1021, %v993, %v1020
        %vm1023 = vcmp.eq.f32.partialorder %v993, 0.0
        %v1024 = vand.u32 %v993, 2147483648
        %v1025 = vsel %vm1023, %v1024, %v1022
        %v1026 = vrsqrt.pop %v994
        %v1027 = vmul.f32 %v994, %v1026
        %vm1028 = vcmp.eq.f32.partialorder %v994, inf
        %v1029 = vsel %vm1028, %v994, %v1027
        %vm1030 = vcmp.eq.f32.partialorder %v994, 0.0
        %v1031 = vand.u32 %v994, 2147483648
        %v1032 = vsel %vm1030, %v1031, %v1029
        %v1033 = vrsqrt.pop %v995
        %v1034 = vmul.f32 %v995, %v1033
        %vm1035 = vcmp.eq.f32.partialorder %v995, inf
        %v1036 = vsel %vm1035, %v995, %v1034
        %vm1037 = vcmp.eq.f32.partialorder %v995, 0.0
        %v1038 = vand.u32 %v995, 2147483648
        %v1039 = vsel %vm1037, %v1038, %v1036
        %v1040 = vrsqrt.pop %v996
        %v1041 = vmul.f32 %v996, %v1040
        %vm1042 = vcmp.eq.f32.partialorder %v996, inf
        %v1043 = vsel %vm1042, %v996, %v1041
        %vm1044 = vcmp.eq.f32.partialorder %v996, 0.0
        %v1045 = vand.u32 %v996, 2147483648
        %v1046 = vsel %vm1044, %v1045, %v1043
        %v1047 = vrsqrt.pop %v997
        %v1048 = vmul.f32 %v997, %v1047
        %vm1049 = vcmp.eq.f32.partialorder %v997, inf
        %v1050 = vsel %vm1049, %v997, %v1048
        %vm1051 = vcmp.eq.f32.partialorder %v997, 0.0
        %v1052 = vand.u32 %v997, 2147483648
        %v1053 = vsel %vm1051, %v1052, %v1050
        %v1055 = vcombine.high %v715, %v715
        %v1057 = vunpack.c.l.s4 1966171168
        %v1058 = vunpack.c.0.s8 %v1057
        %v1059 = vlaneseq
        %v1060 = vshrl.u32 %v1059, 7
        %v1061 = vsub.s32 %v1058, %v1060
        %v1062 = vrot.slane %v715, %v1061
        %v1064 = vunpack.c.l.s4 1966171168
        %v1065 = vunpack.c.0.s8 %v1064
        %v1066 = vlaneseq
        %v1067 = vshrl.u32 %v1066, 7
        %v1068 = vsub.s32 %v1065, %v1067
        %v1069 = vrot.slane %v1055, %v1068
        %v1070 = vcombine.high %v1062, %v1062
        %v1071 = vcombine.high %v1069, %v1069
        %v1073 = vunpack.c.l.s4 1966171168
        %v1074 = vunpack.c.0.s8 %v1073
        %v1075 = vlaneseq
        %v1076 = vshrl.u32 %v1075, 7
        %v1077 = vsub.s32 %v1074, %v1076
        %v1078 = vrot.slane %v1062, %v1077
        %v1080 = vunpack.c.l.s4 1966171168
        %v1081 = vunpack.c.0.s8 %v1080
        %v1082 = vlaneseq
        %v1083 = vshrl.u32 %v1082, 7
        %v1084 = vsub.s32 %v1081, %v1083
        %v1085 = vrot.slane %v1069, %v1084
        %v1087 = vunpack.c.l.s4 1966171168
        %v1088 = vunpack.c.0.s8 %v1087
        %v1089 = vlaneseq
        %v1090 = vshrl.u32 %v1089, 7
        %v1091 = vsub.s32 %v1088, %v1090
        %v1092 = vrot.slane %v1070, %v1091
        %v1094 = vunpack.c.l.s4 1966171168
        %v1095 = vunpack.c.0.s8 %v1094
        %v1096 = vlaneseq
        %v1097 = vshrl.u32 %v1096, 7
        %v1098 = vsub.s32 %v1095, %v1097
        %v1099 = vrot.slane %v1071, %v1098
        %v1100 = vcombine.high %v1078, %v1078
        %v1101 = vcombine.high %v1085, %v1085
        %v1102 = vcombine.high %v1092, %v1092
        %v1103 = vcombine.high %v1099, %v1099
        %v1104 = vlaneseq
        %v1105 = vshrl.u32 %v1104, 7
        %v1106 = vsub.s32 0, %v1105
        %v1107 = vrot.slane %v1078, %v1106
        %v1108 = vlaneseq
        %v1109 = vshrl.u32 %v1108, 7
        %v1110 = vsub.s32 0, %v1109
        %v1111 = vrot.slane %v1092, %v1110
        %v1112 = vlaneseq
        %v1113 = vshrl.u32 %v1112, 7
        %v1114 = vsub.s32 0, %v1113
        %v1115 = vrot.slane %v1100, %v1114
        %v1116 = vlaneseq
        %v1117 = vshrl.u32 %v1116, 7
        %v1118 = vsub.s32 0, %v1117
        %v1119 = vrot.slane %v1102, %v1118
        %v1120 = vlaneseq
        %v1121 = vshrl.u32 %v1120, 7
        %v1122 = vsub.s32 0, %v1121
        %v1123 = vrot.slane %v1085, %v1122
        %v1124 = vlaneseq
        %v1125 = vshrl.u32 %v1124, 7
        %v1126 = vsub.s32 0, %v1125
        %v1127 = vrot.slane %v1099, %v1126
        %v1128 = vlaneseq
        %v1129 = vshrl.u32 %v1128, 7
        %v1130 = vsub.s32 0, %v1129
        %v1131 = vrot.slane %v1101, %v1130
        %v1132 = vlaneseq
        %v1133 = vshrl.u32 %v1132, 7
        %v1134 = vsub.s32 0, %v1133
        %v1135 = vrot.slane %v1103, %v1134
        %v1144 = vadd.f32 %v717, %v1107
        %v1145 = vadd.f32 %v717, %v1111
        %v1146 = vadd.f32 %v717, %v1115
        %v1147 = vadd.f32 %v717, %v1119
        %v1148 = vadd.f32 %v717, %v1123
        %v1149 = vadd.f32 %v717, %v1127
        %v1150 = vadd.f32 %v717, %v1131
        %v1151 = vadd.f32 %v717, %v1135
        %v1152 = vadd.f32 %v1144, %v814
        %v1153 = vadd.f32 %v1145, %v817
        %v1154 = vadd.f32 %v1146, %v822
        %v1155 = vadd.f32 %v1147, %v825
        %v1156 = vadd.f32 %v1148, %v830
        %v1157 = vadd.f32 %v1149, %v833
        %v1158 = vadd.f32 %v1150, %v838
        %v1159 = vadd.f32 %v1151, %v841
        %1161 = vset.pattern.permute.xlu0 0
        %1162 = vperm.xlu0 %1161, %v1004
        %v1163 = vpop.permute.xlu0 %1162
        %1166 = vset.pattern.permute.xlu0 0
        %1167 = vperm.xlu0 %1166, %v1011
        %v1168 = vpop.permute.xlu0 %1167
        %1171 = vset.pattern.permute.xlu0 0
        %1172 = vperm.xlu0 %1171, %v1018
        %v1173 = vpop.permute.xlu0 %1172
        %1176 = vset.pattern.permute.xlu0 0
        %1177 = vperm.xlu0 %1176, %v1025
        %v1178 = vpop.permute.xlu0 %1177
        %1181 = vset.pattern.permute.xlu0 0
        %1182 = vperm.xlu0 %1181, %v1032
        %v1183 = vpop.permute.xlu0 %1182
        %1186 = vset.pattern.permute.xlu0 0
        %1187 = vperm.xlu0 %1186, %v1039
        %v1188 = vpop.permute.xlu0 %1187
        %1191 = vset.pattern.permute.xlu0 0
        %1192 = vperm.xlu0 %1191, %v1046
        %v1193 = vpop.permute.xlu0 %1192
        %1196 = vset.pattern.permute.xlu0 0
        %1197 = vperm.xlu0 %1196, %v1053
        %v1198 = vpop.permute.xlu0 %1197
        %v1200 = vlaneseq
        %v1201 = vshrl.u32 %v1200, 7
        %v1202 = vsub.s32 0, %v1201
        %v1203 = vrot.slane %v711, %v1202
        %v1204 = vmul.f32 %v1163, %v1203
        %v1205 = vmul.f32 %v1168, %v1203
        %v1206 = vmul.f32 %v1173, %v1203
        %v1207 = vmul.f32 %v1178, %v1203
        %v1208 = vmul.f32 %v1183, %v1203
        %v1209 = vmul.f32 %v1188, %v1203
        %v1210 = vmul.f32 %v1193, %v1203
        %v1211 = vmul.f32 %v1198, %v1203
        %v1212 = vadd.f32 %v1152, %v1204
        %v1213 = vadd.f32 %v1153, %v1205
        %v1214 = vadd.f32 %v1154, %v1206
        %v1215 = vadd.f32 %v1155, %v1207
        %v1216 = vadd.f32 %v1156, %v1208
        %v1217 = vadd.f32 %v1157, %v1209
        %v1218 = vadd.f32 %v1158, %v1210
        %v1219 = vadd.f32 %v1159, %v1211
        %v1220 = vxor.u32 %v1212, 2147483648
        %v1221 = vxor.u32 %v1213, 2147483648
        %v1222 = vxor.u32 %v1214, 2147483648
        %v1223 = vxor.u32 %v1215, 2147483648
        %v1224 = vxor.u32 %v1216, 2147483648
        %v1225 = vxor.u32 %v1217, 2147483648
        %v1226 = vxor.u32 %v1218, 2147483648
        %v1227 = vxor.u32 %v1219, 2147483648
        %v1228 = vmul.f32 %v1220, 1.442695
        %v1229 = vpow.pop %v1228
        %v1230 = vmul.f32 %v1221, 1.442695
        %v1231 = vpow.pop %v1230
        %v1232 = vmul.f32 %v1222, 1.442695
        %v1233 = vpow.pop %v1232
        %v1234 = vmul.f32 %v1223, 1.442695
        %v1235 = vpow.pop %v1234
        %v1236 = vmul.f32 %v1224, 1.442695
        %v1237 = vpow.pop %v1236
        %v1238 = vmul.f32 %v1225, 1.442695
        %v1239 = vpow.pop %v1238
        %v1240 = vmul.f32 %v1226, 1.442695
        %v1241 = vpow.pop %v1240
        %v1242 = vmul.f32 %v1227, 1.442695
        %v1243 = vpow.pop %v1242
        %v1244 = vadd.f32 %v1229, 1.0
        %v1245 = vadd.f32 %v1231, 1.0
        %v1246 = vadd.f32 %v1233, 1.0
        %v1247 = vadd.f32 %v1235, 1.0
        %v1248 = vadd.f32 %v1237, 1.0
        %v1249 = vadd.f32 %v1239, 1.0
        %v1250 = vadd.f32 %v1241, 1.0
        %v1251 = vadd.f32 %v1243, 1.0
        %v1252 = vrcp.pop %v1244
        %v1253 = vmul.f32 1.0, %v1252
        %v1254 = vrcp.pop %v1245
        %v1255 = vmul.f32 1.0, %v1254
        %v1256 = vrcp.pop %v1246
        %v1257 = vmul.f32 1.0, %v1256
        %v1258 = vrcp.pop %v1247
        %v1259 = vmul.f32 1.0, %v1258
        %v1260 = vrcp.pop %v1248
        %v1261 = vmul.f32 1.0, %v1260
        %v1262 = vrcp.pop %v1249
        %v1263 = vmul.f32 1.0, %v1262
        %v1264 = vrcp.pop %v1250
        %v1265 = vmul.f32 1.0, %v1264
        %v1266 = vrcp.pop %v1251
        %v1267 = vmul.f32 1.0, %v1266
        %v1268 = vlaneseq
        %v1269 = vshrl.u32 %v1268, 7
        %v1270 = vsub.s32 0, %v1269
        %v1271 = vrot.slane %v729, %v1270
        %1273 = vbcast.lane.b32.xlu0 %v1271, 256
        %v1274 = vpop.permute.xlu0 %1273
        %v1275 = vlaneseq
        %v1276 = vshrl.u32 %v1275, 7
        %v1277 = vsub.s32 1, %v1276
        %v1278 = vrot.slane %v729, %v1277
        %1280 = vbcast.lane.b32.xlu0 %v1278, 256
        %v1281 = vpop.permute.xlu0 %1280
        %v1282 = vlaneseq
        %v1283 = vshrl.u32 %v1282, 7
        %v1284 = vsub.s32 2, %v1283
        %v1285 = vrot.slane %v729, %v1284
        %1287 = vbcast.lane.b32.xlu0 %v1285, 256
        %v1288 = vpop.permute.xlu0 %1287
        %v1289 = vlaneseq
        %v1290 = vshrl.u32 %v1289, 7
        %v1291 = vsub.s32 3, %v1290
        %v1292 = vrot.slane %v729, %v1291
        %1294 = vbcast.lane.b32.xlu0 %v1292, 256
        %v1295 = vpop.permute.xlu0 %1294
        %v1296 = vlaneseq
        %v1297 = vshrl.u32 %v1296, 7
        %v1298 = vsub.s32 4, %v1297
        %v1299 = vrot.slane %v729, %v1298
        %1301 = vbcast.lane.b32.xlu0 %v1299, 256
        %v1302 = vpop.permute.xlu0 %1301
        %v1303 = vlaneseq
        %v1304 = vshrl.u32 %v1303, 7
        %v1305 = vsub.s32 5, %v1304
        %v1306 = vrot.slane %v729, %v1305
        %1308 = vbcast.lane.b32.xlu0 %v1306, 256
        %v1309 = vpop.permute.xlu0 %1308
        %v1310 = vlaneseq
        %v1311 = vshrl.u32 %v1310, 7
        %v1312 = vsub.s32 6, %v1311
        %v1313 = vrot.slane %v729, %v1312
        %1315 = vbcast.lane.b32.xlu0 %v1313, 256
        %v1316 = vpop.permute.xlu0 %1315
        %v1317 = vlaneseq
        %v1318 = vshrl.u32 %v1317, 7
        %v1319 = vsub.s32 7, %v1318
        %v1320 = vrot.slane %v729, %v1319
        %1322 = vbcast.lane.b32.xlu0 %v1320, 256
        %v1323 = vpop.permute.xlu0 %1322
        %v1324 = vmul.f32 %v1274, %v1253
        %v1325 = vmul.f32 %v1281, %v1255
        %v1326 = vmul.f32 %v1288, %v1257
        %v1327 = vmul.f32 %v1295, %v1259
        %v1328 = vmul.f32 %v1302, %v1261
        %v1329 = vmul.f32 %v1309, %v1263
        %v1330 = vmul.f32 %v1316, %v1265
        %v1331 = vmul.f32 %v1323, %v1267
        %v1332 = vlaneseq
        %v1333 = vshrl.u32 %v1332, 7
        %v1334 = vsub.s32 1, %v1333
        %v1335 = vrot.slane %v711, %v1334
        %v1336 = vmul.f32 %v1212, %v1335
        %v1337 = vmul.f32 %v1213, %v1335
        %v1338 = vmul.f32 %v1214, %v1335
        %v1339 = vmul.f32 %v1215, %v1335
        %v1340 = vmul.f32 %v1216, %v1335
        %v1341 = vmul.f32 %v1217, %v1335
        %v1342 = vmul.f32 %v1218, %v1335
        %v1343 = vmul.f32 %v1219, %v1335
        %v1344 = vsel %vm766, %v1336, 0.0
        %1345 = vadd.xlane.f32.xlu0 %v1344
        %v1346 = vpop.xlane.xlu0 %1345
        %v1347 = vsel %vm766, %v1337, 0.0
        %1348 = vadd.xlane.f32.xlu0 %v1347
        %v1349 = vpop.xlane.xlu0 %1348
        %v1350 = vsel %vm766, %v1338, 0.0
        %1351 = vadd.xlane.f32.xlu0 %v1350
        %v1352 = vpop.xlane.xlu0 %1351
        %v1353 = vsel %vm766, %v1339, 0.0
        %1354 = vadd.xlane.f32.xlu0 %v1353
        %v1355 = vpop.xlane.xlu0 %1354
        %v1356 = vsel %vm766, %v1340, 0.0
        %1357 = vadd.xlane.f32.xlu0 %v1356
        %v1358 = vpop.xlane.xlu0 %1357
        %v1359 = vsel %vm766, %v1341, 0.0
        %1360 = vadd.xlane.f32.xlu0 %v1359
        %v1361 = vpop.xlane.xlu0 %1360
        %v1362 = vsel %vm766, %v1342, 0.0
        %1363 = vadd.xlane.f32.xlu0 %v1362
        %v1364 = vpop.xlane.xlu0 %1363
        %v1365 = vsel %vm766, %v1343, 0.0
        %1366 = vadd.xlane.f32.xlu0 %v1365
        %v1367 = vpop.xlane.xlu0 %1366
        %v1368 = vlaneseq
        %v1369 = vshrl.u32 %v1368, 7
        %v1370 = vsub.s32 2, %v1369
        %v1371 = vrot.slane %v712, %v1370
        %v1372 = vadd.f32 %v1346, %v1371
        %v1373 = vadd.f32 %v1349, %v1371
        %v1374 = vadd.f32 %v1352, %v1371
        %v1375 = vadd.f32 %v1355, %v1371
        %v1376 = vadd.f32 %v1358, %v1371
        %v1377 = vadd.f32 %v1361, %v1371
        %v1378 = vadd.f32 %v1364, %v1371
        %v1379 = vadd.f32 %v1367, %v1371
        %v1380 = vxor.u32 %v1372, 2147483648
        %v1381 = vxor.u32 %v1373, 2147483648
        %v1382 = vxor.u32 %v1374, 2147483648
        %v1383 = vxor.u32 %v1375, 2147483648
        %v1384 = vxor.u32 %v1376, 2147483648
        %v1385 = vxor.u32 %v1377, 2147483648
        %v1386 = vxor.u32 %v1378, 2147483648
        %v1387 = vxor.u32 %v1379, 2147483648
        %v1388 = vmul.f32 %v1380, 1.442695
        %v1389 = vpow.pop %v1388
        %v1390 = vmul.f32 %v1381, 1.442695
        %v1391 = vpow.pop %v1390
        %v1392 = vmul.f32 %v1382, 1.442695
        %v1393 = vpow.pop %v1392
        %v1394 = vmul.f32 %v1383, 1.442695
        %v1395 = vpow.pop %v1394
        %v1396 = vmul.f32 %v1384, 1.442695
        %v1397 = vpow.pop %v1396
        %v1398 = vmul.f32 %v1385, 1.442695
        %v1399 = vpow.pop %v1398
        %v1400 = vmul.f32 %v1386, 1.442695
        %v1401 = vpow.pop %v1400
        %v1402 = vmul.f32 %v1387, 1.442695
        %v1403 = vpow.pop %v1402
        %v1404 = vadd.f32 %v1389, 1.0
        %v1405 = vadd.f32 %v1391, 1.0
        %v1406 = vadd.f32 %v1393, 1.0
        %v1407 = vadd.f32 %v1395, 1.0
        %v1408 = vadd.f32 %v1397, 1.0
        %v1409 = vadd.f32 %v1399, 1.0
        %v1410 = vadd.f32 %v1401, 1.0
        %v1411 = vadd.f32 %v1403, 1.0
        %v1412 = vrcp.pop %v1404
        %v1413 = vmul.f32 1.0, %v1412
        %v1414 = vrcp.pop %v1405
        %v1415 = vmul.f32 1.0, %v1414
        %v1416 = vrcp.pop %v1406
        %v1417 = vmul.f32 1.0, %v1416
        %v1418 = vrcp.pop %v1407
        %v1419 = vmul.f32 1.0, %v1418
        %v1420 = vrcp.pop %v1408
        %v1421 = vmul.f32 1.0, %v1420
        %v1422 = vrcp.pop %v1409
        %v1423 = vmul.f32 1.0, %v1422
        %v1424 = vrcp.pop %v1410
        %v1425 = vmul.f32 1.0, %v1424
        %v1426 = vrcp.pop %v1411
        %v1427 = vmul.f32 1.0, %v1426
        %v1428 = vmul.f32 %v1413, %v1274
        %v1429 = vmul.f32 %v1415, %v1281
        %v1430 = vmul.f32 %v1417, %v1288
        %v1431 = vmul.f32 %v1419, %v1295
        %v1432 = vmul.f32 %v1421, %v1302
        %v1433 = vmul.f32 %v1423, %v1309
        %v1434 = vmul.f32 %v1425, %v1316
        %v1435 = vmul.f32 %v1427, %v1323
        %v1436 = vmul.f32 %v1428, %v934
        %v1437 = vmul.f32 %v1429, %v935
        %v1438 = vmul.f32 %v1430, %v936
        %v1439 = vmul.f32 %v1431, %v937
        %v1440 = vmul.f32 %v1432, %v938
        %v1441 = vmul.f32 %v1433, %v939
        %v1442 = vmul.f32 %v1434, %v940
        %v1443 = vmul.f32 %v1435, %v941
        %vm1444 = vcmask 7168
        %v1445 = vsel %vm1444, %v1436, 0.0
        %v1446 = vrot.slane %v1445, 4
        %v1447 = vadd.f32 %v1445, %v1446
        %v1448 = vrot.slane %v1447, 2
        %v1449 = vadd.f32 %v1447, %v1448
        %v1450 = vrot.slane %v1449, 1
        %v1451 = vadd.f32 %v1449, %v1450
        %v1452 = vsel %vm1444, %v1437, 0.0
        %v1453 = vrot.slane %v1452, 4
        %v1454 = vadd.f32 %v1452, %v1453
        %v1455 = vrot.slane %v1454, 2
        %v1456 = vadd.f32 %v1454, %v1455
        %v1457 = vrot.slane %v1456, 1
        %v1458 = vadd.f32 %v1456, %v1457
        %v1459 = vsel %vm1444, %v1438, 0.0
        %v1460 = vrot.slane %v1459, 4
        %v1461 = vadd.f32 %v1459, %v1460
        %v1462 = vrot.slane %v1461, 2
        %v1463 = vadd.f32 %v1461, %v1462
        %v1464 = vrot.slane %v1463, 1
        %v1465 = vadd.f32 %v1463, %v1464
        %v1466 = vsel %vm1444, %v1439, 0.0
        %v1467 = vrot.slane %v1466, 4
        %v1468 = vadd.f32 %v1466, %v1467
        %v1469 = vrot.slane %v1468, 2
        %v1470 = vadd.f32 %v1468, %v1469
        %v1471 = vrot.slane %v1470, 1
        %v1472 = vadd.f32 %v1470, %v1471
        %v1473 = vsel %vm1444, %v1440, 0.0
        %v1474 = vrot.slane %v1473, 4
        %v1475 = vadd.f32 %v1473, %v1474
        %v1476 = vrot.slane %v1475, 2
        %v1477 = vadd.f32 %v1475, %v1476
        %v1478 = vrot.slane %v1477, 1
        %v1479 = vadd.f32 %v1477, %v1478
        %v1480 = vsel %vm1444, %v1441, 0.0
        %v1481 = vrot.slane %v1480, 4
        %v1482 = vadd.f32 %v1480, %v1481
        %v1483 = vrot.slane %v1482, 2
        %v1484 = vadd.f32 %v1482, %v1483
        %v1485 = vrot.slane %v1484, 1
        %v1486 = vadd.f32 %v1484, %v1485
        %v1487 = vsel %vm1444, %v1442, 0.0
        %v1488 = vrot.slane %v1487, 4
        %v1489 = vadd.f32 %v1487, %v1488
        %v1490 = vrot.slane %v1489, 2
        %v1491 = vadd.f32 %v1489, %v1490
        %v1492 = vrot.slane %v1491, 1
        %v1493 = vadd.f32 %v1491, %v1492
        %v1494 = vsel %vm1444, %v1443, 0.0
        %v1495 = vrot.slane %v1494, 4
        %v1496 = vadd.f32 %v1494, %v1495
        %v1497 = vrot.slane %v1496, 2
        %v1498 = vadd.f32 %v1496, %v1497
        %v1499 = vrot.slane %v1498, 1
        %v1500 = vadd.f32 %v1498, %v1499
        %1509 = vrot.lane.b32.xlu0 %v934, 127
        %v1510 = vpop.permute.xlu0 %1509
        %1511 = vrot.lane.b32.xlu0 %v935, 127
        %v1512 = vpop.permute.xlu0 %1511
        %1513 = vrot.lane.b32.xlu0 %v936, 127
        %v1514 = vpop.permute.xlu0 %1513
        %1515 = vrot.lane.b32.xlu0 %v937, 127
        %v1516 = vpop.permute.xlu0 %1515
        %1517 = vrot.lane.b32.xlu0 %v938, 127
        %v1518 = vpop.permute.xlu0 %1517
        %1519 = vrot.lane.b32.xlu0 %v939, 127
        %v1520 = vpop.permute.xlu0 %1519
        %1521 = vrot.lane.b32.xlu0 %v940, 127
        %v1522 = vpop.permute.xlu0 %1521
        %1523 = vrot.lane.b32.xlu0 %v941, 127
        %v1524 = vpop.permute.xlu0 %1523
        %v1533 = vmul.f32 %v1428, %v1510
        %v1534 = vmul.f32 %v1429, %v1512
        %v1535 = vmul.f32 %v1430, %v1514
        %v1536 = vmul.f32 %v1431, %v1516
        %v1537 = vmul.f32 %v1432, %v1518
        %v1538 = vmul.f32 %v1433, %v1520
        %v1539 = vmul.f32 %v1434, %v1522
        %v1540 = vmul.f32 %v1435, %v1524
        %v1541 = vsel %vm1444, %v1533, 0.0
        %v1542 = vrot.slane %v1541, 4
        %v1543 = vadd.f32 %v1541, %v1542
        %v1544 = vrot.slane %v1543, 2
        %v1545 = vadd.f32 %v1543, %v1544
        %v1546 = vrot.slane %v1545, 1
        %v1547 = vadd.f32 %v1545, %v1546
        %v1548 = vsel %vm1444, %v1534, 0.0
        %v1549 = vrot.slane %v1548, 4
        %v1550 = vadd.f32 %v1548, %v1549
        %v1551 = vrot.slane %v1550, 2
        %v1552 = vadd.f32 %v1550, %v1551
        %v1553 = vrot.slane %v1552, 1
        %v1554 = vadd.f32 %v1552, %v1553
        %v1555 = vsel %vm1444, %v1535, 0.0
        %v1556 = vrot.slane %v1555, 4
        %v1557 = vadd.f32 %v1555, %v1556
        %v1558 = vrot.slane %v1557, 2
        %v1559 = vadd.f32 %v1557, %v1558
        %v1560 = vrot.slane %v1559, 1
        %v1561 = vadd.f32 %v1559, %v1560
        %v1562 = vsel %vm1444, %v1536, 0.0
        %v1563 = vrot.slane %v1562, 4
        %v1564 = vadd.f32 %v1562, %v1563
        %v1565 = vrot.slane %v1564, 2
        %v1566 = vadd.f32 %v1564, %v1565
        %v1567 = vrot.slane %v1566, 1
        %v1568 = vadd.f32 %v1566, %v1567
        %v1569 = vsel %vm1444, %v1537, 0.0
        %v1570 = vrot.slane %v1569, 4
        %v1571 = vadd.f32 %v1569, %v1570
        %v1572 = vrot.slane %v1571, 2
        %v1573 = vadd.f32 %v1571, %v1572
        %v1574 = vrot.slane %v1573, 1
        %v1575 = vadd.f32 %v1573, %v1574
        %v1576 = vsel %vm1444, %v1538, 0.0
        %v1577 = vrot.slane %v1576, 4
        %v1578 = vadd.f32 %v1576, %v1577
        %v1579 = vrot.slane %v1578, 2
        %v1580 = vadd.f32 %v1578, %v1579
        %v1581 = vrot.slane %v1580, 1
        %v1582 = vadd.f32 %v1580, %v1581
        %v1583 = vsel %vm1444, %v1539, 0.0
        %v1584 = vrot.slane %v1583, 4
        %v1585 = vadd.f32 %v1583, %v1584
        %v1586 = vrot.slane %v1585, 2
        %v1587 = vadd.f32 %v1585, %v1586
        %v1588 = vrot.slane %v1587, 1
        %v1589 = vadd.f32 %v1587, %v1588
        %v1590 = vsel %vm1444, %v1540, 0.0
        %v1591 = vrot.slane %v1590, 4
        %v1592 = vadd.f32 %v1590, %v1591
        %v1593 = vrot.slane %v1592, 2
        %v1594 = vadd.f32 %v1592, %v1593
        %v1595 = vrot.slane %v1594, 1
        %v1596 = vadd.f32 %v1594, %v1595
        %v1597 = vsel %vm766, %v1212, 0.0
        %1598 = vadd.xlane.f32.xlu0 %v1597
        %v1599 = vpop.xlane.xlu0 %1598
        %v1600 = vsel %vm766, %v1213, 0.0
        %1601 = vadd.xlane.f32.xlu0 %v1600
        %v1602 = vpop.xlane.xlu0 %1601
        %v1603 = vsel %vm766, %v1214, 0.0
        %1604 = vadd.xlane.f32.xlu0 %v1603
        %v1605 = vpop.xlane.xlu0 %1604
        %v1606 = vsel %vm766, %v1215, 0.0
        %1607 = vadd.xlane.f32.xlu0 %v1606
        %v1608 = vpop.xlane.xlu0 %1607
        %v1609 = vsel %vm766, %v1216, 0.0
        %1610 = vadd.xlane.f32.xlu0 %v1609
        %v1611 = vpop.xlane.xlu0 %1610
        %v1612 = vsel %vm766, %v1217, 0.0
        %1613 = vadd.xlane.f32.xlu0 %v1612
        %v1614 = vpop.xlane.xlu0 %1613
        %v1615 = vsel %vm766, %v1218, 0.0
        %1616 = vadd.xlane.f32.xlu0 %v1615
        %v1617 = vpop.xlane.xlu0 %1616
        %v1618 = vsel %vm766, %v1219, 0.0
        %1619 = vadd.xlane.f32.xlu0 %v1618
        %v1620 = vpop.xlane.xlu0 %1619
        %v1621 = vrcp.pop 32.0
        %v1622 = vmul.f32 %v1599, %v1621
        %v1623 = vmul.f32 %v1602, %v1621
        %v1624 = vmul.f32 %v1605, %v1621
        %v1625 = vmul.f32 %v1608, %v1621
        %v1626 = vmul.f32 %v1611, %v1621
        %v1627 = vmul.f32 %v1614, %v1621
        %v1628 = vmul.f32 %v1617, %v1621
        %v1629 = vmul.f32 %v1620, %v1621
        %v1630 = vsub.f32 %v1212, %v1622
        %v1631 = vsub.f32 %v1213, %v1623
        %v1632 = vsub.f32 %v1214, %v1624
        %v1633 = vsub.f32 %v1215, %v1625
        %v1634 = vsub.f32 %v1216, %v1626
        %v1635 = vsub.f32 %v1217, %v1627
        %v1636 = vsub.f32 %v1218, %v1628
        %v1637 = vsub.f32 %v1219, %v1629
        %v1638 = vmul.f32 %v1630, %v1630
        %v1639 = vmul.f32 %v1631, %v1631
        %v1640 = vmul.f32 %v1632, %v1632
        %v1641 = vmul.f32 %v1633, %v1633
        %v1642 = vmul.f32 %v1634, %v1634
        %v1643 = vmul.f32 %v1635, %v1635
        %v1644 = vmul.f32 %v1636, %v1636
        %v1645 = vmul.f32 %v1637, %v1637
        %v1646 = vsel %vm766, %v1638, 0.0
        %1647 = vadd.xlane.f32.xlu0 %v1646
        %v1648 = vpop.xlane.xlu0 %1647
        %v1649 = vsel %vm766, %v1639, 0.0
        %1650 = vadd.xlane.f32.xlu0 %v1649
        %v1651 = vpop.xlane.xlu0 %1650
        %v1652 = vsel %vm766, %v1640, 0.0
        %1653 = vadd.xlane.f32.xlu0 %v1652
        %v1654 = vpop.xlane.xlu0 %1653
        %v1655 = vsel %vm766, %v1641, 0.0
        %1656 = vadd.xlane.f32.xlu0 %v1655
        %v1657 = vpop.xlane.xlu0 %1656
        %v1658 = vsel %vm766, %v1642, 0.0
        %1659 = vadd.xlane.f32.xlu0 %v1658
        %v1660 = vpop.xlane.xlu0 %1659
        %v1661 = vsel %vm766, %v1643, 0.0
        %1662 = vadd.xlane.f32.xlu0 %v1661
        %v1663 = vpop.xlane.xlu0 %1662
        %v1664 = vsel %vm766, %v1644, 0.0
        %1665 = vadd.xlane.f32.xlu0 %v1664
        %v1666 = vpop.xlane.xlu0 %1665
        %v1667 = vsel %vm766, %v1645, 0.0
        %1668 = vadd.xlane.f32.xlu0 %v1667
        %v1669 = vpop.xlane.xlu0 %1668
        %v1670 = vmul.f32 %v1648, %v1621
        %v1671 = vmul.f32 %v1651, %v1621
        %v1672 = vmul.f32 %v1654, %v1621
        %v1673 = vmul.f32 %v1657, %v1621
        %v1674 = vmul.f32 %v1660, %v1621
        %v1675 = vmul.f32 %v1663, %v1621
        %v1676 = vmul.f32 %v1666, %v1621
        %v1677 = vmul.f32 %v1669, %v1621
        %v1678 = vadd.f32 %v1670, 1e-05
        %v1679 = vadd.f32 %v1671, 1e-05
        %v1680 = vadd.f32 %v1672, 1e-05
        %v1681 = vadd.f32 %v1673, 1e-05
        %v1682 = vadd.f32 %v1674, 1e-05
        %v1683 = vadd.f32 %v1675, 1e-05
        %v1684 = vadd.f32 %v1676, 1e-05
        %v1685 = vadd.f32 %v1677, 1e-05
        %v1686 = vrsqrt.pop %v1678
        %v1687 = vrsqrt.pop %v1679
        %v1688 = vrsqrt.pop %v1680
        %v1689 = vrsqrt.pop %v1681
        %v1690 = vrsqrt.pop %v1682
        %v1691 = vrsqrt.pop %v1683
        %v1692 = vrsqrt.pop %v1684
        %v1693 = vrsqrt.pop %v1685
        %v1694 = vmul.f32 %v1630, %v1686
        %v1695 = vmul.f32 %v1631, %v1687
        %v1696 = vmul.f32 %v1632, %v1688
        %v1697 = vmul.f32 %v1633, %v1689
        %v1698 = vmul.f32 %v1634, %v1690
        %v1699 = vmul.f32 %v1635, %v1691
        %v1700 = vmul.f32 %v1636, %v1692
        %v1701 = vmul.f32 %v1637, %v1693
        %v1702 = vlaneseq
        %v1703 = vshrl.u32 %v1702, 7
        %v1704 = vsub.s32 5, %v1703
        %v1705 = vrot.slane %v711, %v1704
        %v1706 = vmul.f32 %v1694, %v1705
        %v1707 = vmul.f32 %v1695, %v1705
        %v1708 = vmul.f32 %v1696, %v1705
        %v1709 = vmul.f32 %v1697, %v1705
        %v1710 = vmul.f32 %v1698, %v1705
        %v1711 = vmul.f32 %v1699, %v1705
        %v1712 = vmul.f32 %v1700, %v1705
        %v1713 = vmul.f32 %v1701, %v1705
        %v1714 = vlaneseq
        %v1715 = vshrl.u32 %v1714, 7
        %v1716 = vsub.s32 6, %v1715
        %v1717 = vrot.slane %v711, %v1716
        %v1718 = vadd.f32 %v1706, %v1717
        %v1719 = vadd.f32 %v1707, %v1717
        %v1720 = vadd.f32 %v1708, %v1717
        %v1721 = vadd.f32 %v1709, %v1717
        %v1722 = vadd.f32 %v1710, %v1717
        %v1723 = vadd.f32 %v1711, %v1717
        %v1724 = vadd.f32 %v1712, %v1717
        %v1725 = vadd.f32 %v1713, %v1717
        %v1726 = vmax.f32 %v1718, 0.0
        %v1727 = vmax.f32 %v1719, 0.0
        %v1728 = vmax.f32 %v1720, 0.0
        %v1729 = vmax.f32 %v1721, 0.0
        %v1730 = vmax.f32 %v1722, 0.0
        %v1731 = vmax.f32 %v1723, 0.0
        %v1732 = vmax.f32 %v1724, 0.0
        %v1733 = vmax.f32 %v1725, 0.0
        %v1734 = vunpack.c.l.bf16 %v720
        %v1735 = vunpack.c.l.bf16 %v721
        %v1736 = vunpack.c.l.bf16 %v722
        %v1737 = vunpack.c.l.bf16 %v723
        %v1738 = vunpack.c.l.bf16 %v724
        %v1739 = vunpack.c.l.bf16 %v725
        %v1740 = vunpack.c.l.bf16 %v726
        %v1741 = vunpack.c.l.bf16 %v727
        %v1742 = vadd.f32 %v1734, %v1726
        %v1743 = vadd.f32 %v1735, %v1727
        %v1744 = vadd.f32 %v1736, %v1728
        %v1745 = vadd.f32 %v1737, %v1729
        %v1746 = vadd.f32 %v1738, %v1730
        %v1747 = vadd.f32 %v1739, %v1731
        %v1748 = vadd.f32 %v1740, %v1732
        %v1749 = vadd.f32 %v1741, %v1733
        %v1750 = vpack.c.bf16 %v1742, %v1742
        %v1751 = vpack.c.bf16 %v1743, %v1743
        %v1752 = vpack.c.bf16 %v1744, %v1744
        %v1753 = vpack.c.bf16 %v1745, %v1745
        %v1754 = vpack.c.bf16 %v1746, %v1746
        %v1755 = vpack.c.bf16 %v1747, %v1747
        %v1756 = vpack.c.bf16 %v1748, %v1748
        %v1757 = vpack.c.bf16 %v1749, %v1749
        %vm1758 = vcmask 257024
        %1759 = vst.msk [vmem:[%s644] sm:$0xf] %vm1758, %v1750
        %1760 = vst.msk [vmem:[%s644 + $0x4] sm:$0xf] %vm1758, %v1751
        %1761 = vst.msk [vmem:[%s644 + $0x8] sm:$0xf] %vm1758, %v1752
        %1762 = vst.msk [vmem:[%s644 + $0xc] sm:$0xf] %vm1758, %v1753
        %1763 = vst.msk [vmem:[%s644 + $0x10] sm:$0xf] %vm1758, %v1754
        %1764 = vst.msk [vmem:[%s644 + $0x14] sm:$0xf] %vm1758, %v1755
        %1765 = vst.msk [vmem:[%s644 + $0x18] sm:$0xf] %vm1758, %v1756
        %1766 = vst.msk [vmem:[%s644 + $0x1c] sm:$0xf] %vm1758, %v1757
        %v1767 = vmul.f32 %v1324, %v716
        %v1768 = vmul.f32 %v1325, %v716
        %v1769 = vmul.f32 %v1326, %v716
        %v1770 = vmul.f32 %v1327, %v716
        %v1771 = vmul.f32 %v1328, %v716
        %v1772 = vmul.f32 %v1329, %v716
        %v1773 = vmul.f32 %v1330, %v716
        %v1774 = vmul.f32 %v1331, %v716
        %v1775 = vsel %vm766, %v1767, 0.0
        %v1776 = vrot.slane %v1775, 4
        %v1777 = vadd.f32 %v1775, %v1776
        %v1778 = vrot.slane %v1777, 2
        %v1779 = vadd.f32 %v1777, %v1778
        %v1780 = vrot.slane %v1779, 1
        %v1781 = vadd.f32 %v1779, %v1780
        %v1782 = vsel %vm766, %v1768, 0.0
        %v1783 = vrot.slane %v1782, 4
        %v1784 = vadd.f32 %v1782, %v1783
        %v1785 = vrot.slane %v1784, 2
        %v1786 = vadd.f32 %v1784, %v1785
        %v1787 = vrot.slane %v1786, 1
        %v1788 = vadd.f32 %v1786, %v1787
        %v1789 = vsel %vm766, %v1769, 0.0
        %v1790 = vrot.slane %v1789, 4
        %v1791 = vadd.f32 %v1789, %v1790
        %v1792 = vrot.slane %v1791, 2
        %v1793 = vadd.f32 %v1791, %v1792
        %v1794 = vrot.slane %v1793, 1
        %v1795 = vadd.f32 %v1793, %v1794
        %v1796 = vsel %vm766, %v1770, 0.0
        %v1797 = vrot.slane %v1796, 4
        %v1798 = vadd.f32 %v1796, %v1797
        %v1799 = vrot.slane %v1798, 2
        %v1800 = vadd.f32 %v1798, %v1799
        %v1801 = vrot.slane %v1800, 1
        %v1802 = vadd.f32 %v1800, %v1801
        %v1803 = vsel %vm766, %v1771, 0.0
        %v1804 = vrot.slane %v1803, 4
        %v1805 = vadd.f32 %v1803, %v1804
        %v1806 = vrot.slane %v1805, 2
        %v1807 = vadd.f32 %v1805, %v1806
        %v1808 = vrot.slane %v1807, 1
        %v1809 = vadd.f32 %v1807, %v1808
        %v1810 = vsel %vm766, %v1772, 0.0
        %v1811 = vrot.slane %v1810, 4
        %v1812 = vadd.f32 %v1810, %v1811
        %v1813 = vrot.slane %v1812, 2
        %v1814 = vadd.f32 %v1812, %v1813
        %v1815 = vrot.slane %v1814, 1
        %v1816 = vadd.f32 %v1814, %v1815
        %v1817 = vsel %vm766, %v1773, 0.0
        %v1818 = vrot.slane %v1817, 4
        %v1819 = vadd.f32 %v1817, %v1818
        %v1820 = vrot.slane %v1819, 2
        %v1821 = vadd.f32 %v1819, %v1820
        %v1822 = vrot.slane %v1821, 1
        %v1823 = vadd.f32 %v1821, %v1822
        %v1824 = vsel %vm766, %v1774, 0.0
        %v1825 = vrot.slane %v1824, 4
        %v1826 = vadd.f32 %v1824, %v1825
        %v1827 = vrot.slane %v1826, 2
        %v1828 = vadd.f32 %v1826, %v1827
        %v1829 = vrot.slane %v1828, 1
        %v1830 = vadd.f32 %v1828, %v1829
        %vm1839 = vcmask 1041409
        %v1840 = vsel %vm1839, %v1788, %v1781
        %vm1841 = vcmask 1042434
        %v1842 = vsel %vm1841, %v1795, %v1840
        %vm1843 = vcmask 1043459
        %v1844 = vsel %vm1843, %v1802, %v1842
        %vm1845 = vcmask 1044484
        %v1846 = vsel %vm1845, %v1809, %v1844
        %vm1847 = vcmask 1045509
        %v1848 = vsel %vm1847, %v1816, %v1846
        %vm1849 = vcmask 1046534
        %v1850 = vsel %vm1849, %v1823, %v1848
        %vm1851 = vcmask 1047559
        %v1852 = vsel %vm1851, %v1830, %v1850
        %v1854 = vadd.f32 %v714, %v1852
        %v1855 = vsel %vm766, %v1854, 0.0
        %1856 = vadd.xlane.f32.xlu0 %v1855
        %v1857 = vpop.xlane.xlu0 %1856
        %v1858 = vmul.f32 %v1857, %v1621
        %v1859 = vsub.f32 %v1854, %v1858
        %v1860 = vmul.f32 %v1859, %v1859
        %v1861 = vsel %vm766, %v1860, 0.0
        %1862 = vadd.xlane.f32.xlu0 %v1861
        %v1863 = vpop.xlane.xlu0 %1862
        %v1864 = vmul.f32 %v1863, %v1621
        %v1865 = vadd.f32 %v1864, 1e-05
        %v1866 = vrsqrt.pop %v1865
        %v1867 = vmul.f32 %v1859, %v1866
        %v1868 = vlaneseq
        %v1869 = vshrl.u32 %v1868, 7
        %v1870 = vsub.s32 3, %v1869
        %v1871 = vrot.slane %v711, %v1870
        %v1872 = vmul.f32 %v1867, %v1871
        %v1873 = vlaneseq
        %v1874 = vshrl.u32 %v1873, 7
        %v1875 = vsub.s32 4, %v1874
        %v1876 = vrot.slane %v711, %v1875
        %v1877 = vadd.f32 %v1872, %v1876
        %v1878 = vmax.f32 %v1877, 0.0
        %v1879 = vadd.f32 %v713, %v1878
        %1880 = vst.msk [vmem:[%s637] sm:$0xff] %vm766, %v1879
        %v1881 = vlaneseq
        %v1882 = vshrl.u32 %v1881, 7
        %v1883 = vsub.s32 0, %v1882
        %v1884 = vrot.slane %v712, %v1883
        %v1885 = vmul.f32 %v1451, %v1884
        %v1886 = vmul.f32 %v1458, %v1884
        %v1887 = vmul.f32 %v1465, %v1884
        %v1888 = vmul.f32 %v1472, %v1884
        %v1889 = vmul.f32 %v1479, %v1884
        %v1890 = vmul.f32 %v1486, %v1884
        %v1891 = vmul.f32 %v1493, %v1884
        %v1892 = vmul.f32 %v1500, %v1884
        %v1893 = vmul.f32 %v1547, %v1884
        %v1894 = vmul.f32 %v1554, %v1884
        %v1895 = vmul.f32 %v1561, %v1884
        %v1896 = vmul.f32 %v1568, %v1884
        %v1897 = vmul.f32 %v1575, %v1884
        %v1898 = vmul.f32 %v1582, %v1884
        %v1899 = vmul.f32 %v1589, %v1884
        %v1900 = vmul.f32 %v1596, %v1884
        %v1901 = vmul.f32 %v1451, %v1451
        %v1902 = vmul.f32 %v1458, %v1458
        %v1903 = vmul.f32 %v1465, %v1465
        %v1904 = vmul.f32 %v1472, %v1472
        %v1905 = vmul.f32 %v1479, %v1479
        %v1906 = vmul.f32 %v1486, %v1486
        %v1907 = vmul.f32 %v1493, %v1493
        %v1908 = vmul.f32 %v1500, %v1500
        %v1909 = vmul.f32 %v1547, %v1547
        %v1910 = vmul.f32 %v1554, %v1554
        %v1911 = vmul.f32 %v1561, %v1561
        %v1912 = vmul.f32 %v1568, %v1568
        %v1913 = vmul.f32 %v1575, %v1575
        %v1914 = vmul.f32 %v1582, %v1582
        %v1915 = vmul.f32 %v1589, %v1589
        %v1916 = vmul.f32 %v1596, %v1596
        %v1917 = vadd.f32 %v1901, %v1909
        %v1918 = vadd.f32 %v1902, %v1910
        %v1919 = vadd.f32 %v1903, %v1911
        %v1920 = vadd.f32 %v1904, %v1912
        %v1921 = vadd.f32 %v1905, %v1913
        %v1922 = vadd.f32 %v1906, %v1914
        %v1923 = vadd.f32 %v1907, %v1915
        %v1924 = vadd.f32 %v1908, %v1916
        %v1925 = vadd.f32 %v1917, 0.0001
        %v1926 = vadd.f32 %v1918, 0.0001
        %v1927 = vadd.f32 %v1919, 0.0001
        %v1928 = vadd.f32 %v1920, 0.0001
        %v1929 = vadd.f32 %v1921, 0.0001
        %v1930 = vadd.f32 %v1922, 0.0001
        %v1931 = vadd.f32 %v1923, 0.0001
        %v1932 = vadd.f32 %v1924, 0.0001
        %v1933 = vrsqrt.pop %v1925
        %v1934 = vmul.f32 %v1925, %v1933
        %vm1935 = vcmp.eq.f32.partialorder %v1925, inf
        %v1936 = vsel %vm1935, %v1925, %v1934
        %vm1937 = vcmp.eq.f32.partialorder %v1925, 0.0
        %v1938 = vand.u32 %v1925, 2147483648
        %v1939 = vsel %vm1937, %v1938, %v1936
        %v1940 = vrsqrt.pop %v1926
        %v1941 = vmul.f32 %v1926, %v1940
        %vm1942 = vcmp.eq.f32.partialorder %v1926, inf
        %v1943 = vsel %vm1942, %v1926, %v1941
        %vm1944 = vcmp.eq.f32.partialorder %v1926, 0.0
        %v1945 = vand.u32 %v1926, 2147483648
        %v1946 = vsel %vm1944, %v1945, %v1943
        %v1947 = vrsqrt.pop %v1927
        %v1948 = vmul.f32 %v1927, %v1947
        %vm1949 = vcmp.eq.f32.partialorder %v1927, inf
        %v1950 = vsel %vm1949, %v1927, %v1948
        %vm1951 = vcmp.eq.f32.partialorder %v1927, 0.0
        %v1952 = vand.u32 %v1927, 2147483648
        %v1953 = vsel %vm1951, %v1952, %v1950
        %v1954 = vrsqrt.pop %v1928
        %v1955 = vmul.f32 %v1928, %v1954
        %vm1956 = vcmp.eq.f32.partialorder %v1928, inf
        %v1957 = vsel %vm1956, %v1928, %v1955
        %vm1958 = vcmp.eq.f32.partialorder %v1928, 0.0
        %v1959 = vand.u32 %v1928, 2147483648
        %v1960 = vsel %vm1958, %v1959, %v1957
        %v1961 = vrsqrt.pop %v1929
        %v1962 = vmul.f32 %v1929, %v1961
        %vm1963 = vcmp.eq.f32.partialorder %v1929, inf
        %v1964 = vsel %vm1963, %v1929, %v1962
        %vm1965 = vcmp.eq.f32.partialorder %v1929, 0.0
        %v1966 = vand.u32 %v1929, 2147483648
        %v1967 = vsel %vm1965, %v1966, %v1964
        %v1968 = vrsqrt.pop %v1930
        %v1969 = vmul.f32 %v1930, %v1968
        %vm1970 = vcmp.eq.f32.partialorder %v1930, inf
        %v1971 = vsel %vm1970, %v1930, %v1969
        %vm1972 = vcmp.eq.f32.partialorder %v1930, 0.0
        %v1973 = vand.u32 %v1930, 2147483648
        %v1974 = vsel %vm1972, %v1973, %v1971
        %v1975 = vrsqrt.pop %v1931
        %v1976 = vmul.f32 %v1931, %v1975
        %vm1977 = vcmp.eq.f32.partialorder %v1931, inf
        %v1978 = vsel %vm1977, %v1931, %v1976
        %vm1979 = vcmp.eq.f32.partialorder %v1931, 0.0
        %v1980 = vand.u32 %v1931, 2147483648
        %v1981 = vsel %vm1979, %v1980, %v1978
        %v1982 = vrsqrt.pop %v1932
        %v1983 = vmul.f32 %v1932, %v1982
        %vm1984 = vcmp.eq.f32.partialorder %v1932, inf
        %v1985 = vsel %vm1984, %v1932, %v1983
        %vm1986 = vcmp.eq.f32.partialorder %v1932, 0.0
        %v1987 = vand.u32 %v1932, 2147483648
        %v1988 = vsel %vm1986, %v1987, %v1985
        %v1989 = vlaneseq
        %v1990 = vshrl.u32 %v1989, 7
        %v1991 = vsub.s32 1, %v1990
        %v1992 = vrot.slane %v712, %v1991
        %v1993 = vmul.f32 %v1939, %v1992
        %v1994 = vmul.f32 %v1946, %v1992
        %v1995 = vmul.f32 %v1953, %v1992
        %v1996 = vmul.f32 %v1960, %v1992
        %v1997 = vmul.f32 %v1967, %v1992
        %v1998 = vmul.f32 %v1974, %v1992
        %v1999 = vmul.f32 %v1981, %v1992
        %v2000 = vmul.f32 %v1988, %v1992
        %v2001 = vlaneseq
        %v2002 = vshrl.u32 %v2001, 7
        %v2003 = vsub.s32 2, %v2002
        %v2004 = vrot.slane %v711, %v2003
        %v2005 = vmul.f32 %v713, %v2004
        %v2006 = vsel %vm766, %v2005, 0.0
        %2007 = vadd.xlane.f32.xlu0 %v2006
        %v2008 = vpop.xlane.xlu0 %2007
        %v2010 = vrot.slane %v2008, 1
        %v2011 = vrot.slane %v2008, 2
        %v2012 = vrot.slane %v2008, 3
        %v2013 = vrot.slane %v2008, 4
        %v2014 = vrot.slane %v2008, 5
        %v2015 = vrot.slane %v2008, 6
        %v2016 = vrot.slane %v2008, 7
        %v2025 = vadd.f32 %v1993, %v2008
        %v2026 = vadd.f32 %v1994, %v2010
        %v2027 = vadd.f32 %v1995, %v2011
        %v2028 = vadd.f32 %v1996, %v2012
        %v2029 = vadd.f32 %v1997, %v2013
        %v2030 = vadd.f32 %v1998, %v2014
        %v2031 = vadd.f32 %v1999, %v2015
        %v2032 = vadd.f32 %v2000, %v2016
        %v2033 = vlaneseq
        %v2034 = vshrl.u32 %v2033, 7
        %v2035 = vsub.s32 3, %v2034
        %v2036 = vrot.slane %v712, %v2035
        %v2037 = vadd.f32 %v2025, %v2036
        %v2038 = vadd.f32 %v2026, %v2036
        %v2039 = vadd.f32 %v2027, %v2036
        %v2040 = vadd.f32 %v2028, %v2036
        %v2041 = vadd.f32 %v2029, %v2036
        %v2042 = vadd.f32 %v2030, %v2036
        %v2043 = vadd.f32 %v2031, %v2036
        %v2044 = vadd.f32 %v2032, %v2036
        %v2045 = vxor.u32 %v2037, 2147483648
        %v2046 = vxor.u32 %v2038, 2147483648
        %v2047 = vxor.u32 %v2039, 2147483648
        %v2048 = vxor.u32 %v2040, 2147483648
        %v2049 = vxor.u32 %v2041, 2147483648
        %v2050 = vxor.u32 %v2042, 2147483648
        %v2051 = vxor.u32 %v2043, 2147483648
        %v2052 = vxor.u32 %v2044, 2147483648
        %v2053 = vmul.f32 %v2045, 1.442695
        %v2054 = vpow.pop %v2053
        %v2055 = vmul.f32 %v2046, 1.442695
        %v2056 = vpow.pop %v2055
        %v2057 = vmul.f32 %v2047, 1.442695
        %v2058 = vpow.pop %v2057
        %v2059 = vmul.f32 %v2048, 1.442695
        %v2060 = vpow.pop %v2059
        %v2061 = vmul.f32 %v2049, 1.442695
        %v2062 = vpow.pop %v2061
        %v2063 = vmul.f32 %v2050, 1.442695
        %v2064 = vpow.pop %v2063
        %v2065 = vmul.f32 %v2051, 1.442695
        %v2066 = vpow.pop %v2065
        %v2067 = vmul.f32 %v2052, 1.442695
        %v2068 = vpow.pop %v2067
        %v2069 = vadd.f32 %v2054, 1.0
        %v2070 = vadd.f32 %v2056, 1.0
        %v2071 = vadd.f32 %v2058, 1.0
        %v2072 = vadd.f32 %v2060, 1.0
        %v2073 = vadd.f32 %v2062, 1.0
        %v2074 = vadd.f32 %v2064, 1.0
        %v2075 = vadd.f32 %v2066, 1.0
        %v2076 = vadd.f32 %v2068, 1.0
        %v2077 = vrcp.pop %v2069
        %v2078 = vmul.f32 1.0, %v2077
        %v2079 = vrcp.pop %v2070
        %v2080 = vmul.f32 1.0, %v2079
        %v2081 = vrcp.pop %v2071
        %v2082 = vmul.f32 1.0, %v2081
        %v2083 = vrcp.pop %v2072
        %v2084 = vmul.f32 1.0, %v2083
        %v2085 = vrcp.pop %v2073
        %v2086 = vmul.f32 1.0, %v2085
        %v2087 = vrcp.pop %v2074
        %v2088 = vmul.f32 1.0, %v2087
        %v2089 = vrcp.pop %v2075
        %v2090 = vmul.f32 1.0, %v2089
        %v2091 = vrcp.pop %v2076
        %v2092 = vmul.f32 1.0, %v2091
        %v2093 = vmul.f32 %v1885, %v2078
        %v2094 = vmul.f32 %v1886, %v2080
        %v2095 = vmul.f32 %v1887, %v2082
        %v2096 = vmul.f32 %v1888, %v2084
        %v2097 = vmul.f32 %v1889, %v2086
        %v2098 = vmul.f32 %v1890, %v2088
        %v2099 = vmul.f32 %v1891, %v2090
        %v2100 = vmul.f32 %v1892, %v2092
        %v2101 = vmul.f32 %v1893, %v2078
        %v2102 = vmul.f32 %v1894, %v2080
        %v2103 = vmul.f32 %v1895, %v2082
        %v2104 = vmul.f32 %v1896, %v2084
        %v2105 = vmul.f32 %v1897, %v2086
        %v2106 = vmul.f32 %v1898, %v2088
        %v2107 = vmul.f32 %v1899, %v2090
        %v2108 = vmul.f32 %v1900, %v2092
        %v2117 = vrot.slane %v2094, 7
        %v2118 = vsel %vm1839, %v2117, %v2093
        %v2119 = vrot.slane %v2095, 6
        %v2120 = vsel %vm1841, %v2119, %v2118
        %v2121 = vrot.slane %v2096, 5
        %v2122 = vsel %vm1843, %v2121, %v2120
        %v2123 = vrot.slane %v2097, 4
        %v2124 = vsel %vm1845, %v2123, %v2122
        %v2125 = vrot.slane %v2098, 3
        %v2126 = vsel %vm1847, %v2125, %v2124
        %v2127 = vrot.slane %v2099, 2
        %v2128 = vsel %vm1849, %v2127, %v2126
        %v2129 = vrot.slane %v2100, 1
        %v2130 = vsel %vm1851, %v2129, %v2128
        %v2140 = vrot.slane %v2102, 7
        %v2141 = vsel %vm1839, %v2140, %v2101
        %v2142 = vrot.slane %v2103, 6
        %v2143 = vsel %vm1841, %v2142, %v2141
        %v2144 = vrot.slane %v2104, 5
        %v2145 = vsel %vm1843, %v2144, %v2143
        %v2146 = vrot.slane %v2105, 4
        %v2147 = vsel %vm1845, %v2146, %v2145
        %v2148 = vrot.slane %v2106, 3
        %v2149 = vsel %vm1847, %v2148, %v2147
        %v2150 = vrot.slane %v2107, 2
        %v2151 = vsel %vm1849, %v2150, %v2149
        %v2152 = vrot.slane %v2108, 1
        %v2153 = vsel %vm1851, %v2152, %v2151
        %2154 = vrot.lane.b32.xlu0 %v2153, 1
        %v2155 = vpop.permute.xlu0 %2154
        %v2157 = vsel %vm1444, %v2130, %v2155
        %v2158 = vadd.f32 %v719, %v2157
        %vm2159 = vcmask 15360
        %2160 = vst.msk [vmem:[%s651] sm:$0xff] %vm2159, %v2158
        %s2161 = sand.u32 %s363, 1
        %s2162 = scalar_lea.sflag [#allocation3], %s2161
        %s2163 = sand.u32 %s363, 1
        %s2164 = smul.addr %s2163, 8
        %s2165 = scalar_lea.vmem [#allocation2], %s2164
        %s2166 = sand.u32 %s32, 1
        %s2167 = scalar_lea.sflag [#allocation5], %s2166
        %s2168 = sand.u32 %s391, 1
        %s2169 = smul.addr %s2168, 32
        %s2170 = scalar_lea.vmem [#allocation4], %s2169
        %s2171 = sand.u32 %s32, 1
        %s2172 = scalar_lea.sflag [#allocation5], %s2171
        %s2173 = sand.u32 %s419, 1
        %s2174 = smul.addr %s2173, 8
        %s2175 = scalar_lea.vmem [#allocation6], %s2174
        // Predicated region
        $region69: #{gegnn_encoder_pallas.3} parent=67 // pred_check
          %p2176 = pneg %p373
        $region70: #{gegnn_encoder_pallas.3} parent=67 // pred_check_branch
          %2178 = sbr.rel (%p2176) target = $region72
        $region71: #{gegnn_encoder_pallas.3} parent=67 // pred_region
          %s2180 = ssub.s32 128, 128
          %2181 = vsyncadd %s2162, %s2180
          %s2182 = sadd.s32 %s37, %s36
          %s2183 = smul.addr %s2182, 128
          %s2184 = scalar_lea.hbm %s12, %s2183
          %s2186 = sshll.u32 %s2165, 4
          %s2187 = int_to_ptr.vmem [resolvable:$true] %s2186
          %2189 = dma.vmem_to_hbm [thread:$0]  %s2187, 128, %s2184, %s2162
        $region72: #{gegnn_encoder_pallas.3} parent=67 // pred_fallthru
          _
        // Predicated region
        $region73: #{gegnn_encoder_pallas.3} parent=67 // pred_check
          %p2190 = pneg %p401
        $region74: #{gegnn_encoder_pallas.3} parent=67 // pred_check_branch
          %2192 = sbr.rel (%p2190) target = $region76
        $region75: #{gegnn_encoder_pallas.3} parent=67 // pred_region
          %s2193 = smul.u32 8, %s37
          %s2195 = ssub.s32 512, 512
          %2196 = vsyncadd %s2167, %s2195
          %s2197 = smul.addr %s36, 8
          %s2198 = sadd.s32 %s2193, %s2197
          %s2199 = smul.addr %s2198, 64
          %s2200 = scalar_lea.hbm %s13, %s2199
          %s2201 = sshll.u32 %s2170, 4
          %s2202 = int_to_ptr.vmem [resolvable:$true] %s2201
          %2207 = dma.vmem_to_hbm [thread:$0]  %s2202, 512, %s2200, %s2167, 64, 64, 4
        $region76: #{gegnn_encoder_pallas.3} parent=67 // pred_fallthru
          _
        // Predicated region
        $region77: #{gegnn_encoder_pallas.3} parent=67 // pred_check
          %p2208 = pneg %p429
        $region78: #{gegnn_encoder_pallas.3} parent=67 // pred_check_branch
          %2210 = sbr.rel (%p2208) target = $region80
        $region79: #{gegnn_encoder_pallas.3} parent=67 // pred_region
          %s2212 = ssub.s32 128, 128
          %2213 = vsyncadd %s2172, %s2212
          %s2214 = sadd.s32 %s37, %s36
          %s2215 = smul.addr %s2214, 128
          %s2216 = scalar_lea.hbm %s14, %s2215
          %s2218 = sshll.u32 %s2175, 4
          %s2219 = int_to_ptr.vmem [resolvable:$true] %s2218
          %2221 = dma.vmem_to_hbm [thread:$0]  %s2219, 128, %s2216, %s2172
        $region80: #{gegnn_encoder_pallas.3} parent=67 // pred_fallthru
          _
      $region68: #{gegnn_encoder_pallas.3} parent=5 // pred_fallthru
        _
      %p2222 = scmp.le.s32.totalorder 2, %s27
      // Predicated region
      $region81: #{gegnn_encoder_pallas.3} parent=5 // pred_check
        %p2223 = pneg %p2222
      $region82: #{gegnn_encoder_pallas.3} parent=5 // pred_check_branch
        %2225 = sbr.rel (%p2223) target = $region84
      $region83: #{gegnn_encoder_pallas.3} parent=5 // pred_region
        %s2226 = ssub.s32 %s27, 2
        // Predicated region
        $region85: #{gegnn_encoder_pallas.3} parent=83 // pred_check
          %p2227 = pneg %p379
        $region86: #{gegnn_encoder_pallas.3} parent=83 // pred_check_branch
          %2229 = sbr.rel (%p2227) target = $region88
        $region87: #{gegnn_encoder_pallas.3} parent=83 // pred_region
          %s2230 = sand.u32 %s364, 1
          %s2231 = scalar_lea.sflag [#allocation3], %s2230
          %s2232 = sand.u32 %s364, 1
          %s2233 = smul.addr %s2232, 8
          %s2234 = scalar_lea.vmem [#allocation2], %s2233
          %2235 = dma.done %s2231, 128
        $region88: #{gegnn_encoder_pallas.3} parent=83 // pred_fallthru
          _
        // Predicated region
        $region89: #{gegnn_encoder_pallas.3} parent=83 // pred_check
          %p2236 = pneg %p407
        $region90: #{gegnn_encoder_pallas.3} parent=83 // pred_check_branch
          %2238 = sbr.rel (%p2236) target = $region92
        $region91: #{gegnn_encoder_pallas.3} parent=83 // pred_region
          %s2239 = sand.u32 %s33, 1
          %s2240 = scalar_lea.sflag [#allocation5], %s2239
          %s2241 = sand.u32 %s392, 1
          %s2242 = smul.addr %s2241, 32
          %s2243 = scalar_lea.vmem [#allocation4], %s2242
          %2244 = dma.done %s2240, 512
        $region92: #{gegnn_encoder_pallas.3} parent=83 // pred_fallthru
          _
        // Predicated region
        $region93: #{gegnn_encoder_pallas.3} parent=83 // pred_check
          %p2245 = pneg %p435
        $region94: #{gegnn_encoder_pallas.3} parent=83 // pred_check_branch
          %2247 = sbr.rel (%p2245) target = $region96
        $region95: #{gegnn_encoder_pallas.3} parent=83 // pred_region
          %s2248 = sand.u32 %s33, 1
          %s2249 = scalar_lea.sflag [#allocation5], %s2248
          %s2250 = sand.u32 %s420, 1
          %s2251 = smul.addr %s2250, 8
          %s2252 = scalar_lea.vmem [#allocation6], %s2251
          %2253 = dma.done %s2249, 128
        $region96: #{gegnn_encoder_pallas.3} parent=83 // pred_fallthru
          _
      $region84: #{gegnn_encoder_pallas.3} parent=5 // pred_fallthru
        _
    $region6: #{gegnn_encoder_pallas.3} parent=1 // loop_footer
      %s31 = sadd.s32 1, %s27
    $region7: #{gegnn_encoder_pallas.3} parent=1 // loop_footer_branch
      %26 = sbr.rel target = $region3
    $region8: #{gegnn_encoder_pallas.3} parent=1 // loop_exit
      _
    %2254 = vsyncpa [#allocation3], 1
    %s2255 = scalar_lea.sflag [#allocation3], 1
    %2256 = vsyncpa %s2255, 1
    %2257 = vsyncpa [#allocation5], 1
    %s2258 = scalar_lea.sflag [#allocation5], 1
    %2259 = vsyncpa %s2258, 1

// kernel: gegnn_encoder_pallas.2
$region0: #{gegnn_encoder_pallas.2}
  #allocation0 [shape = 'u32[]', space=smem, size = 0x4, offset = 0x4, fixed_abs, tag = 'smem constant byte address 0x4 - core index']
  #allocation1 [shape = 'u32[144,128]{1,0:T(1,128)}', space=vmem, size = 0x12000, scoped, tag = 'internal scratch']
  %s0 = inlined_call_operand.vmem [shape: f32[2,8,32], index: 0, kind: input, shape index: {}]
  %s1 = inlined_call_operand.vmem [shape: f32[2,8,32], index: 1, kind: input, shape index: {}]
  %s2 = inlined_call_operand.vmem [shape: f32[2,8,32], index: 2, kind: input, shape index: {}]
  %s3 = inlined_call_operand.vmem [shape: f32[2,8,32], index: 3, kind: input, shape index: {}]
  %s4 = inlined_call_operand.vmem [shape: f32[2,8,32], index: 4, kind: input, shape index: {}]
  %s5 = inlined_call_operand.vmem [shape: bf16[2,8,8,32], index: 5, kind: input, shape index: {}]
  %s6 = inlined_call_operand.vmem [shape: f32[2,8,2], index: 6, kind: input, shape index: {}, may-alias: {6,7}]
  %s7 = inlined_call_operand.vmem [shape: f32[2,8,2], index: 7, kind: input, shape index: {}, may-alias: {6,7}]
  %s8 = inlined_call_operand.vmem [shape: bf16[2,8,8], index: 8, kind: input, shape index: {}]
  %s9 = inlined_call_operand.vmem [shape: bf16[32,32], index: 9, kind: input, shape index: {}]
  %s10 = inlined_call_operand.vmem [shape: f32[7,32], index: 10, kind: input, shape index: {}]
  %s11 = inlined_call_operand.vmem [shape: f32[4,1], index: 11, kind: input, shape index: {}]
  %s12 = inlined_call_operand.vmem [shape: f32[2,8,32], index: 12, kind: output, shape index: {0}]
  %s13 = inlined_call_operand.vmem [shape: bf16[2,8,8,32], index: 13, kind: output, shape index: {1}]
  %s14 = inlined_call_operand.vmem [shape: f32[2,8,2], index: 14, kind: output, shape index: {2}]
  %15 = xla_tuple %s12, %s13, %s14
  %s16 = sld [smem:[#allocation0]]
  $region97: #{gegnn_encoder_pallas.2} parent=0
    _
  %s18 = ssub.s32 1, %s16
  %s19 = scalar_select 0, %s18, %s16
  loop: start=0, step=1, limit=4
  $region2: #{gegnn_encoder_pallas.2} parent=0 // loop_pre_header
    _
  $region3: #{gegnn_encoder_pallas.2} parent=0 // loop_header
    %s21 = sphi 0, %s25
    %p22 = scmp.ge.s32.totalorder %s21, 4
    %s28 = sphi 0, %s40
    %s29 = sphi 0, %s36
    %s30 = sphi 0, %s28
    %s31 = sphi 0, %s29
    %s32 = sphi 0, %s30
    %s33 = sphi 0, %s31
    %s45 = sphi 0, %s47
    %s48 = sphi 0, %s45
    %s49 = sphi 0, %s48
    %s65 = sphi 0, %s49
    %s73 = sphi 0, %s75
    %s76 = sphi 0, %s73
    %s77 = sphi 0, %s76
    %s93 = sphi 0, %s77
    %s101 = sphi 0, %s103
    %s104 = sphi 0, %s101
    %s105 = sphi 0, %s104
    %s121 = sphi 0, %s105
    %s127 = sphi 0, %s129
    %s130 = sphi 0, %s127
    %s131 = sphi 0, %s130
    %s147 = sphi 0, %s131
    %s153 = sphi 0, %s155
    %s156 = sphi 0, %s153
    %s157 = sphi 0, %s156
    %s173 = sphi 0, %s157
    %s181 = sphi 0, %s183
    %s184 = sphi 0, %s181
    %s185 = sphi 0, %s184
    %s201 = sphi 0, %s185
    %s207 = sphi 0, %s209
    %s210 = sphi 0, %s207
    %s211 = sphi 0, %s210
    %s227 = sphi 0, %s211
    %s235 = sphi 0, %s237
    %s238 = sphi 0, %s235
    %s239 = sphi 0, %s238
    %s255 = sphi 0, %s239
    %s263 = sphi 0, %s265
    %s266 = sphi 0, %s263
    %s267 = sphi 0, %s266
    %s283 = sphi 0, %s267
    %s287 = sphi 0, %s287
    %s289 = sphi 0, %s287
    %s290 = sphi 0, %s289
    %s304 = sphi 0, %s290
    %s308 = sphi 0, %s308
    %s310 = sphi 0, %s308
    %s311 = sphi 0, %s310
    %s325 = sphi 0, %s311
    %s329 = sphi 0, %s329
    %s331 = sphi 0, %s329
    %s332 = sphi 0, %s331
    %s346 = sphi 0, %s332
    %s354 = sphi 0, %s356
    %s357 = sphi 0, %s354
    %s358 = sphi 0, %s357
    %s374 = sphi 0, %s358
    %s382 = sphi 0, %s384
    %s385 = sphi 0, %s382
    %s386 = sphi 0, %s385
    %s402 = sphi 0, %s386
    %s410 = sphi 0, %s412
    %s413 = sphi 0, %s410
    %s414 = sphi 0, %s413
    %s430 = sphi 0, %s414
  $region4: #{gegnn_encoder_pallas.2} parent=0 // loop_header_branch
    %24 = sbr.rel (%p22) target = $region8
  $region5: #{gegnn_encoder_pallas.2} parent=0 // loop_body
    %s26 = ssub.s32 %s21, 1
    %s27 = ssub.s32 %s21, 2
    %s34 = sadd.s32 1, %s29
    %p35 = scmp.ge.s32.totalorder %s34, 1
    %s36 = scalar_select %p35, 0, %s34
    %s37 = sadd.s32 1, %s28
    %s38 = scalar_select %p35, %s37, %s28
    %p39 = scmp.ge.s32.totalorder %s38, 2
    %s40 = scalar_select %p39, 0, %s38
    %s41 = ssub.s32 %s28, %s40
    %s42 = ssub.s32 %s29, %s36
    %s43 = sor.u32 %s41, %s42
    %p44 = scmp.eq.s32.totalorder %s43, 0
    %s46 = sadd.s32 %s45, 1
    %s47 = scalar_select %p44, %s45, %s46
    %p50 = pneg %p44
    %p51 = scmp.eq.s32.totalorder %s21, 1
    %p52 = por %p50, %p51
    %p53 = scmp.ne.s32.totalorder %s45, %s48
    %p54 = scmp.eq.s32.totalorder %s21, 0
    %p55 = por %p53, %p54
    %p56 = scmp.ne.s32.totalorder %s45, %s48
    %p57 = scmp.eq.s32.totalorder %s26, 1
    %p58 = por %p56, %p57
    %p59 = scmp.ne.s32.totalorder %s48, %s49
    %p60 = scmp.eq.s32.totalorder %s26, 0
    %p61 = por %p59, %p60
    %p62 = scmp.ne.s32.totalorder %s48, %s49
    %p63 = scmp.eq.s32.totalorder %s27, 1
    %p64 = por %p62, %p63
    %p66 = scmp.ne.s32.totalorder %s49, %s65
    %p67 = scmp.eq.s32.totalorder %s27, 0
    %p68 = por %p66, %p67
    %s69 = ssub.s32 %s28, %s40
    %s70 = ssub.s32 %s29, %s36
    %s71 = sor.u32 %s69, %s70
    %p72 = scmp.eq.s32.totalorder %s71, 0
    %s74 = sadd.s32 %s73, 1
    %s75 = scalar_select %p72, %s73, %s74
    %p78 = pneg %p72
    %p79 = scmp.eq.s32.totalorder %s21, 1
    %p80 = por %p78, %p79
    %p81 = scmp.ne.s32.totalorder %s73, %s76
    %p82 = scmp.eq.s32.totalorder %s21, 0
    %p83 = por %p81, %p82
    %p84 = scmp.ne.s32.totalorder %s73, %s76
    %p85 = scmp.eq.s32.totalorder %s26, 1
    %p86 = por %p84, %p85
    %p87 = scmp.ne.s32.totalorder %s76, %s77
    %p88 = scmp.eq.s32.totalorder %s26, 0
    %p89 = por %p87, %p88
    %p90 = scmp.ne.s32.totalorder %s76, %s77
    %p91 = scmp.eq.s32.totalorder %s27, 1
    %p92 = por %p90, %p91
    %p94 = scmp.ne.s32.totalorder %s77, %s93
    %p95 = scmp.eq.s32.totalorder %s27, 0
    %p96 = por %p94, %p95
    %s97 = ssub.s32 %s28, %s40
    %s98 = ssub.s32 %s29, %s36
    %s99 = sor.u32 %s97, %s98
    %p100 = scmp.eq.s32.totalorder %s99, 0
    %s102 = sadd.s32 %s101, 1
    %s103 = scalar_select %p100, %s101, %s102
    %p106 = pneg %p100
    %p107 = scmp.eq.s32.totalorder %s21, 1
    %p108 = por %p106, %p107
    %p109 = scmp.ne.s32.totalorder %s101, %s104
    %p110 = scmp.eq.s32.totalorder %s21, 0
    %p111 = por %p109, %p110
    %p112 = scmp.ne.s32.totalorder %s101, %s104
    %p113 = scmp.eq.s32.totalorder %s26, 1
    %p114 = por %p112, %p113
    %p115 = scmp.ne.s32.totalorder %s104, %s105
    %p116 = scmp.eq.s32.totalorder %s26, 0
    %p117 = por %p115, %p116
    %p118 = scmp.ne.s32.totalorder %s104, %s105
    %p119 = scmp.eq.s32.totalorder %s27, 1
    %p120 = por %p118, %p119
    %p122 = scmp.ne.s32.totalorder %s105, %s121
    %p123 = scmp.eq.s32.totalorder %s27, 0
    %p124 = por %p122, %p123
    %s125 = ssub.s32 %s28, %s40
    %p126 = scmp.eq.s32.totalorder %s125, 0
    %s128 = sadd.s32 %s127, 1
    %s129 = scalar_select %p126, %s127, %s128
    %p132 = pneg %p126
    %p133 = scmp.eq.s32.totalorder %s21, 1
    %p134 = por %p132, %p133
    %p135 = scmp.ne.s32.totalorder %s127, %s130
    %p136 = scmp.eq.s32.totalorder %s21, 0
    %p137 = por %p135, %p136
    %p138 = scmp.ne.s32.totalorder %s127, %s130
    %p139 = scmp.eq.s32.totalorder %s26, 1
    %p140 = por %p138, %p139
    %p141 = scmp.ne.s32.totalorder %s130, %s131
    %p142 = scmp.eq.s32.totalorder %s26, 0
    %p143 = por %p141, %p142
    %p144 = scmp.ne.s32.totalorder %s130, %s131
    %p145 = scmp.eq.s32.totalorder %s27, 1
    %p146 = por %p144, %p145
    %p148 = scmp.ne.s32.totalorder %s131, %s147
    %p149 = scmp.eq.s32.totalorder %s27, 0
    %p150 = por %p148, %p149
    %s151 = ssub.s32 %s28, %s40
    %p152 = scmp.eq.s32.totalorder %s151, 0
    %s154 = sadd.s32 %s153, 1
    %s155 = scalar_select %p152, %s153, %s154
    %p158 = pneg %p152
    %p159 = scmp.eq.s32.totalorder %s21, 1
    %p160 = por %p158, %p159
    %p161 = scmp.ne.s32.totalorder %s153, %s156
    %p162 = scmp.eq.s32.totalorder %s21, 0
    %p163 = por %p161, %p162
    %p164 = scmp.ne.s32.totalorder %s153, %s156
    %p165 = scmp.eq.s32.totalorder %s26, 1
    %p166 = por %p164, %p165
    %p167 = scmp.ne.s32.totalorder %s156, %s157
    %p168 = scmp.eq.s32.totalorder %s26, 0
    %p169 = por %p167, %p168
    %p170 = scmp.ne.s32.totalorder %s156, %s157
    %p171 = scmp.eq.s32.totalorder %s27, 1
    %p172 = por %p170, %p171
    %p174 = scmp.ne.s32.totalorder %s157, %s173
    %p175 = scmp.eq.s32.totalorder %s27, 0
    %p176 = por %p174, %p175
    %s177 = ssub.s32 %s28, %s40
    %s178 = ssub.s32 %s29, %s36
    %s179 = sor.u32 %s177, %s178
    %p180 = scmp.eq.s32.totalorder %s179, 0
    %s182 = sadd.s32 %s181, 1
    %s183 = scalar_select %p180, %s181, %s182
    %p186 = pneg %p180
    %p187 = scmp.eq.s32.totalorder %s21, 1
    %p188 = por %p186, %p187
    %p189 = scmp.ne.s32.totalorder %s181, %s184
    %p190 = scmp.eq.s32.totalorder %s21, 0
    %p191 = por %p189, %p190
    %p192 = scmp.ne.s32.totalorder %s181, %s184
    %p193 = scmp.eq.s32.totalorder %s26, 1
    %p194 = por %p192, %p193
    %p195 = scmp.ne.s32.totalorder %s184, %s185
    %p196 = scmp.eq.s32.totalorder %s26, 0
    %p197 = por %p195, %p196
    %p198 = scmp.ne.s32.totalorder %s184, %s185
    %p199 = scmp.eq.s32.totalorder %s27, 1
    %p200 = por %p198, %p199
    %p202 = scmp.ne.s32.totalorder %s185, %s201
    %p203 = scmp.eq.s32.totalorder %s27, 0
    %p204 = por %p202, %p203
    %s205 = ssub.s32 %s28, %s40
    %p206 = scmp.eq.s32.totalorder %s205, 0
    %s208 = sadd.s32 %s207, 1
    %s209 = scalar_select %p206, %s207, %s208
    %p212 = pneg %p206
    %p213 = scmp.eq.s32.totalorder %s21, 1
    %p214 = por %p212, %p213
    %p215 = scmp.ne.s32.totalorder %s207, %s210
    %p216 = scmp.eq.s32.totalorder %s21, 0
    %p217 = por %p215, %p216
    %p218 = scmp.ne.s32.totalorder %s207, %s210
    %p219 = scmp.eq.s32.totalorder %s26, 1
    %p220 = por %p218, %p219
    %p221 = scmp.ne.s32.totalorder %s210, %s211
    %p222 = scmp.eq.s32.totalorder %s26, 0
    %p223 = por %p221, %p222
    %p224 = scmp.ne.s32.totalorder %s210, %s211
    %p225 = scmp.eq.s32.totalorder %s27, 1
    %p226 = por %p224, %p225
    %p228 = scmp.ne.s32.totalorder %s211, %s227
    %p229 = scmp.eq.s32.totalorder %s27, 0
    %p230 = por %p228, %p229
    %s231 = ssub.s32 %s28, %s40
    %s232 = ssub.s32 %s29, %s36
    %s233 = sor.u32 %s231, %s232
    %p234 = scmp.eq.s32.totalorder %s233, 0
    %s236 = sadd.s32 %s235, 1
    %s237 = scalar_select %p234, %s235, %s236
    %p240 = pneg %p234
    %p241 = scmp.eq.s32.totalorder %s21, 1
    %p242 = por %p240, %p241
    %p243 = scmp.ne.s32.totalorder %s235, %s238
    %p244 = scmp.eq.s32.totalorder %s21, 0
    %p245 = por %p243, %p244
    %p246 = scmp.ne.s32.totalorder %s235, %s238
    %p247 = scmp.eq.s32.totalorder %s26, 1
    %p248 = por %p246, %p247
    %p249 = scmp.ne.s32.totalorder %s238, %s239
    %p250 = scmp.eq.s32.totalorder %s26, 0
    %p251 = por %p249, %p250
    %p252 = scmp.ne.s32.totalorder %s238, %s239
    %p253 = scmp.eq.s32.totalorder %s27, 1
    %p254 = por %p252, %p253
    %p256 = scmp.ne.s32.totalorder %s239, %s255
    %p257 = scmp.eq.s32.totalorder %s27, 0
    %p258 = por %p256, %p257
    %s259 = ssub.s32 %s28, %s40
    %s260 = ssub.s32 %s29, %s36
    %s261 = sor.u32 %s259, %s260
    %p262 = scmp.eq.s32.totalorder %s261, 0
    %s264 = sadd.s32 %s263, 1
    %s265 = scalar_select %p262, %s263, %s264
    %p268 = pneg %p262
    %p269 = scmp.eq.s32.totalorder %s21, 1
    %p270 = por %p268, %p269
    %p271 = scmp.ne.s32.totalorder %s263, %s266
    %p272 = scmp.eq.s32.totalorder %s21, 0
    %p273 = por %p271, %p272
    %p274 = scmp.ne.s32.totalorder %s263, %s266
    %p275 = scmp.eq.s32.totalorder %s26, 1
    %p276 = por %p274, %p275
    %p277 = scmp.ne.s32.totalorder %s266, %s267
    %p278 = scmp.eq.s32.totalorder %s26, 0
    %p279 = por %p277, %p278
    %p280 = scmp.ne.s32.totalorder %s266, %s267
    %p281 = scmp.eq.s32.totalorder %s27, 1
    %p282 = por %p280, %p281
    %p284 = scmp.ne.s32.totalorder %s267, %s283
    %p285 = scmp.eq.s32.totalorder %s27, 0
    %p286 = por %p284, %p285
    %s288 = sadd.s32 %s287, 1
    %p291 = scmp.eq.s32.totalorder %s21, 1
    %p292 = scmp.ne.s32.totalorder %s287, %s289
    %p293 = scmp.eq.s32.totalorder %s21, 0
    %p294 = por %p292, %p293
    %p295 = scmp.ne.s32.totalorder %s287, %s289
    %p296 = scmp.eq.s32.totalorder %s26, 1
    %p297 = por %p295, %p296
    %p298 = scmp.ne.s32.totalorder %s289, %s290
    %p299 = scmp.eq.s32.totalorder %s26, 0
    %p300 = por %p298, %p299
    %p301 = scmp.ne.s32.totalorder %s289, %s290
    %p302 = scmp.eq.s32.totalorder %s27, 1
    %p303 = por %p301, %p302
    %p305 = scmp.ne.s32.totalorder %s290, %s304
    %p306 = scmp.eq.s32.totalorder %s27, 0
    %p307 = por %p305, %p306
    %s309 = sadd.s32 %s308, 1
    %p312 = scmp.eq.s32.totalorder %s21, 1
    %p313 = scmp.ne.s32.totalorder %s308, %s310
    %p314 = scmp.eq.s32.totalorder %s21, 0
    %p315 = por %p313, %p314
    %p316 = scmp.ne.s32.totalorder %s308, %s310
    %p317 = scmp.eq.s32.totalorder %s26, 1
    %p318 = por %p316, %p317
    %p319 = scmp.ne.s32.totalorder %s310, %s311
    %p320 = scmp.eq.s32.totalorder %s26, 0
    %p321 = por %p319, %p320
    %p322 = scmp.ne.s32.totalorder %s310, %s311
    %p323 = scmp.eq.s32.totalorder %s27, 1
    %p324 = por %p322, %p323
    %p326 = scmp.ne.s32.totalorder %s311, %s325
    %p327 = scmp.eq.s32.totalorder %s27, 0
    %p328 = por %p326, %p327
    %s330 = sadd.s32 %s329, 1
    %p333 = scmp.eq.s32.totalorder %s21, 1
    %p334 = scmp.ne.s32.totalorder %s329, %s331
    %p335 = scmp.eq.s32.totalorder %s21, 0
    %p336 = por %p334, %p335
    %p337 = scmp.ne.s32.totalorder %s329, %s331
    %p338 = scmp.eq.s32.totalorder %s26, 1
    %p339 = por %p337, %p338
    %p340 = scmp.ne.s32.totalorder %s331, %s332
    %p341 = scmp.eq.s32.totalorder %s26, 0
    %p342 = por %p340, %p341
    %p343 = scmp.ne.s32.totalorder %s331, %s332
    %p344 = scmp.eq.s32.totalorder %s27, 1
    %p345 = por %p343, %p344
    %p347 = scmp.ne.s32.totalorder %s332, %s346
    %p348 = scmp.eq.s32.totalorder %s27, 0
    %p349 = por %p347, %p348
    %s350 = ssub.s32 %s28, %s40
    %s351 = ssub.s32 %s29, %s36
    %s352 = sor.u32 %s350, %s351
    %p353 = scmp.eq.s32.totalorder %s352, 0
    %s355 = sadd.s32 %s354, 1
    %s356 = scalar_select %p353, %s354, %s355
    %p359 = pneg %p353
    %p360 = scmp.eq.s32.totalorder %s21, 1
    %p361 = por %p359, %p360
    %p362 = scmp.ne.s32.totalorder %s354, %s357
    %p363 = scmp.eq.s32.totalorder %s21, 0
    %p364 = por %p362, %p363
    %p365 = scmp.ne.s32.totalorder %s354, %s357
    %p366 = scmp.eq.s32.totalorder %s26, 1
    %p367 = por %p365, %p366
    %p368 = scmp.ne.s32.totalorder %s357, %s358
    %p369 = scmp.eq.s32.totalorder %s26, 0
    %p370 = por %p368, %p369
    %p371 = scmp.ne.s32.totalorder %s357, %s358
    %p372 = scmp.eq.s32.totalorder %s27, 1
    %p373 = por %p371, %p372
    %p375 = scmp.ne.s32.totalorder %s358, %s374
    %p376 = scmp.eq.s32.totalorder %s27, 0
    %p377 = por %p375, %p376
    %s378 = ssub.s32 %s28, %s40
    %s379 = ssub.s32 %s29, %s36
    %s380 = sor.u32 %s378, %s379
    %p381 = scmp.eq.s32.totalorder %s380, 0
    %s383 = sadd.s32 %s382, 1
    %s384 = scalar_select %p381, %s382, %s383
    %p387 = pneg %p381
    %p388 = scmp.eq.s32.totalorder %s21, 1
    %p389 = por %p387, %p388
    %p390 = scmp.ne.s32.totalorder %s382, %s385
    %p391 = scmp.eq.s32.totalorder %s21, 0
    %p392 = por %p390, %p391
    %p393 = scmp.ne.s32.totalorder %s382, %s385
    %p394 = scmp.eq.s32.totalorder %s26, 1
    %p395 = por %p393, %p394
    %p396 = scmp.ne.s32.totalorder %s385, %s386
    %p397 = scmp.eq.s32.totalorder %s26, 0
    %p398 = por %p396, %p397
    %p399 = scmp.ne.s32.totalorder %s385, %s386
    %p400 = scmp.eq.s32.totalorder %s27, 1
    %p401 = por %p399, %p400
    %p403 = scmp.ne.s32.totalorder %s386, %s402
    %p404 = scmp.eq.s32.totalorder %s27, 0
    %p405 = por %p403, %p404
    %s406 = ssub.s32 %s28, %s40
    %s407 = ssub.s32 %s29, %s36
    %s408 = sor.u32 %s406, %s407
    %p409 = scmp.eq.s32.totalorder %s408, 0
    %s411 = sadd.s32 %s410, 1
    %s412 = scalar_select %p409, %s410, %s411
    %p415 = pneg %p409
    %p416 = scmp.eq.s32.totalorder %s21, 1
    %p417 = por %p415, %p416
    %p418 = scmp.ne.s32.totalorder %s410, %s413
    %p419 = scmp.eq.s32.totalorder %s21, 0
    %p420 = por %p418, %p419
    %p421 = scmp.ne.s32.totalorder %s410, %s413
    %p422 = scmp.eq.s32.totalorder %s26, 1
    %p423 = por %p421, %p422
    %p424 = scmp.ne.s32.totalorder %s413, %s414
    %p425 = scmp.eq.s32.totalorder %s26, 0
    %p426 = por %p424, %p425
    %p427 = scmp.ne.s32.totalorder %s413, %s414
    %p428 = scmp.eq.s32.totalorder %s27, 1
    %p429 = por %p427, %p428
    %p431 = scmp.ne.s32.totalorder %s414, %s430
    %p432 = scmp.eq.s32.totalorder %s27, 0
    %p433 = por %p431, %p432
    %p434 = scmp.le.s32.totalorder 1, %s21
    %p435 = scmp.lt.s32.totalorder %s21, 3
    %p436 = pnand %p434, %p435
    %p437 = pneg %p436
    // Predicated region
    $region9: #{gegnn_encoder_pallas.2} parent=5 // pred_check
      _
    $region10: #{gegnn_encoder_pallas.2} parent=5 // pred_check_branch
      %439 = sbr.rel (%p436) target = $region12
    $region11: #{gegnn_encoder_pallas.2} parent=5 // pred_region
      %s440 = ssub.s32 %s21, 1
      // Predicated region
      $region13: #{gegnn_encoder_pallas.2} parent=11 // pred_check
        %p441 = pneg %p300
      $region14: #{gegnn_encoder_pallas.2} parent=11 // pred_check_branch
        %443 = sbr.rel (%p441) target = $region16
      $region15: #{gegnn_encoder_pallas.2} parent=11 // pred_region
        _
      $region16: #{gegnn_encoder_pallas.2} parent=11 // pred_fallthru
        _
      // Predicated region
      $region17: #{gegnn_encoder_pallas.2} parent=11 // pred_check
        %p444 = pneg %p321
      $region18: #{gegnn_encoder_pallas.2} parent=11 // pred_check_branch
        %446 = sbr.rel (%p444) target = $region20
      $region19: #{gegnn_encoder_pallas.2} parent=11 // pred_region
        _
      $region20: #{gegnn_encoder_pallas.2} parent=11 // pred_fallthru
        _
      // Predicated region
      $region21: #{gegnn_encoder_pallas.2} parent=11 // pred_check
        %p447 = pneg %p342
      $region22: #{gegnn_encoder_pallas.2} parent=11 // pred_check_branch
        %449 = sbr.rel (%p447) target = $region24
      $region23: #{gegnn_encoder_pallas.2} parent=11 // pred_region
        _
      $region24: #{gegnn_encoder_pallas.2} parent=11 // pred_fallthru
        _
    $region12: #{gegnn_encoder_pallas.2} parent=5 // pred_fallthru
      _
    %p450 = scmp.lt.s32.totalorder %s21, 2
    // Predicated region
    $region25: #{gegnn_encoder_pallas.2} parent=5 // pred_check
      %p451 = pneg %p450
    $region26: #{gegnn_encoder_pallas.2} parent=5 // pred_check_branch
      %453 = sbr.rel (%p451) target = $region28
    $region27: #{gegnn_encoder_pallas.2} parent=5 // pred_region
      // Predicated region
      $region29: #{gegnn_encoder_pallas.2} parent=27 // pred_check
        %p454 = pneg %p55
      $region30: #{gegnn_encoder_pallas.2} parent=27 // pred_check_branch
        %456 = sbr.rel (%p454) target = $region32
      $region31: #{gegnn_encoder_pallas.2} parent=27 // pred_region
        %p457 = scmp.lt.s32.totalorder %s28, 1
        %s458 = scalar_select %p457, %s28, 1
        %p459 = scmp.lt.s32.totalorder %s29, 0
        %s460 = scalar_select %p459, %s29, 0
        %s461 = sadd.s32 %s460, %s458
        %s462 = smul.addr %s461, 8
        %s463 = scalar_lea.vmem %s0, %s462
      $region32: #{gegnn_encoder_pallas.2} parent=27 // pred_fallthru
        _
      // Predicated region
      $region33: #{gegnn_encoder_pallas.2} parent=27 // pred_check
        %p464 = pneg %p83
      $region34: #{gegnn_encoder_pallas.2} parent=27 // pred_check_branch
        %466 = sbr.rel (%p464) target = $region36
      $region35: #{gegnn_encoder_pallas.2} parent=27 // pred_region
        %p467 = scmp.lt.s32.totalorder %s28, 1
        %s468 = scalar_select %p467, %s28, 1
        %p469 = scmp.lt.s32.totalorder %s29, 0
        %s470 = scalar_select %p469, %s29, 0
        %s471 = sadd.s32 %s470, %s468
        %s472 = smul.addr %s471, 8
        %s473 = scalar_lea.vmem %s1, %s472
      $region36: #{gegnn_encoder_pallas.2} parent=27 // pred_fallthru
        _
      // Predicated region
      $region37: #{gegnn_encoder_pallas.2} parent=27 // pred_check
        %p474 = pneg %p111
      $region38: #{gegnn_encoder_pallas.2} parent=27 // pred_check_branch
        %476 = sbr.rel (%p474) target = $region40
      $region39: #{gegnn_encoder_pallas.2} parent=27 // pred_region
        %p477 = scmp.lt.s32.totalorder %s28, 1
        %s478 = scalar_select %p477, %s28, 1
        %p479 = scmp.lt.s32.totalorder %s29, 0
        %s480 = scalar_select %p479, %s29, 0
        %s481 = sadd.s32 %s480, %s478
        %s482 = smul.addr %s481, 8
        %s483 = scalar_lea.vmem %s2, %s482
      $region40: #{gegnn_encoder_pallas.2} parent=27 // pred_fallthru
        _
      // Predicated region
      $region41: #{gegnn_encoder_pallas.2} parent=27 // pred_check
        %p484 = pneg %p137
      $region42: #{gegnn_encoder_pallas.2} parent=27 // pred_check_branch
        %486 = sbr.rel (%p484) target = $region44
      $region43: #{gegnn_encoder_pallas.2} parent=27 // pred_region
        %p487 = scmp.lt.s32.totalorder %s28, 1
        %s488 = scalar_select %p487, %s28, 1
        %s489 = smul.addr %s488, 8
        %s490 = scalar_lea.vmem %s3, %s489
      $region44: #{gegnn_encoder_pallas.2} parent=27 // pred_fallthru
        _
      // Predicated region
      $region45: #{gegnn_encoder_pallas.2} parent=27 // pred_check
        %p491 = pneg %p163
      $region46: #{gegnn_encoder_pallas.2} parent=27 // pred_check_branch
        %493 = sbr.rel (%p491) target = $region48
      $region47: #{gegnn_encoder_pallas.2} parent=27 // pred_region
        %p494 = scmp.lt.s32.totalorder %s28, 1
        %s495 = scalar_select %p494, %s28, 1
        %s496 = smul.addr %s495, 8
        %s497 = scalar_lea.vmem %s4, %s496
      $region48: #{gegnn_encoder_pallas.2} parent=27 // pred_fallthru
        _
      // Predicated region
      $region49: #{gegnn_encoder_pallas.2} parent=27 // pred_check
        %p498 = pneg %p191
      $region50: #{gegnn_encoder_pallas.2} parent=27 // pred_check_branch
        %500 = sbr.rel (%p498) target = $region52
      $region51: #{gegnn_encoder_pallas.2} parent=27 // pred_region
        %s501 = smul.u32 8, %s29
        %p502 = scmp.lt.s32.totalorder %s28, 1
        %s503 = scalar_select %p502, %s28, 1
        %p504 = scmp.lt.s32.totalorder %s501, 7
        %s505 = scalar_select %p504, %s501, 7
        %s506 = smul.addr %s503, 8
        %s507 = sadd.s32 %s505, %s506
        %s508 = smul.addr %s507, 4
        %s509 = scalar_lea.vmem %s5, %s508
        %s510 = smul.u32 8, %s29
      $region52: #{gegnn_encoder_pallas.2} parent=27 // pred_fallthru
        _
      // Predicated region
      $region53: #{gegnn_encoder_pallas.2} parent=27 // pred_check
        %p511 = pneg %p217
      $region54: #{gegnn_encoder_pallas.2} parent=27 // pred_check_branch
        %513 = sbr.rel (%p511) target = $region56
      $region55: #{gegnn_encoder_pallas.2} parent=27 // pred_region
        %p514 = scmp.lt.s32.totalorder %s28, 1
        %s515 = scalar_select %p514, %s28, 1
        %s516 = smul.addr %s515, 8
        %s517 = scalar_lea.vmem %s6, %s516
      $region56: #{gegnn_encoder_pallas.2} parent=27 // pred_fallthru
        _
      // Predicated region
      $region57: #{gegnn_encoder_pallas.2} parent=27 // pred_check
        %p518 = pneg %p245
      $region58: #{gegnn_encoder_pallas.2} parent=27 // pred_check_branch
        %520 = sbr.rel (%p518) target = $region60
      $region59: #{gegnn_encoder_pallas.2} parent=27 // pred_region
        %p521 = scmp.lt.s32.totalorder %s28, 1
        %s522 = scalar_select %p521, %s28, 1
        %p523 = scmp.lt.s32.totalorder %s29, 0
        %s524 = scalar_select %p523, %s29, 0
        %s525 = sadd.s32 %s524, %s522
        %s526 = smul.addr %s525, 8
        %s527 = scalar_lea.vmem %s7, %s526
      $region60: #{gegnn_encoder_pallas.2} parent=27 // pred_fallthru
        _
      // Predicated region
      $region61: #{gegnn_encoder_pallas.2} parent=27 // pred_check
        %p528 = pneg %p273
      $region62: #{gegnn_encoder_pallas.2} parent=27 // pred_check_branch
        %530 = sbr.rel (%p528) target = $region64
      $region63: #{gegnn_encoder_pallas.2} parent=27 // pred_region
        %p531 = scmp.lt.s32.totalorder %s28, 1
        %s532 = scalar_select %p531, %s28, 1
        %p533 = scmp.lt.s32.totalorder %s29, 0
        %s534 = scalar_select %p533, %s29, 0
        %s535 = sadd.s32 %s534, %s532
        %s536 = smul.addr %s535, 4
        %s537 = scalar_lea.vmem %s8, %s536
      $region64: #{gegnn_encoder_pallas.2} parent=27 // pred_fallthru
        _
    $region28: #{gegnn_encoder_pallas.2} parent=5 // pred_fallthru
      _
    %p538 = scmp.le.s32.totalorder 1, %s21
    %p539 = scmp.lt.s32.totalorder %s21, 3
    %p540 = pnand %p538, %p539
    %p541 = pneg %p540
    // Predicated region
    $region65: #{gegnn_encoder_pallas.2} parent=5 // pred_check
      _
    $region66: #{gegnn_encoder_pallas.2} parent=5 // pred_check_branch
      %543 = sbr.rel (%p540) target = $region68
    $region67: #{gegnn_encoder_pallas.2} parent=5 // pred_region
      %s544 = ssub.s32 %s21, 1
      %p545 = scmp.lt.s32.totalorder %s30, 1
      %s546 = scalar_select %p545, %s30, 1
      %p547 = scmp.lt.s32.totalorder %s31, 0
      %s548 = scalar_select %p547, %s31, 0
      %s549 = sadd.s32 %s548, %s546
      %s550 = smul.addr %s549, 8
      %s551 = scalar_lea.vmem %s0, %s550
      %p552 = pneg %p61
      %p553 = pneg %p58
      %p554 = scmp.lt.s32.totalorder %s30, 1
      %s555 = scalar_select %p554, %s30, 1
      %p556 = scmp.lt.s32.totalorder %s31, 0
      %s557 = scalar_select %p556, %s31, 0
      %s558 = sadd.s32 %s557, %s555
      %s559 = smul.addr %s558, 8
      %s560 = scalar_lea.vmem %s1, %s559
      %p561 = pneg %p89
      %p562 = pneg %p86
      %p563 = scmp.lt.s32.totalorder %s30, 1
      %s564 = scalar_select %p563, %s30, 1
      %p565 = scmp.lt.s32.totalorder %s31, 0
      %s566 = scalar_select %p565, %s31, 0
      %s567 = sadd.s32 %s566, %s564
      %s568 = smul.addr %s567, 8
      %s569 = scalar_lea.vmem %s2, %s568
      %p570 = pneg %p117
      %p571 = pneg %p114
      %p572 = scmp.lt.s32.totalorder %s30, 1
      %s573 = scalar_select %p572, %s30, 1
      %s574 = smul.addr %s573, 8
      %s575 = scalar_lea.vmem %s3, %s574
      %p576 = pneg %p143
      %p577 = pneg %p140
      %p578 = scmp.lt.s32.totalorder %s30, 1
      %s579 = scalar_select %p578, %s30, 1
      %s580 = smul.addr %s579, 8
      %s581 = scalar_lea.vmem %s4, %s580
      %p582 = pneg %p169
      %p583 = pneg %p166
      %s584 = smul.u32 8, %s31
      %p585 = scmp.lt.s32.totalorder %s30, 1
      %s586 = scalar_select %p585, %s30, 1
      %p587 = scmp.lt.s32.totalorder %s584, 7
      %s588 = scalar_select %p587, %s584, 7
      %s589 = smul.addr %s586, 8
      %s590 = sadd.s32 %s588, %s589
      %s591 = smul.addr %s590, 4
      %s592 = scalar_lea.vmem %s5, %s591
      %p593 = pneg %p197
      %p594 = pneg %p194
      %p595 = scmp.lt.s32.totalorder %s30, 1
      %s596 = scalar_select %p595, %s30, 1
      %s597 = smul.addr %s596, 8
      %s598 = scalar_lea.vmem %s6, %s597
      %p599 = pneg %p223
      %p600 = pneg %p220
      %p601 = scmp.lt.s32.totalorder %s30, 1
      %s602 = scalar_select %p601, %s30, 1
      %p603 = scmp.lt.s32.totalorder %s31, 0
      %s604 = scalar_select %p603, %s31, 0
      %s605 = sadd.s32 %s604, %s602
      %s606 = smul.addr %s605, 8
      %s607 = scalar_lea.vmem %s7, %s606
      %p608 = pneg %p251
      %p609 = pneg %p248
      %p610 = scmp.lt.s32.totalorder %s30, 1
      %s611 = scalar_select %p610, %s30, 1
      %p612 = scmp.lt.s32.totalorder %s31, 0
      %s613 = scalar_select %p612, %s31, 0
      %s614 = sadd.s32 %s613, %s611
      %s615 = smul.addr %s614, 4
      %s616 = scalar_lea.vmem %s8, %s615
      %p617 = pneg %p279
      %p618 = pneg %p276
      %p619 = pneg %p300
      %p620 = pneg %p297
      %p621 = pneg %p321
      %p622 = pneg %p318
      %p623 = pneg %p342
      %p624 = pneg %p339
      %p625 = pneg %p370
      %p626 = pneg %p367
      %p627 = scmp.lt.s32.totalorder %s30, 1
      %s628 = scalar_select %p627, %s30, 1
      %p629 = scmp.lt.s32.totalorder %s31, 0
      %s630 = scalar_select %p629, %s31, 0
      %s631 = sadd.s32 %s630, %s628
      %s632 = smul.addr %s631, 8
      %s633 = scalar_lea.vmem %s12, %s632
      %p634 = pneg %p398
      %p635 = pneg %p395
      %s636 = smul.u32 8, %s31
      %p637 = scmp.lt.s32.totalorder %s30, 1
      %s638 = scalar_select %p637, %s30, 1
      %p639 = scmp.lt.s32.totalorder %s636, 7
      %s640 = scalar_select %p639, %s636, 7
      %s641 = smul.addr %s638, 8
      %s642 = sadd.s32 %s640, %s641
      %s643 = smul.addr %s642, 4
      %s644 = scalar_lea.vmem %s13, %s643
      %p645 = pneg %p426
      %p646 = pneg %p423
      %p647 = scmp.lt.s32.totalorder %s30, 1
      %s648 = scalar_select %p647, %s30, 1
      %p649 = scmp.lt.s32.totalorder %s31, 0
      %s650 = scalar_select %p649, %s31, 0
      %s651 = sadd.s32 %s650, %s648
      %s652 = smul.addr %s651, 8
      %s653 = scalar_lea.vmem %s14, %s652
      %p654 = scmp.lt.s32.totalorder %s30, 1
      %s655 = scalar_select %p654, %s30, 1
      %p656 = scmp.lt.s32.totalorder %s31, 0
      %s657 = scalar_select %p656, %s31, 0
      %s658 = sadd.s32 %s657, %s655
      %s659 = smul.addr %s658, 8
      %s660 = scalar_lea.vmem %s0, %s659
      %p661 = scmp.lt.s32.totalorder %s30, 1
      %s662 = scalar_select %p661, %s30, 1
      %p663 = scmp.lt.s32.totalorder %s31, 0
      %s664 = scalar_select %p663, %s31, 0
      %s665 = sadd.s32 %s664, %s662
      %s666 = smul.addr %s665, 8
      %s667 = scalar_lea.vmem %s1, %s666
      %p668 = scmp.lt.s32.totalorder %s30, 1
      %s669 = scalar_select %p668, %s30, 1
      %p670 = scmp.lt.s32.totalorder %s31, 0
      %s671 = scalar_select %p670, %s31, 0
      %s672 = sadd.s32 %s671, %s669
      %s673 = smul.addr %s672, 8
      %s674 = scalar_lea.vmem %s2, %s673
      %p675 = scmp.lt.s32.totalorder %s30, 1
      %s676 = scalar_select %p675, %s30, 1
      %s677 = smul.addr %s676, 8
      %s678 = scalar_lea.vmem %s3, %s677
      %p679 = scmp.lt.s32.totalorder %s30, 1
      %s680 = scalar_select %p679, %s30, 1
      %s681 = smul.addr %s680, 8
      %s682 = scalar_lea.vmem %s4, %s681
      %s683 = smul.u32 8, %s31
      %p684 = scmp.lt.s32.totalorder %s30, 1
      %s685 = scalar_select %p684, %s30, 1
      %p686 = scmp.lt.s32.totalorder %s683, 7
      %s687 = scalar_select %p686, %s683, 7
      %s688 = smul.addr %s685, 8
      %s689 = sadd.s32 %s687, %s688
      %s690 = smul.addr %s689, 4
      %s691 = scalar_lea.vmem %s5, %s690
      %s692 = smul.u32 8, %s31
      %p693 = scmp.lt.s32.totalorder %s30, 1
      %s694 = scalar_select %p693, %s30, 1
      %s695 = smul.addr %s694, 8
      %s696 = scalar_lea.vmem %s6, %s695
      %p697 = scmp.lt.s32.totalorder %s30, 1
      %s698 = scalar_select %p697, %s30, 1
      %p699 = scmp.lt.s32.totalorder %s31, 0
      %s700 = scalar_select %p699, %s31, 0
      %s701 = sadd.s32 %s700, %s698
      %s702 = smul.addr %s701, 8
      %s703 = scalar_lea.vmem %s7, %s702
      %p704 = scmp.lt.s32.totalorder %s30, 1
      %s705 = scalar_select %p704, %s30, 1
      %p706 = scmp.lt.s32.totalorder %s31, 0
      %s707 = scalar_select %p706, %s31, 0
      %s708 = sadd.s32 %s707, %s705
      %s709 = smul.addr %s708, 4
      %s710 = scalar_lea.vmem %s8, %s709
      %p711 = scmp.lt.s32.totalorder %s30, 1
      %s712 = scalar_select %p711, %s30, 1
      %p713 = scmp.lt.s32.totalorder %s31, 0
      %s714 = scalar_select %p713, %s31, 0
      %s715 = sadd.s32 %s714, %s712
      %s716 = smul.addr %s715, 8
      %s717 = scalar_lea.vmem %s12, %s716
      %s718 = smul.u32 8, %s31
      %p719 = scmp.lt.s32.totalorder %s30, 1
      %s720 = scalar_select %p719, %s30, 1
      %p721 = scmp.lt.s32.totalorder %s718, 7
      %s722 = scalar_select %p721, %s718, 7
      %s723 = smul.addr %s720, 8
      %s724 = sadd.s32 %s722, %s723
      %s725 = smul.addr %s724, 4
      %s726 = scalar_lea.vmem %s13, %s725
      %s727 = smul.u32 8, %s31
      %p728 = scmp.lt.s32.totalorder %s30, 1
      %s729 = scalar_select %p728, %s30, 1
      %p730 = scmp.lt.s32.totalorder %s31, 0
      %s731 = scalar_select %p730, %s31, 0
      %s732 = sadd.s32 %s731, %s729
      %s733 = smul.addr %s732, 8
      %s734 = scalar_lea.vmem %s14, %s733
      %v736 = vld [vmem:[%s10] sm:$0x7f]
      %v737 = vld [vmem:[%s11] sm:$0xf]
      %v738 = vld [vmem:[%s660] sm:$0xff]
      %v739 = vld [vmem:[%s667] sm:$0xff]
      %v740 = vld [vmem:[%s674] sm:$0xff]
      %v741 = vld [vmem:[%s678] sm:$0xff]
      %v742 = vld [vmem:[%s682] sm:$0xff]
      %v743 = vld [vmem:[%s696] sm:$0xff]
      %v744 = vld [vmem:[%s703] sm:$0xff]
      %v745 = vld [vmem:[%s691] sm:$0xf]
      %v746 = vld [vmem:[%s691 + $0x4] sm:$0xf]
      %v747 = vld [vmem:[%s691 + $0x8] sm:$0xf]
      %v748 = vld [vmem:[%s691 + $0xc] sm:$0xf]
      %v749 = vld [vmem:[%s691 + $0x10] sm:$0xf]
      %v750 = vld [vmem:[%s691 + $0x14] sm:$0xf]
      %v751 = vld [vmem:[%s691 + $0x18] sm:$0xf]
      %v752 = vld [vmem:[%s691 + $0x1c] sm:$0xf]
      %v753 = vld [vmem:[%s710] sm:$0xf]
      %v754 = vunpack.c.l.bf16 %v753
      %v755 = vld [vmem:[%s9] sm:$0xf]
      %v756 = vld [vmem:[%s9 + $0x4] sm:$0xf]
      %v757 = vld [vmem:[%s9 + $0x8] sm:$0xf]
      %v758 = vld [vmem:[%s9 + $0xc] sm:$0xf]
      %v767 = vunpack.c.l.b16 %v745
      %v768 = vunpack.c.l.b16 %v746
      %v769 = vunpack.c.l.b16 %v747
      %v770 = vunpack.c.l.b16 %v748
      %v771 = vunpack.c.l.b16 %v749
      %v772 = vunpack.c.l.b16 %v750
      %v773 = vunpack.c.l.b16 %v751
      %v774 = vunpack.c.l.b16 %v752
      %v775 = vpack.c.b16 %v768, %v767
      %v776 = vpack.c.b16 %v770, %v769
      %v777 = vpack.c.b16 %v772, %v771
      %v778 = vpack.c.b16 %v774, %v773
      %v783 = vunpack.c.l.b16 %v755
      %v784 = vunpack.c.l.b16 %v756
      %v785 = vunpack.c.l.b16 %v757
      %v786 = vunpack.c.l.b16 %v758
      %v787 = vpack.c.b16 %v784, %v783
      %v788 = vpack.c.b16 %v786, %v785
      %vm791 = vcmask 261120
      %v793 = vsel %vm791, %v775, 0
      %v796 = vsel %vm791, %v776, 0
      %v799 = vsel %vm791, %v777, 0
      %v802 = vsel %vm791, %v778, 0
      %804 = vmatprep.subr.bf16.mxu0 0
      %805 = vmatpush1.bf16.msra.mxu0 %v787
      %806 = vmatprep.subr.bf16.mxu0 0
      %807 = vmatpush1.bf16.msra.mxu0 %v788
      %808 = vmatprep.subr.bf16.mxu0 0
      %809 = vmatpush1.bf16.msra.mxu0 0
      %810 = vmatprep.subr.bf16.mxu0 0
      %811 = vmatpush1.bf16.msra.mxu0 0
      %812 = vmatprep.subr.bf16.mxu0 0
      %813 = vmatpush1.bf16.msra.mxu0 0
      %814 = vmatprep.subr.bf16.mxu0 0
      %815 = vmatpush1.bf16.msra.mxu0 0
      %816 = vmatprep.subr.bf16.mxu0 0
      %817 = vmatpush1.bf16.msra.mxu0 0
      %818 = vmatprep.subr.bf16.mxu0 0
      %819 = vmatpush1.bf16.msra.mxu0 0
      %820 = vmatprep.subr.bf16.mxu0 0
      %821 = vmatpush1.bf16.msra.mxu0 0
      %822 = vmatprep.subr.bf16.mxu0 0
      %823 = vmatpush1.bf16.msra.mxu0 0
      %824 = vmatprep.subr.bf16.mxu0 0
      %825 = vmatpush1.bf16.msra.mxu0 0
      %826 = vmatprep.subr.bf16.mxu0 0
      %827 = vmatpush1.bf16.msra.mxu0 0
      %828 = vmatprep.subr.bf16.mxu0 0
      %829 = vmatpush1.bf16.msra.mxu0 0
      %830 = vmatprep.subr.bf16.mxu0 0
      %831 = vmatpush1.bf16.msra.mxu0 0
      %832 = vmatprep.subr.bf16.mxu0 0
      %833 = vmatpush1.bf16.msra.mxu0 0
      %834 = vmatprep.subr.bf16.mxu0 0
      %835 = vmatpush1.bf16.msra.mxu0 0
      %836 = vmatprep.mubr.bf16.mxu0 0
      %837 = vmatmul.mubr.bf16.gmra.mrb[0].mxu0 %v793
      %v838 = vpop.f32.mrb[0].mxu0
      %v839 = vadd.f32 0.0, %v838
      %v840 = vpop.f32.mrb[0].mxu0
      %v841 = vpop.f32.mrb[0].mxu0
      %v842 = vadd.f32 0.0, %v841
      %v843 = vpop.f32.mrb[0].mxu0
      %844 = vmatprep.mubr.bf16.mxu0 0
      %845 = vmatmul.mubr.bf16.gmra.mrb[0].mxu0 %v796
      %v846 = vpop.f32.mrb[0].mxu0
      %v847 = vadd.f32 0.0, %v846
      %v848 = vpop.f32.mrb[0].mxu0
      %v849 = vpop.f32.mrb[0].mxu0
      %v850 = vadd.f32 0.0, %v849
      %v851 = vpop.f32.mrb[0].mxu0
      %852 = vmatprep.mubr.bf16.mxu0 0
      %853 = vmatmul.mubr.bf16.gmra.mrb[0].mxu0 %v799
      %v854 = vpop.f32.mrb[0].mxu0
      %v855 = vadd.f32 0.0, %v854
      %v856 = vpop.f32.mrb[0].mxu0
      %v857 = vpop.f32.mrb[0].mxu0
      %v858 = vadd.f32 0.0, %v857
      %v859 = vpop.f32.mrb[0].mxu0
      %860 = vmatprep.mubr.bf16.mxu0 0
      %861 = vmatmul.mubr.bf16.gmra.mrb[0].mxu0 %v802
      %v862 = vpop.f32.mrb[0].mxu0
      %v863 = vadd.f32 0.0, %v862
      %v864 = vpop.f32.mrb[0].mxu0
      %v865 = vpop.f32.mrb[0].mxu0
      %v866 = vadd.f32 0.0, %v865
      %v867 = vpop.f32.mrb[0].mxu0
      %868 = vdwg.mxu0
      %v870 = vcombine.high %v744, %v744
      %v872 = vunpack.c.l.s4 1966171168
      %v873 = vunpack.c.0.s8 %v872
      %v874 = vlaneseq
      %v875 = vshrl.u32 %v874, 7
      %v876 = vsub.s32 %v873, %v875
      %v877 = vrot.slane %v744, %v876
      %v879 = vunpack.c.l.s4 1966171168
      %v880 = vunpack.c.0.s8 %v879
      %v881 = vlaneseq
      %v882 = vshrl.u32 %v881, 7
      %v883 = vsub.s32 %v880, %v882
      %v884 = vrot.slane %v870, %v883
      %v885 = vcombine.high %v877, %v877
      %v886 = vcombine.high %v884, %v884
      %v888 = vunpack.c.l.s4 1966171168
      %v889 = vunpack.c.0.s8 %v888
      %v890 = vlaneseq
      %v891 = vshrl.u32 %v890, 7
      %v892 = vsub.s32 %v889, %v891
      %v893 = vrot.slane %v877, %v892
      %v895 = vunpack.c.l.s4 1966171168
      %v896 = vunpack.c.0.s8 %v895
      %v897 = vlaneseq
      %v898 = vshrl.u32 %v897, 7
      %v899 = vsub.s32 %v896, %v898
      %v900 = vrot.slane %v884, %v899
      %v902 = vunpack.c.l.s4 1966171168
      %v903 = vunpack.c.0.s8 %v902
      %v904 = vlaneseq
      %v905 = vshrl.u32 %v904, 7
      %v906 = vsub.s32 %v903, %v905
      %v907 = vrot.slane %v885, %v906
      %v909 = vunpack.c.l.s4 1966171168
      %v910 = vunpack.c.0.s8 %v909
      %v911 = vlaneseq
      %v912 = vshrl.u32 %v911, 7
      %v913 = vsub.s32 %v910, %v912
      %v914 = vrot.slane %v886, %v913
      %v915 = vcombine.high %v893, %v893
      %v916 = vcombine.high %v900, %v900
      %v917 = vcombine.high %v907, %v907
      %v918 = vcombine.high %v914, %v914
      %v919 = vlaneseq
      %v920 = vshrl.u32 %v919, 7
      %v921 = vsub.s32 0, %v920
      %v922 = vrot.slane %v893, %v921
      %v923 = vlaneseq
      %v924 = vshrl.u32 %v923, 7
      %v925 = vsub.s32 0, %v924
      %v926 = vrot.slane %v907, %v925
      %v927 = vlaneseq
      %v928 = vshrl.u32 %v927, 7
      %v929 = vsub.s32 0, %v928
      %v930 = vrot.slane %v915, %v929
      %v931 = vlaneseq
      %v932 = vshrl.u32 %v931, 7
      %v933 = vsub.s32 0, %v932
      %v934 = vrot.slane %v917, %v933
      %v935 = vlaneseq
      %v936 = vshrl.u32 %v935, 7
      %v937 = vsub.s32 0, %v936
      %v938 = vrot.slane %v900, %v937
      %v939 = vlaneseq
      %v940 = vshrl.u32 %v939, 7
      %v941 = vsub.s32 0, %v940
      %v942 = vrot.slane %v914, %v941
      %v943 = vlaneseq
      %v944 = vshrl.u32 %v943, 7
      %v945 = vsub.s32 0, %v944
      %v946 = vrot.slane %v916, %v945
      %v947 = vlaneseq
      %v948 = vshrl.u32 %v947, 7
      %v949 = vsub.s32 0, %v948
      %v950 = vrot.slane %v918, %v949
      %v959 = vsub.f32 %v922, %v743
      %v960 = vsub.f32 %v926, %v743
      %v961 = vsub.f32 %v930, %v743
      %v962 = vsub.f32 %v934, %v743
      %v963 = vsub.f32 %v938, %v743
      %v964 = vsub.f32 %v942, %v743
      %v965 = vsub.f32 %v946, %v743
      %v966 = vsub.f32 %v950, %v743
      %v967 = vmul.f32 %v959, %v959
      %v968 = vmul.f32 %v960, %v960
      %v969 = vmul.f32 %v961, %v961
      %v970 = vmul.f32 %v962, %v962
      %v971 = vmul.f32 %v963, %v963
      %v972 = vmul.f32 %v964, %v964
      %v973 = vmul.f32 %v965, %v965
      %v974 = vmul.f32 %v966, %v966
      %983 = vrot.lane.b32.xlu0 %v967, 127
      %v984 = vpop.permute.xlu0 %983
      %985 = vrot.lane.b32.xlu0 %v968, 127
      %v986 = vpop.permute.xlu0 %985
      %987 = vrot.lane.b32.xlu0 %v969, 127
      %v988 = vpop.permute.xlu0 %987
      %989 = vrot.lane.b32.xlu0 %v970, 127
      %v990 = vpop.permute.xlu0 %989
      %991 = vrot.lane.b32.xlu0 %v971, 127
      %v992 = vpop.permute.xlu0 %991
      %993 = vrot.lane.b32.xlu0 %v972, 127
      %v994 = vpop.permute.xlu0 %993
      %995 = vrot.lane.b32.xlu0 %v973, 127
      %v996 = vpop.permute.xlu0 %995
      %997 = vrot.lane.b32.xlu0 %v974, 127
      %v998 = vpop.permute.xlu0 %997
      %v1007 = vadd.f32 %v967, %v984
      %v1008 = vadd.f32 %v968, %v986
      %v1009 = vadd.f32 %v969, %v988
      %v1010 = vadd.f32 %v970, %v990
      %v1011 = vadd.f32 %v971, %v992
      %v1012 = vadd.f32 %v972, %v994
      %v1013 = vadd.f32 %v973, %v996
      %v1014 = vadd.f32 %v974, %v998
      %v1015 = vadd.f32 %v1007, 2e-08
      %v1016 = vadd.f32 %v1008, 2e-08
      %v1017 = vadd.f32 %v1009, 2e-08
      %v1018 = vadd.f32 %v1010, 2e-08
      %v1019 = vadd.f32 %v1011, 2e-08
      %v1020 = vadd.f32 %v1012, 2e-08
      %v1021 = vadd.f32 %v1013, 2e-08
      %v1022 = vadd.f32 %v1014, 2e-08
      %v1023 = vrsqrt.pop %v1015
      %v1024 = vmul.f32 %v1015, %v1023
      %vm1025 = vcmp.eq.f32.partialorder %v1015, inf
      %v1026 = vsel %vm1025, %v1015, %v1024
      %vm1027 = vcmp.eq.f32.partialorder %v1015, 0.0
      %v1028 = vand.u32 %v1015, 2147483648
      %v1029 = vsel %vm1027, %v1028, %v1026
      %v1030 = vrsqrt.pop %v1016
      %v1031 = vmul.f32 %v1016, %v1030
      %vm1032 = vcmp.eq.f32.partialorder %v1016, inf
      %v1033 = vsel %vm1032, %v1016, %v1031
      %vm1034 = vcmp.eq.f32.partialorder %v1016, 0.0
      %v1035 = vand.u32 %v1016, 2147483648
      %v1036 = vsel %vm1034, %v1035, %v1033
      %v1037 = vrsqrt.pop %v1017
      %v1038 = vmul.f32 %v1017, %v1037
      %vm1039 = vcmp.eq.f32.partialorder %v1017, inf
      %v1040 = vsel %vm1039, %v1017, %v1038
      %vm1041 = vcmp.eq.f32.partialorder %v1017, 0.0
      %v1042 = vand.u32 %v1017, 2147483648
      %v1043 = vsel %vm1041, %v1042, %v1040
      %v1044 = vrsqrt.pop %v1018
      %v1045 = vmul.f32 %v1018, %v1044
      %vm1046 = vcmp.eq.f32.partialorder %v1018, inf
      %v1047 = vsel %vm1046, %v1018, %v1045
      %vm1048 = vcmp.eq.f32.partialorder %v1018, 0.0
      %v1049 = vand.u32 %v1018, 2147483648
      %v1050 = vsel %vm1048, %v1049, %v1047
      %v1051 = vrsqrt.pop %v1019
      %v1052 = vmul.f32 %v1019, %v1051
      %vm1053 = vcmp.eq.f32.partialorder %v1019, inf
      %v1054 = vsel %vm1053, %v1019, %v1052
      %vm1055 = vcmp.eq.f32.partialorder %v1019, 0.0
      %v1056 = vand.u32 %v1019, 2147483648
      %v1057 = vsel %vm1055, %v1056, %v1054
      %v1058 = vrsqrt.pop %v1020
      %v1059 = vmul.f32 %v1020, %v1058
      %vm1060 = vcmp.eq.f32.partialorder %v1020, inf
      %v1061 = vsel %vm1060, %v1020, %v1059
      %vm1062 = vcmp.eq.f32.partialorder %v1020, 0.0
      %v1063 = vand.u32 %v1020, 2147483648
      %v1064 = vsel %vm1062, %v1063, %v1061
      %v1065 = vrsqrt.pop %v1021
      %v1066 = vmul.f32 %v1021, %v1065
      %vm1067 = vcmp.eq.f32.partialorder %v1021, inf
      %v1068 = vsel %vm1067, %v1021, %v1066
      %vm1069 = vcmp.eq.f32.partialorder %v1021, 0.0
      %v1070 = vand.u32 %v1021, 2147483648
      %v1071 = vsel %vm1069, %v1070, %v1068
      %v1072 = vrsqrt.pop %v1022
      %v1073 = vmul.f32 %v1022, %v1072
      %vm1074 = vcmp.eq.f32.partialorder %v1022, inf
      %v1075 = vsel %vm1074, %v1022, %v1073
      %vm1076 = vcmp.eq.f32.partialorder %v1022, 0.0
      %v1077 = vand.u32 %v1022, 2147483648
      %v1078 = vsel %vm1076, %v1077, %v1075
      %v1080 = vcombine.high %v740, %v740
      %v1082 = vunpack.c.l.s4 1966171168
      %v1083 = vunpack.c.0.s8 %v1082
      %v1084 = vlaneseq
      %v1085 = vshrl.u32 %v1084, 7
      %v1086 = vsub.s32 %v1083, %v1085
      %v1087 = vrot.slane %v740, %v1086
      %v1089 = vunpack.c.l.s4 1966171168
      %v1090 = vunpack.c.0.s8 %v1089
      %v1091 = vlaneseq
      %v1092 = vshrl.u32 %v1091, 7
      %v1093 = vsub.s32 %v1090, %v1092
      %v1094 = vrot.slane %v1080, %v1093
      %v1095 = vcombine.high %v1087, %v1087
      %v1096 = vcombine.high %v1094, %v1094
      %v1098 = vunpack.c.l.s4 1966171168
      %v1099 = vunpack.c.0.s8 %v1098
      %v1100 = vlaneseq
      %v1101 = vshrl.u32 %v1100, 7
      %v1102 = vsub.s32 %v1099, %v1101
      %v1103 = vrot.slane %v1087, %v1102
      %v1105 = vunpack.c.l.s4 1966171168
      %v1106 = vunpack.c.0.s8 %v1105
      %v1107 = vlaneseq
      %v1108 = vshrl.u32 %v1107, 7
      %v1109 = vsub.s32 %v1106, %v1108
      %v1110 = vrot.slane %v1094, %v1109
      %v1112 = vunpack.c.l.s4 1966171168
      %v1113 = vunpack.c.0.s8 %v1112
      %v1114 = vlaneseq
      %v1115 = vshrl.u32 %v1114, 7
      %v1116 = vsub.s32 %v1113, %v1115
      %v1117 = vrot.slane %v1095, %v1116
      %v1119 = vunpack.c.l.s4 1966171168
      %v1120 = vunpack.c.0.s8 %v1119
      %v1121 = vlaneseq
      %v1122 = vshrl.u32 %v1121, 7
      %v1123 = vsub.s32 %v1120, %v1122
      %v1124 = vrot.slane %v1096, %v1123
      %v1125 = vcombine.high %v1103, %v1103
      %v1126 = vcombine.high %v1110, %v1110
      %v1127 = vcombine.high %v1117, %v1117
      %v1128 = vcombine.high %v1124, %v1124
      %v1129 = vlaneseq
      %v1130 = vshrl.u32 %v1129, 7
      %v1131 = vsub.s32 0, %v1130
      %v1132 = vrot.slane %v1103, %v1131
      %v1133 = vlaneseq
      %v1134 = vshrl.u32 %v1133, 7
      %v1135 = vsub.s32 0, %v1134
      %v1136 = vrot.slane %v1117, %v1135
      %v1137 = vlaneseq
      %v1138 = vshrl.u32 %v1137, 7
      %v1139 = vsub.s32 0, %v1138
      %v1140 = vrot.slane %v1125, %v1139
      %v1141 = vlaneseq
      %v1142 = vshrl.u32 %v1141, 7
      %v1143 = vsub.s32 0, %v1142
      %v1144 = vrot.slane %v1127, %v1143
      %v1145 = vlaneseq
      %v1146 = vshrl.u32 %v1145, 7
      %v1147 = vsub.s32 0, %v1146
      %v1148 = vrot.slane %v1110, %v1147
      %v1149 = vlaneseq
      %v1150 = vshrl.u32 %v1149, 7
      %v1151 = vsub.s32 0, %v1150
      %v1152 = vrot.slane %v1124, %v1151
      %v1153 = vlaneseq
      %v1154 = vshrl.u32 %v1153, 7
      %v1155 = vsub.s32 0, %v1154
      %v1156 = vrot.slane %v1126, %v1155
      %v1157 = vlaneseq
      %v1158 = vshrl.u32 %v1157, 7
      %v1159 = vsub.s32 0, %v1158
      %v1160 = vrot.slane %v1128, %v1159
      %v1169 = vadd.f32 %v742, %v1132
      %v1170 = vadd.f32 %v742, %v1136
      %v1171 = vadd.f32 %v742, %v1140
      %v1172 = vadd.f32 %v742, %v1144
      %v1173 = vadd.f32 %v742, %v1148
      %v1174 = vadd.f32 %v742, %v1152
      %v1175 = vadd.f32 %v742, %v1156
      %v1176 = vadd.f32 %v742, %v1160
      %v1177 = vadd.f32 %v1169, %v839
      %v1178 = vadd.f32 %v1170, %v842
      %v1179 = vadd.f32 %v1171, %v847
      %v1180 = vadd.f32 %v1172, %v850
      %v1181 = vadd.f32 %v1173, %v855
      %v1182 = vadd.f32 %v1174, %v858
      %v1183 = vadd.f32 %v1175, %v863
      %v1184 = vadd.f32 %v1176, %v866
      %1186 = vset.pattern.permute.xlu0 0
      %1187 = vperm.xlu0 %1186, %v1029
      %v1188 = vpop.permute.xlu0 %1187
      %1191 = vset.pattern.permute.xlu0 0
      %1192 = vperm.xlu0 %1191, %v1036
      %v1193 = vpop.permute.xlu0 %1192
      %1196 = vset.pattern.permute.xlu0 0
      %1197 = vperm.xlu0 %1196, %v1043
      %v1198 = vpop.permute.xlu0 %1197
      %1201 = vset.pattern.permute.xlu0 0
      %1202 = vperm.xlu0 %1201, %v1050
      %v1203 = vpop.permute.xlu0 %1202
      %1206 = vset.pattern.permute.xlu0 0
      %1207 = vperm.xlu0 %1206, %v1057
      %v1208 = vpop.permute.xlu0 %1207
      %1211 = vset.pattern.permute.xlu0 0
      %1212 = vperm.xlu0 %1211, %v1064
      %v1213 = vpop.permute.xlu0 %1212
      %1216 = vset.pattern.permute.xlu0 0
      %1217 = vperm.xlu0 %1216, %v1071
      %v1218 = vpop.permute.xlu0 %1217
      %1221 = vset.pattern.permute.xlu0 0
      %1222 = vperm.xlu0 %1221, %v1078
      %v1223 = vpop.permute.xlu0 %1222
      %v1225 = vlaneseq
      %v1226 = vshrl.u32 %v1225, 7
      %v1227 = vsub.s32 0, %v1226
      %v1228 = vrot.slane %v736, %v1227
      %v1229 = vmul.f32 %v1188, %v1228
      %v1230 = vmul.f32 %v1193, %v1228
      %v1231 = vmul.f32 %v1198, %v1228
      %v1232 = vmul.f32 %v1203, %v1228
      %v1233 = vmul.f32 %v1208, %v1228
      %v1234 = vmul.f32 %v1213, %v1228
      %v1235 = vmul.f32 %v1218, %v1228
      %v1236 = vmul.f32 %v1223, %v1228
      %v1237 = vadd.f32 %v1177, %v1229
      %v1238 = vadd.f32 %v1178, %v1230
      %v1239 = vadd.f32 %v1179, %v1231
      %v1240 = vadd.f32 %v1180, %v1232
      %v1241 = vadd.f32 %v1181, %v1233
      %v1242 = vadd.f32 %v1182, %v1234
      %v1243 = vadd.f32 %v1183, %v1235
      %v1244 = vadd.f32 %v1184, %v1236
      %v1245 = vxor.u32 %v1237, 2147483648
      %v1246 = vxor.u32 %v1238, 2147483648
      %v1247 = vxor.u32 %v1239, 2147483648
      %v1248 = vxor.u32 %v1240, 2147483648
      %v1249 = vxor.u32 %v1241, 2147483648
      %v1250 = vxor.u32 %v1242, 2147483648
      %v1251 = vxor.u32 %v1243, 2147483648
      %v1252 = vxor.u32 %v1244, 2147483648
      %v1253 = vmul.f32 %v1245, 1.442695
      %v1254 = vpow.pop %v1253
      %v1255 = vmul.f32 %v1246, 1.442695
      %v1256 = vpow.pop %v1255
      %v1257 = vmul.f32 %v1247, 1.442695
      %v1258 = vpow.pop %v1257
      %v1259 = vmul.f32 %v1248, 1.442695
      %v1260 = vpow.pop %v1259
      %v1261 = vmul.f32 %v1249, 1.442695
      %v1262 = vpow.pop %v1261
      %v1263 = vmul.f32 %v1250, 1.442695
      %v1264 = vpow.pop %v1263
      %v1265 = vmul.f32 %v1251, 1.442695
      %v1266 = vpow.pop %v1265
      %v1267 = vmul.f32 %v1252, 1.442695
      %v1268 = vpow.pop %v1267
      %v1269 = vadd.f32 %v1254, 1.0
      %v1270 = vadd.f32 %v1256, 1.0
      %v1271 = vadd.f32 %v1258, 1.0
      %v1272 = vadd.f32 %v1260, 1.0
      %v1273 = vadd.f32 %v1262, 1.0
      %v1274 = vadd.f32 %v1264, 1.0
      %v1275 = vadd.f32 %v1266, 1.0
      %v1276 = vadd.f32 %v1268, 1.0
      %v1277 = vrcp.pop %v1269
      %v1278 = vmul.f32 1.0, %v1277
      %v1279 = vrcp.pop %v1270
      %v1280 = vmul.f32 1.0, %v1279
      %v1281 = vrcp.pop %v1271
      %v1282 = vmul.f32 1.0, %v1281
      %v1283 = vrcp.pop %v1272
      %v1284 = vmul.f32 1.0, %v1283
      %v1285 = vrcp.pop %v1273
      %v1286 = vmul.f32 1.0, %v1285
      %v1287 = vrcp.pop %v1274
      %v1288 = vmul.f32 1.0, %v1287
      %v1289 = vrcp.pop %v1275
      %v1290 = vmul.f32 1.0, %v1289
      %v1291 = vrcp.pop %v1276
      %v1292 = vmul.f32 1.0, %v1291
      %v1293 = vlaneseq
      %v1294 = vshrl.u32 %v1293, 7
      %v1295 = vsub.s32 0, %v1294
      %v1296 = vrot.slane %v754, %v1295
      %1298 = vbcast.lane.b32.xlu0 %v1296, 256
      %v1299 = vpop.permute.xlu0 %1298
      %v1300 = vlaneseq
      %v1301 = vshrl.u32 %v1300, 7
      %v1302 = vsub.s32 1, %v1301
      %v1303 = vrot.slane %v754, %v1302
      %1305 = vbcast.lane.b32.xlu0 %v1303, 256
      %v1306 = vpop.permute.xlu0 %1305
      %v1307 = vlaneseq
      %v1308 = vshrl.u32 %v1307, 7
      %v1309 = vsub.s32 2, %v1308
      %v1310 = vrot.slane %v754, %v1309
      %1312 = vbcast.lane.b32.xlu0 %v1310, 256
      %v1313 = vpop.permute.xlu0 %1312
      %v1314 = vlaneseq
      %v1315 = vshrl.u32 %v1314, 7
      %v1316 = vsub.s32 3, %v1315
      %v1317 = vrot.slane %v754, %v1316
      %1319 = vbcast.lane.b32.xlu0 %v1317, 256
      %v1320 = vpop.permute.xlu0 %1319
      %v1321 = vlaneseq
      %v1322 = vshrl.u32 %v1321, 7
      %v1323 = vsub.s32 4, %v1322
      %v1324 = vrot.slane %v754, %v1323
      %1326 = vbcast.lane.b32.xlu0 %v1324, 256
      %v1327 = vpop.permute.xlu0 %1326
      %v1328 = vlaneseq
      %v1329 = vshrl.u32 %v1328, 7
      %v1330 = vsub.s32 5, %v1329
      %v1331 = vrot.slane %v754, %v1330
      %1333 = vbcast.lane.b32.xlu0 %v1331, 256
      %v1334 = vpop.permute.xlu0 %1333
      %v1335 = vlaneseq
      %v1336 = vshrl.u32 %v1335, 7
      %v1337 = vsub.s32 6, %v1336
      %v1338 = vrot.slane %v754, %v1337
      %1340 = vbcast.lane.b32.xlu0 %v1338, 256
      %v1341 = vpop.permute.xlu0 %1340
      %v1342 = vlaneseq
      %v1343 = vshrl.u32 %v1342, 7
      %v1344 = vsub.s32 7, %v1343
      %v1345 = vrot.slane %v754, %v1344
      %1347 = vbcast.lane.b32.xlu0 %v1345, 256
      %v1348 = vpop.permute.xlu0 %1347
      %v1349 = vmul.f32 %v1299, %v1278
      %v1350 = vmul.f32 %v1306, %v1280
      %v1351 = vmul.f32 %v1313, %v1282
      %v1352 = vmul.f32 %v1320, %v1284
      %v1353 = vmul.f32 %v1327, %v1286
      %v1354 = vmul.f32 %v1334, %v1288
      %v1355 = vmul.f32 %v1341, %v1290
      %v1356 = vmul.f32 %v1348, %v1292
      %v1357 = vlaneseq
      %v1358 = vshrl.u32 %v1357, 7
      %v1359 = vsub.s32 1, %v1358
      %v1360 = vrot.slane %v736, %v1359
      %v1361 = vmul.f32 %v1237, %v1360
      %v1362 = vmul.f32 %v1238, %v1360
      %v1363 = vmul.f32 %v1239, %v1360
      %v1364 = vmul.f32 %v1240, %v1360
      %v1365 = vmul.f32 %v1241, %v1360
      %v1366 = vmul.f32 %v1242, %v1360
      %v1367 = vmul.f32 %v1243, %v1360
      %v1368 = vmul.f32 %v1244, %v1360
      %v1369 = vsel %vm791, %v1361, 0.0
      %1370 = vadd.xlane.f32.xlu0 %v1369
      %v1371 = vpop.xlane.xlu0 %1370
      %v1372 = vsel %vm791, %v1362, 0.0
      %1373 = vadd.xlane.f32.xlu0 %v1372
      %v1374 = vpop.xlane.xlu0 %1373
      %v1375 = vsel %vm791, %v1363, 0.0
      %1376 = vadd.xlane.f32.xlu0 %v1375
      %v1377 = vpop.xlane.xlu0 %1376
      %v1378 = vsel %vm791, %v1364, 0.0
      %1379 = vadd.xlane.f32.xlu0 %v1378
      %v1380 = vpop.xlane.xlu0 %1379
      %v1381 = vsel %vm791, %v1365, 0.0
      %1382 = vadd.xlane.f32.xlu0 %v1381
      %v1383 = vpop.xlane.xlu0 %1382
      %v1384 = vsel %vm791, %v1366, 0.0
      %1385 = vadd.xlane.f32.xlu0 %v1384
      %v1386 = vpop.xlane.xlu0 %1385
      %v1387 = vsel %vm791, %v1367, 0.0
      %1388 = vadd.xlane.f32.xlu0 %v1387
      %v1389 = vpop.xlane.xlu0 %1388
      %v1390 = vsel %vm791, %v1368, 0.0
      %1391 = vadd.xlane.f32.xlu0 %v1390
      %v1392 = vpop.xlane.xlu0 %1391
      %v1393 = vlaneseq
      %v1394 = vshrl.u32 %v1393, 7
      %v1395 = vsub.s32 2, %v1394
      %v1396 = vrot.slane %v737, %v1395
      %v1397 = vadd.f32 %v1371, %v1396
      %v1398 = vadd.f32 %v1374, %v1396
      %v1399 = vadd.f32 %v1377, %v1396
      %v1400 = vadd.f32 %v1380, %v1396
      %v1401 = vadd.f32 %v1383, %v1396
      %v1402 = vadd.f32 %v1386, %v1396
      %v1403 = vadd.f32 %v1389, %v1396
      %v1404 = vadd.f32 %v1392, %v1396
      %v1405 = vxor.u32 %v1397, 2147483648
      %v1406 = vxor.u32 %v1398, 2147483648
      %v1407 = vxor.u32 %v1399, 2147483648
      %v1408 = vxor.u32 %v1400, 2147483648
      %v1409 = vxor.u32 %v1401, 2147483648
      %v1410 = vxor.u32 %v1402, 2147483648
      %v1411 = vxor.u32 %v1403, 2147483648
      %v1412 = vxor.u32 %v1404, 2147483648
      %v1413 = vmul.f32 %v1405, 1.442695
      %v1414 = vpow.pop %v1413
      %v1415 = vmul.f32 %v1406, 1.442695
      %v1416 = vpow.pop %v1415
      %v1417 = vmul.f32 %v1407, 1.442695
      %v1418 = vpow.pop %v1417
      %v1419 = vmul.f32 %v1408, 1.442695
      %v1420 = vpow.pop %v1419
      %v1421 = vmul.f32 %v1409, 1.442695
      %v1422 = vpow.pop %v1421
      %v1423 = vmul.f32 %v1410, 1.442695
      %v1424 = vpow.pop %v1423
      %v1425 = vmul.f32 %v1411, 1.442695
      %v1426 = vpow.pop %v1425
      %v1427 = vmul.f32 %v1412, 1.442695
      %v1428 = vpow.pop %v1427
      %v1429 = vadd.f32 %v1414, 1.0
      %v1430 = vadd.f32 %v1416, 1.0
      %v1431 = vadd.f32 %v1418, 1.0
      %v1432 = vadd.f32 %v1420, 1.0
      %v1433 = vadd.f32 %v1422, 1.0
      %v1434 = vadd.f32 %v1424, 1.0
      %v1435 = vadd.f32 %v1426, 1.0
      %v1436 = vadd.f32 %v1428, 1.0
      %v1437 = vrcp.pop %v1429
      %v1438 = vmul.f32 1.0, %v1437
      %v1439 = vrcp.pop %v1430
      %v1440 = vmul.f32 1.0, %v1439
      %v1441 = vrcp.pop %v1431
      %v1442 = vmul.f32 1.0, %v1441
      %v1443 = vrcp.pop %v1432
      %v1444 = vmul.f32 1.0, %v1443
      %v1445 = vrcp.pop %v1433
      %v1446 = vmul.f32 1.0, %v1445
      %v1447 = vrcp.pop %v1434
      %v1448 = vmul.f32 1.0, %v1447
      %v1449 = vrcp.pop %v1435
      %v1450 = vmul.f32 1.0, %v1449
      %v1451 = vrcp.pop %v1436
      %v1452 = vmul.f32 1.0, %v1451
      %v1453 = vmul.f32 %v1438, %v1299
      %v1454 = vmul.f32 %v1440, %v1306
      %v1455 = vmul.f32 %v1442, %v1313
      %v1456 = vmul.f32 %v1444, %v1320
      %v1457 = vmul.f32 %v1446, %v1327
      %v1458 = vmul.f32 %v1448, %v1334
      %v1459 = vmul.f32 %v1450, %v1341
      %v1460 = vmul.f32 %v1452, %v1348
      %v1461 = vmul.f32 %v1453, %v959
      %v1462 = vmul.f32 %v1454, %v960
      %v1463 = vmul.f32 %v1455, %v961
      %v1464 = vmul.f32 %v1456, %v962
      %v1465 = vmul.f32 %v1457, %v963
      %v1466 = vmul.f32 %v1458, %v964
      %v1467 = vmul.f32 %v1459, %v965
      %v1468 = vmul.f32 %v1460, %v966
      %vm1469 = vcmask 7168
      %v1470 = vsel %vm1469, %v1461, 0.0
      %v1471 = vrot.slane %v1470, 4
      %v1472 = vadd.f32 %v1470, %v1471
      %v1473 = vrot.slane %v1472, 2
      %v1474 = vadd.f32 %v1472, %v1473
      %v1475 = vrot.slane %v1474, 1
      %v1476 = vadd.f32 %v1474, %v1475
      %v1477 = vsel %vm1469, %v1462, 0.0
      %v1478 = vrot.slane %v1477, 4
      %v1479 = vadd.f32 %v1477, %v1478
      %v1480 = vrot.slane %v1479, 2
      %v1481 = vadd.f32 %v1479, %v1480
      %v1482 = vrot.slane %v1481, 1
      %v1483 = vadd.f32 %v1481, %v1482
      %v1484 = vsel %vm1469, %v1463, 0.0
      %v1485 = vrot.slane %v1484, 4
      %v1486 = vadd.f32 %v1484, %v1485
      %v1487 = vrot.slane %v1486, 2
      %v1488 = vadd.f32 %v1486, %v1487
      %v1489 = vrot.slane %v1488, 1
      %v1490 = vadd.f32 %v1488, %v1489
      %v1491 = vsel %vm1469, %v1464, 0.0
      %v1492 = vrot.slane %v1491, 4
      %v1493 = vadd.f32 %v1491, %v1492
      %v1494 = vrot.slane %v1493, 2
      %v1495 = vadd.f32 %v1493, %v1494
      %v1496 = vrot.slane %v1495, 1
      %v1497 = vadd.f32 %v1495, %v1496
      %v1498 = vsel %vm1469, %v1465, 0.0
      %v1499 = vrot.slane %v1498, 4
      %v1500 = vadd.f32 %v1498, %v1499
      %v1501 = vrot.slane %v1500, 2
      %v1502 = vadd.f32 %v1500, %v1501
      %v1503 = vrot.slane %v1502, 1
      %v1504 = vadd.f32 %v1502, %v1503
      %v1505 = vsel %vm1469, %v1466, 0.0
      %v1506 = vrot.slane %v1505, 4
      %v1507 = vadd.f32 %v1505, %v1506
      %v1508 = vrot.slane %v1507, 2
      %v1509 = vadd.f32 %v1507, %v1508
      %v1510 = vrot.slane %v1509, 1
      %v1511 = vadd.f32 %v1509, %v1510
      %v1512 = vsel %vm1469, %v1467, 0.0
      %v1513 = vrot.slane %v1512, 4
      %v1514 = vadd.f32 %v1512, %v1513
      %v1515 = vrot.slane %v1514, 2
      %v1516 = vadd.f32 %v1514, %v1515
      %v1517 = vrot.slane %v1516, 1
      %v1518 = vadd.f32 %v1516, %v1517
      %v1519 = vsel %vm1469, %v1468, 0.0
      %v1520 = vrot.slane %v1519, 4
      %v1521 = vadd.f32 %v1519, %v1520
      %v1522 = vrot.slane %v1521, 2
      %v1523 = vadd.f32 %v1521, %v1522
      %v1524 = vrot.slane %v1523, 1
      %v1525 = vadd.f32 %v1523, %v1524
      %1534 = vrot.lane.b32.xlu0 %v959, 127
      %v1535 = vpop.permute.xlu0 %1534
      %1536 = vrot.lane.b32.xlu0 %v960, 127
      %v1537 = vpop.permute.xlu0 %1536
      %1538 = vrot.lane.b32.xlu0 %v961, 127
      %v1539 = vpop.permute.xlu0 %1538
      %1540 = vrot.lane.b32.xlu0 %v962, 127
      %v1541 = vpop.permute.xlu0 %1540
      %1542 = vrot.lane.b32.xlu0 %v963, 127
      %v1543 = vpop.permute.xlu0 %1542
      %1544 = vrot.lane.b32.xlu0 %v964, 127
      %v1545 = vpop.permute.xlu0 %1544
      %1546 = vrot.lane.b32.xlu0 %v965, 127
      %v1547 = vpop.permute.xlu0 %1546
      %1548 = vrot.lane.b32.xlu0 %v966, 127
      %v1549 = vpop.permute.xlu0 %1548
      %v1558 = vmul.f32 %v1453, %v1535
      %v1559 = vmul.f32 %v1454, %v1537
      %v1560 = vmul.f32 %v1455, %v1539
      %v1561 = vmul.f32 %v1456, %v1541
      %v1562 = vmul.f32 %v1457, %v1543
      %v1563 = vmul.f32 %v1458, %v1545
      %v1564 = vmul.f32 %v1459, %v1547
      %v1565 = vmul.f32 %v1460, %v1549
      %v1566 = vsel %vm1469, %v1558, 0.0
      %v1567 = vrot.slane %v1566, 4
      %v1568 = vadd.f32 %v1566, %v1567
      %v1569 = vrot.slane %v1568, 2
      %v1570 = vadd.f32 %v1568, %v1569
      %v1571 = vrot.slane %v1570, 1
      %v1572 = vadd.f32 %v1570, %v1571
      %v1573 = vsel %vm1469, %v1559, 0.0
      %v1574 = vrot.slane %v1573, 4
      %v1575 = vadd.f32 %v1573, %v1574
      %v1576 = vrot.slane %v1575, 2
      %v1577 = vadd.f32 %v1575, %v1576
      %v1578 = vrot.slane %v1577, 1
      %v1579 = vadd.f32 %v1577, %v1578
      %v1580 = vsel %vm1469, %v1560, 0.0
      %v1581 = vrot.slane %v1580, 4
      %v1582 = vadd.f32 %v1580, %v1581
      %v1583 = vrot.slane %v1582, 2
      %v1584 = vadd.f32 %v1582, %v1583
      %v1585 = vrot.slane %v1584, 1
      %v1586 = vadd.f32 %v1584, %v1585
      %v1587 = vsel %vm1469, %v1561, 0.0
      %v1588 = vrot.slane %v1587, 4
      %v1589 = vadd.f32 %v1587, %v1588
      %v1590 = vrot.slane %v1589, 2
      %v1591 = vadd.f32 %v1589, %v1590
      %v1592 = vrot.slane %v1591, 1
      %v1593 = vadd.f32 %v1591, %v1592
      %v1594 = vsel %vm1469, %v1562, 0.0
      %v1595 = vrot.slane %v1594, 4
      %v1596 = vadd.f32 %v1594, %v1595
      %v1597 = vrot.slane %v1596, 2
      %v1598 = vadd.f32 %v1596, %v1597
      %v1599 = vrot.slane %v1598, 1
      %v1600 = vadd.f32 %v1598, %v1599
      %v1601 = vsel %vm1469, %v1563, 0.0
      %v1602 = vrot.slane %v1601, 4
      %v1603 = vadd.f32 %v1601, %v1602
      %v1604 = vrot.slane %v1603, 2
      %v1605 = vadd.f32 %v1603, %v1604
      %v1606 = vrot.slane %v1605, 1
      %v1607 = vadd.f32 %v1605, %v1606
      %v1608 = vsel %vm1469, %v1564, 0.0
      %v1609 = vrot.slane %v1608, 4
      %v1610 = vadd.f32 %v1608, %v1609
      %v1611 = vrot.slane %v1610, 2
      %v1612 = vadd.f32 %v1610, %v1611
      %v1613 = vrot.slane %v1612, 1
      %v1614 = vadd.f32 %v1612, %v1613
      %v1615 = vsel %vm1469, %v1565, 0.0
      %v1616 = vrot.slane %v1615, 4
      %v1617 = vadd.f32 %v1615, %v1616
      %v1618 = vrot.slane %v1617, 2
      %v1619 = vadd.f32 %v1617, %v1618
      %v1620 = vrot.slane %v1619, 1
      %v1621 = vadd.f32 %v1619, %v1620
      %v1622 = vsel %vm791, %v1237, 0.0
      %1623 = vadd.xlane.f32.xlu0 %v1622
      %v1624 = vpop.xlane.xlu0 %1623
      %v1625 = vsel %vm791, %v1238, 0.0
      %1626 = vadd.xlane.f32.xlu0 %v1625
      %v1627 = vpop.xlane.xlu0 %1626
      %v1628 = vsel %vm791, %v1239, 0.0
      %1629 = vadd.xlane.f32.xlu0 %v1628
      %v1630 = vpop.xlane.xlu0 %1629
      %v1631 = vsel %vm791, %v1240, 0.0
      %1632 = vadd.xlane.f32.xlu0 %v1631
      %v1633 = vpop.xlane.xlu0 %1632
      %v1634 = vsel %vm791, %v1241, 0.0
      %1635 = vadd.xlane.f32.xlu0 %v1634
      %v1636 = vpop.xlane.xlu0 %1635
      %v1637 = vsel %vm791, %v1242, 0.0
      %1638 = vadd.xlane.f32.xlu0 %v1637
      %v1639 = vpop.xlane.xlu0 %1638
      %v1640 = vsel %vm791, %v1243, 0.0
      %1641 = vadd.xlane.f32.xlu0 %v1640
      %v1642 = vpop.xlane.xlu0 %1641
      %v1643 = vsel %vm791, %v1244, 0.0
      %1644 = vadd.xlane.f32.xlu0 %v1643
      %v1645 = vpop.xlane.xlu0 %1644
      %v1646 = vrcp.pop 32.0
      %v1647 = vmul.f32 %v1624, %v1646
      %v1648 = vmul.f32 %v1627, %v1646
      %v1649 = vmul.f32 %v1630, %v1646
      %v1650 = vmul.f32 %v1633, %v1646
      %v1651 = vmul.f32 %v1636, %v1646
      %v1652 = vmul.f32 %v1639, %v1646
      %v1653 = vmul.f32 %v1642, %v1646
      %v1654 = vmul.f32 %v1645, %v1646
      %v1655 = vsub.f32 %v1237, %v1647
      %v1656 = vsub.f32 %v1238, %v1648
      %v1657 = vsub.f32 %v1239, %v1649
      %v1658 = vsub.f32 %v1240, %v1650
      %v1659 = vsub.f32 %v1241, %v1651
      %v1660 = vsub.f32 %v1242, %v1652
      %v1661 = vsub.f32 %v1243, %v1653
      %v1662 = vsub.f32 %v1244, %v1654
      %v1663 = vmul.f32 %v1655, %v1655
      %v1664 = vmul.f32 %v1656, %v1656
      %v1665 = vmul.f32 %v1657, %v1657
      %v1666 = vmul.f32 %v1658, %v1658
      %v1667 = vmul.f32 %v1659, %v1659
      %v1668 = vmul.f32 %v1660, %v1660
      %v1669 = vmul.f32 %v1661, %v1661
      %v1670 = vmul.f32 %v1662, %v1662
      %v1671 = vsel %vm791, %v1663, 0.0
      %1672 = vadd.xlane.f32.xlu0 %v1671
      %v1673 = vpop.xlane.xlu0 %1672
      %v1674 = vsel %vm791, %v1664, 0.0
      %1675 = vadd.xlane.f32.xlu0 %v1674
      %v1676 = vpop.xlane.xlu0 %1675
      %v1677 = vsel %vm791, %v1665, 0.0
      %1678 = vadd.xlane.f32.xlu0 %v1677
      %v1679 = vpop.xlane.xlu0 %1678
      %v1680 = vsel %vm791, %v1666, 0.0
      %1681 = vadd.xlane.f32.xlu0 %v1680
      %v1682 = vpop.xlane.xlu0 %1681
      %v1683 = vsel %vm791, %v1667, 0.0
      %1684 = vadd.xlane.f32.xlu0 %v1683
      %v1685 = vpop.xlane.xlu0 %1684
      %v1686 = vsel %vm791, %v1668, 0.0
      %1687 = vadd.xlane.f32.xlu0 %v1686
      %v1688 = vpop.xlane.xlu0 %1687
      %v1689 = vsel %vm791, %v1669, 0.0
      %1690 = vadd.xlane.f32.xlu0 %v1689
      %v1691 = vpop.xlane.xlu0 %1690
      %v1692 = vsel %vm791, %v1670, 0.0
      %1693 = vadd.xlane.f32.xlu0 %v1692
      %v1694 = vpop.xlane.xlu0 %1693
      %v1695 = vmul.f32 %v1673, %v1646
      %v1696 = vmul.f32 %v1676, %v1646
      %v1697 = vmul.f32 %v1679, %v1646
      %v1698 = vmul.f32 %v1682, %v1646
      %v1699 = vmul.f32 %v1685, %v1646
      %v1700 = vmul.f32 %v1688, %v1646
      %v1701 = vmul.f32 %v1691, %v1646
      %v1702 = vmul.f32 %v1694, %v1646
      %v1703 = vadd.f32 %v1695, 1e-05
      %v1704 = vadd.f32 %v1696, 1e-05
      %v1705 = vadd.f32 %v1697, 1e-05
      %v1706 = vadd.f32 %v1698, 1e-05
      %v1707 = vadd.f32 %v1699, 1e-05
      %v1708 = vadd.f32 %v1700, 1e-05
      %v1709 = vadd.f32 %v1701, 1e-05
      %v1710 = vadd.f32 %v1702, 1e-05
      %v1711 = vrsqrt.pop %v1703
      %v1712 = vrsqrt.pop %v1704
      %v1713 = vrsqrt.pop %v1705
      %v1714 = vrsqrt.pop %v1706
      %v1715 = vrsqrt.pop %v1707
      %v1716 = vrsqrt.pop %v1708
      %v1717 = vrsqrt.pop %v1709
      %v1718 = vrsqrt.pop %v1710
      %v1719 = vmul.f32 %v1655, %v1711
      %v1720 = vmul.f32 %v1656, %v1712
      %v1721 = vmul.f32 %v1657, %v1713
      %v1722 = vmul.f32 %v1658, %v1714
      %v1723 = vmul.f32 %v1659, %v1715
      %v1724 = vmul.f32 %v1660, %v1716
      %v1725 = vmul.f32 %v1661, %v1717
      %v1726 = vmul.f32 %v1662, %v1718
      %v1727 = vlaneseq
      %v1728 = vshrl.u32 %v1727, 7
      %v1729 = vsub.s32 5, %v1728
      %v1730 = vrot.slane %v736, %v1729
      %v1731 = vmul.f32 %v1719, %v1730
      %v1732 = vmul.f32 %v1720, %v1730
      %v1733 = vmul.f32 %v1721, %v1730
      %v1734 = vmul.f32 %v1722, %v1730
      %v1735 = vmul.f32 %v1723, %v1730
      %v1736 = vmul.f32 %v1724, %v1730
      %v1737 = vmul.f32 %v1725, %v1730
      %v1738 = vmul.f32 %v1726, %v1730
      %v1739 = vlaneseq
      %v1740 = vshrl.u32 %v1739, 7
      %v1741 = vsub.s32 6, %v1740
      %v1742 = vrot.slane %v736, %v1741
      %v1743 = vadd.f32 %v1731, %v1742
      %v1744 = vadd.f32 %v1732, %v1742
      %v1745 = vadd.f32 %v1733, %v1742
      %v1746 = vadd.f32 %v1734, %v1742
      %v1747 = vadd.f32 %v1735, %v1742
      %v1748 = vadd.f32 %v1736, %v1742
      %v1749 = vadd.f32 %v1737, %v1742
      %v1750 = vadd.f32 %v1738, %v1742
      %v1751 = vmax.f32 %v1743, 0.0
      %v1752 = vmax.f32 %v1744, 0.0
      %v1753 = vmax.f32 %v1745, 0.0
      %v1754 = vmax.f32 %v1746, 0.0
      %v1755 = vmax.f32 %v1747, 0.0
      %v1756 = vmax.f32 %v1748, 0.0
      %v1757 = vmax.f32 %v1749, 0.0
      %v1758 = vmax.f32 %v1750, 0.0
      %v1759 = vunpack.c.l.bf16 %v745
      %v1760 = vunpack.c.l.bf16 %v746
      %v1761 = vunpack.c.l.bf16 %v747
      %v1762 = vunpack.c.l.bf16 %v748
      %v1763 = vunpack.c.l.bf16 %v749
      %v1764 = vunpack.c.l.bf16 %v750
      %v1765 = vunpack.c.l.bf16 %v751
      %v1766 = vunpack.c.l.bf16 %v752
      %v1767 = vadd.f32 %v1759, %v1751
      %v1768 = vadd.f32 %v1760, %v1752
      %v1769 = vadd.f32 %v1761, %v1753
      %v1770 = vadd.f32 %v1762, %v1754
      %v1771 = vadd.f32 %v1763, %v1755
      %v1772 = vadd.f32 %v1764, %v1756
      %v1773 = vadd.f32 %v1765, %v1757
      %v1774 = vadd.f32 %v1766, %v1758
      %v1775 = vpack.c.bf16 %v1767, %v1767
      %v1776 = vpack.c.bf16 %v1768, %v1768
      %v1777 = vpack.c.bf16 %v1769, %v1769
      %v1778 = vpack.c.bf16 %v1770, %v1770
      %v1779 = vpack.c.bf16 %v1771, %v1771
      %v1780 = vpack.c.bf16 %v1772, %v1772
      %v1781 = vpack.c.bf16 %v1773, %v1773
      %v1782 = vpack.c.bf16 %v1774, %v1774
      %vm1783 = vcmask 257024
      %1784 = vst.msk [vmem:[%s726] sm:$0xf] %vm1783, %v1775
      %1785 = vst.msk [vmem:[%s726 + $0x4] sm:$0xf] %vm1783, %v1776
      %1786 = vst.msk [vmem:[%s726 + $0x8] sm:$0xf] %vm1783, %v1777
      %1787 = vst.msk [vmem:[%s726 + $0xc] sm:$0xf] %vm1783, %v1778
      %1788 = vst.msk [vmem:[%s726 + $0x10] sm:$0xf] %vm1783, %v1779
      %1789 = vst.msk [vmem:[%s726 + $0x14] sm:$0xf] %vm1783, %v1780
      %1790 = vst.msk [vmem:[%s726 + $0x18] sm:$0xf] %vm1783, %v1781
      %1791 = vst.msk [vmem:[%s726 + $0x1c] sm:$0xf] %vm1783, %v1782
      %v1792 = vmul.f32 %v1349, %v741
      %v1793 = vmul.f32 %v1350, %v741
      %v1794 = vmul.f32 %v1351, %v741
      %v1795 = vmul.f32 %v1352, %v741
      %v1796 = vmul.f32 %v1353, %v741
      %v1797 = vmul.f32 %v1354, %v741
      %v1798 = vmul.f32 %v1355, %v741
      %v1799 = vmul.f32 %v1356, %v741
      %v1800 = vsel %vm791, %v1792, 0.0
      %v1801 = vrot.slane %v1800, 4
      %v1802 = vadd.f32 %v1800, %v1801
      %v1803 = vrot.slane %v1802, 2
      %v1804 = vadd.f32 %v1802, %v1803
      %v1805 = vrot.slane %v1804, 1
      %v1806 = vadd.f32 %v1804, %v1805
      %v1807 = vsel %vm791, %v1793, 0.0
      %v1808 = vrot.slane %v1807, 4
      %v1809 = vadd.f32 %v1807, %v1808
      %v1810 = vrot.slane %v1809, 2
      %v1811 = vadd.f32 %v1809, %v1810
      %v1812 = vrot.slane %v1811, 1
      %v1813 = vadd.f32 %v1811, %v1812
      %v1814 = vsel %vm791, %v1794, 0.0
      %v1815 = vrot.slane %v1814, 4
      %v1816 = vadd.f32 %v1814, %v1815
      %v1817 = vrot.slane %v1816, 2
      %v1818 = vadd.f32 %v1816, %v1817
      %v1819 = vrot.slane %v1818, 1
      %v1820 = vadd.f32 %v1818, %v1819
      %v1821 = vsel %vm791, %v1795, 0.0
      %v1822 = vrot.slane %v1821, 4
      %v1823 = vadd.f32 %v1821, %v1822
      %v1824 = vrot.slane %v1823, 2
      %v1825 = vadd.f32 %v1823, %v1824
      %v1826 = vrot.slane %v1825, 1
      %v1827 = vadd.f32 %v1825, %v1826
      %v1828 = vsel %vm791, %v1796, 0.0
      %v1829 = vrot.slane %v1828, 4
      %v1830 = vadd.f32 %v1828, %v1829
      %v1831 = vrot.slane %v1830, 2
      %v1832 = vadd.f32 %v1830, %v1831
      %v1833 = vrot.slane %v1832, 1
      %v1834 = vadd.f32 %v1832, %v1833
      %v1835 = vsel %vm791, %v1797, 0.0
      %v1836 = vrot.slane %v1835, 4
      %v1837 = vadd.f32 %v1835, %v1836
      %v1838 = vrot.slane %v1837, 2
      %v1839 = vadd.f32 %v1837, %v1838
      %v1840 = vrot.slane %v1839, 1
      %v1841 = vadd.f32 %v1839, %v1840
      %v1842 = vsel %vm791, %v1798, 0.0
      %v1843 = vrot.slane %v1842, 4
      %v1844 = vadd.f32 %v1842, %v1843
      %v1845 = vrot.slane %v1844, 2
      %v1846 = vadd.f32 %v1844, %v1845
      %v1847 = vrot.slane %v1846, 1
      %v1848 = vadd.f32 %v1846, %v1847
      %v1849 = vsel %vm791, %v1799, 0.0
      %v1850 = vrot.slane %v1849, 4
      %v1851 = vadd.f32 %v1849, %v1850
      %v1852 = vrot.slane %v1851, 2
      %v1853 = vadd.f32 %v1851, %v1852
      %v1854 = vrot.slane %v1853, 1
      %v1855 = vadd.f32 %v1853, %v1854
      %vm1864 = vcmask 1041409
      %v1865 = vsel %vm1864, %v1813, %v1806
      %vm1866 = vcmask 1042434
      %v1867 = vsel %vm1866, %v1820, %v1865
      %vm1868 = vcmask 1043459
      %v1869 = vsel %vm1868, %v1827, %v1867
      %vm1870 = vcmask 1044484
      %v1871 = vsel %vm1870, %v1834, %v1869
      %vm1872 = vcmask 1045509
      %v1873 = vsel %vm1872, %v1841, %v1871
      %vm1874 = vcmask 1046534
      %v1875 = vsel %vm1874, %v1848, %v1873
      %vm1876 = vcmask 1047559
      %v1877 = vsel %vm1876, %v1855, %v1875
      %v1879 = vadd.f32 %v739, %v1877
      %v1880 = vsel %vm791, %v1879, 0.0
      %1881 = vadd.xlane.f32.xlu0 %v1880
      %v1882 = vpop.xlane.xlu0 %1881
      %v1883 = vmul.f32 %v1882, %v1646
      %v1884 = vsub.f32 %v1879, %v1883
      %v1885 = vmul.f32 %v1884, %v1884
      %v1886 = vsel %vm791, %v1885, 0.0
      %1887 = vadd.xlane.f32.xlu0 %v1886
      %v1888 = vpop.xlane.xlu0 %1887
      %v1889 = vmul.f32 %v1888, %v1646
      %v1890 = vadd.f32 %v1889, 1e-05
      %v1891 = vrsqrt.pop %v1890
      %v1892 = vmul.f32 %v1884, %v1891
      %v1893 = vlaneseq
      %v1894 = vshrl.u32 %v1893, 7
      %v1895 = vsub.s32 3, %v1894
      %v1896 = vrot.slane %v736, %v1895
      %v1897 = vmul.f32 %v1892, %v1896
      %v1898 = vlaneseq
      %v1899 = vshrl.u32 %v1898, 7
      %v1900 = vsub.s32 4, %v1899
      %v1901 = vrot.slane %v736, %v1900
      %v1902 = vadd.f32 %v1897, %v1901
      %v1903 = vmax.f32 %v1902, 0.0
      %v1904 = vadd.f32 %v738, %v1903
      %1905 = vst.msk [vmem:[%s717] sm:$0xff] %vm791, %v1904
      %v1906 = vlaneseq
      %v1907 = vshrl.u32 %v1906, 7
      %v1908 = vsub.s32 0, %v1907
      %v1909 = vrot.slane %v737, %v1908
      %v1910 = vmul.f32 %v1476, %v1909
      %v1911 = vmul.f32 %v1483, %v1909
      %v1912 = vmul.f32 %v1490, %v1909
      %v1913 = vmul.f32 %v1497, %v1909
      %v1914 = vmul.f32 %v1504, %v1909
      %v1915 = vmul.f32 %v1511, %v1909
      %v1916 = vmul.f32 %v1518, %v1909
      %v1917 = vmul.f32 %v1525, %v1909
      %v1918 = vmul.f32 %v1572, %v1909
      %v1919 = vmul.f32 %v1579, %v1909
      %v1920 = vmul.f32 %v1586, %v1909
      %v1921 = vmul.f32 %v1593, %v1909
      %v1922 = vmul.f32 %v1600, %v1909
      %v1923 = vmul.f32 %v1607, %v1909
      %v1924 = vmul.f32 %v1614, %v1909
      %v1925 = vmul.f32 %v1621, %v1909
      %v1926 = vmul.f32 %v1476, %v1476
      %v1927 = vmul.f32 %v1483, %v1483
      %v1928 = vmul.f32 %v1490, %v1490
      %v1929 = vmul.f32 %v1497, %v1497
      %v1930 = vmul.f32 %v1504, %v1504
      %v1931 = vmul.f32 %v1511, %v1511
      %v1932 = vmul.f32 %v1518, %v1518
      %v1933 = vmul.f32 %v1525, %v1525
      %v1934 = vmul.f32 %v1572, %v1572
      %v1935 = vmul.f32 %v1579, %v1579
      %v1936 = vmul.f32 %v1586, %v1586
      %v1937 = vmul.f32 %v1593, %v1593
      %v1938 = vmul.f32 %v1600, %v1600
      %v1939 = vmul.f32 %v1607, %v1607
      %v1940 = vmul.f32 %v1614, %v1614
      %v1941 = vmul.f32 %v1621, %v1621
      %v1942 = vadd.f32 %v1926, %v1934
      %v1943 = vadd.f32 %v1927, %v1935
      %v1944 = vadd.f32 %v1928, %v1936
      %v1945 = vadd.f32 %v1929, %v1937
      %v1946 = vadd.f32 %v1930, %v1938
      %v1947 = vadd.f32 %v1931, %v1939
      %v1948 = vadd.f32 %v1932, %v1940
      %v1949 = vadd.f32 %v1933, %v1941
      %v1950 = vadd.f32 %v1942, 0.0001
      %v1951 = vadd.f32 %v1943, 0.0001
      %v1952 = vadd.f32 %v1944, 0.0001
      %v1953 = vadd.f32 %v1945, 0.0001
      %v1954 = vadd.f32 %v1946, 0.0001
      %v1955 = vadd.f32 %v1947, 0.0001
      %v1956 = vadd.f32 %v1948, 0.0001
      %v1957 = vadd.f32 %v1949, 0.0001
      %v1958 = vrsqrt.pop %v1950
      %v1959 = vmul.f32 %v1950, %v1958
      %vm1960 = vcmp.eq.f32.partialorder %v1950, inf
      %v1961 = vsel %vm1960, %v1950, %v1959
      %vm1962 = vcmp.eq.f32.partialorder %v1950, 0.0
      %v1963 = vand.u32 %v1950, 2147483648
      %v1964 = vsel %vm1962, %v1963, %v1961
      %v1965 = vrsqrt.pop %v1951
      %v1966 = vmul.f32 %v1951, %v1965
      %vm1967 = vcmp.eq.f32.partialorder %v1951, inf
      %v1968 = vsel %vm1967, %v1951, %v1966
      %vm1969 = vcmp.eq.f32.partialorder %v1951, 0.0
      %v1970 = vand.u32 %v1951, 2147483648
      %v1971 = vsel %vm1969, %v1970, %v1968
      %v1972 = vrsqrt.pop %v1952
      %v1973 = vmul.f32 %v1952, %v1972
      %vm1974 = vcmp.eq.f32.partialorder %v1952, inf
      %v1975 = vsel %vm1974, %v1952, %v1973
      %vm1976 = vcmp.eq.f32.partialorder %v1952, 0.0
      %v1977 = vand.u32 %v1952, 2147483648
      %v1978 = vsel %vm1976, %v1977, %v1975
      %v1979 = vrsqrt.pop %v1953
      %v1980 = vmul.f32 %v1953, %v1979
      %vm1981 = vcmp.eq.f32.partialorder %v1953, inf
      %v1982 = vsel %vm1981, %v1953, %v1980
      %vm1983 = vcmp.eq.f32.partialorder %v1953, 0.0
      %v1984 = vand.u32 %v1953, 2147483648
      %v1985 = vsel %vm1983, %v1984, %v1982
      %v1986 = vrsqrt.pop %v1954
      %v1987 = vmul.f32 %v1954, %v1986
      %vm1988 = vcmp.eq.f32.partialorder %v1954, inf
      %v1989 = vsel %vm1988, %v1954, %v1987
      %vm1990 = vcmp.eq.f32.partialorder %v1954, 0.0
      %v1991 = vand.u32 %v1954, 2147483648
      %v1992 = vsel %vm1990, %v1991, %v1989
      %v1993 = vrsqrt.pop %v1955
      %v1994 = vmul.f32 %v1955, %v1993
      %vm1995 = vcmp.eq.f32.partialorder %v1955, inf
      %v1996 = vsel %vm1995, %v1955, %v1994
      %vm1997 = vcmp.eq.f32.partialorder %v1955, 0.0
      %v1998 = vand.u32 %v1955, 2147483648
      %v1999 = vsel %vm1997, %v1998, %v1996
      %v2000 = vrsqrt.pop %v1956
      %v2001 = vmul.f32 %v1956, %v2000
      %vm2002 = vcmp.eq.f32.partialorder %v1956, inf
      %v2003 = vsel %vm2002, %v1956, %v2001
      %vm2004 = vcmp.eq.f32.partialorder %v1956, 0.0
      %v2005 = vand.u32 %v1956, 2147483648
      %v2006 = vsel %vm2004, %v2005, %v2003
      %v2007 = vrsqrt.pop %v1957
      %v2008 = vmul.f32 %v1957, %v2007
      %vm2009 = vcmp.eq.f32.partialorder %v1957, inf
      %v2010 = vsel %vm2009, %v1957, %v2008
      %vm2011 = vcmp.eq.f32.partialorder %v1957, 0.0
      %v2012 = vand.u32 %v1957, 2147483648
      %v2013 = vsel %vm2011, %v2012, %v2010
      %v2014 = vlaneseq
      %v2015 = vshrl.u32 %v2014, 7
      %v2016 = vsub.s32 1, %v2015
      %v2017 = vrot.slane %v737, %v2016
      %v2018 = vmul.f32 %v1964, %v2017
      %v2019 = vmul.f32 %v1971, %v2017
      %v2020 = vmul.f32 %v1978, %v2017
      %v2021 = vmul.f32 %v1985, %v2017
      %v2022 = vmul.f32 %v1992, %v2017
      %v2023 = vmul.f32 %v1999, %v2017
      %v2024 = vmul.f32 %v2006, %v2017
      %v2025 = vmul.f32 %v2013, %v2017
      %v2026 = vlaneseq
      %v2027 = vshrl.u32 %v2026, 7
      %v2028 = vsub.s32 2, %v2027
      %v2029 = vrot.slane %v736, %v2028
      %v2030 = vmul.f32 %v738, %v2029
      %v2031 = vsel %vm791, %v2030, 0.0
      %2032 = vadd.xlane.f32.xlu0 %v2031
      %v2033 = vpop.xlane.xlu0 %2032
      %v2035 = vrot.slane %v2033, 1
      %v2036 = vrot.slane %v2033, 2
      %v2037 = vrot.slane %v2033, 3
      %v2038 = vrot.slane %v2033, 4
      %v2039 = vrot.slane %v2033, 5
      %v2040 = vrot.slane %v2033, 6
      %v2041 = vrot.slane %v2033, 7
      %v2050 = vadd.f32 %v2018, %v2033
      %v2051 = vadd.f32 %v2019, %v2035
      %v2052 = vadd.f32 %v2020, %v2036
      %v2053 = vadd.f32 %v2021, %v2037
      %v2054 = vadd.f32 %v2022, %v2038
      %v2055 = vadd.f32 %v2023, %v2039
      %v2056 = vadd.f32 %v2024, %v2040
      %v2057 = vadd.f32 %v2025, %v2041
      %v2058 = vlaneseq
      %v2059 = vshrl.u32 %v2058, 7
      %v2060 = vsub.s32 3, %v2059
      %v2061 = vrot.slane %v737, %v2060
      %v2062 = vadd.f32 %v2050, %v2061
      %v2063 = vadd.f32 %v2051, %v2061
      %v2064 = vadd.f32 %v2052, %v2061
      %v2065 = vadd.f32 %v2053, %v2061
      %v2066 = vadd.f32 %v2054, %v2061
      %v2067 = vadd.f32 %v2055, %v2061
      %v2068 = vadd.f32 %v2056, %v2061
      %v2069 = vadd.f32 %v2057, %v2061
      %v2070 = vxor.u32 %v2062, 2147483648
      %v2071 = vxor.u32 %v2063, 2147483648
      %v2072 = vxor.u32 %v2064, 2147483648
      %v2073 = vxor.u32 %v2065, 2147483648
      %v2074 = vxor.u32 %v2066, 2147483648
      %v2075 = vxor.u32 %v2067, 2147483648
      %v2076 = vxor.u32 %v2068, 2147483648
      %v2077 = vxor.u32 %v2069, 2147483648
      %v2078 = vmul.f32 %v2070, 1.442695
      %v2079 = vpow.pop %v2078
      %v2080 = vmul.f32 %v2071, 1.442695
      %v2081 = vpow.pop %v2080
      %v2082 = vmul.f32 %v2072, 1.442695
      %v2083 = vpow.pop %v2082
      %v2084 = vmul.f32 %v2073, 1.442695
      %v2085 = vpow.pop %v2084
      %v2086 = vmul.f32 %v2074, 1.442695
      %v2087 = vpow.pop %v2086
      %v2088 = vmul.f32 %v2075, 1.442695
      %v2089 = vpow.pop %v2088
      %v2090 = vmul.f32 %v2076, 1.442695
      %v2091 = vpow.pop %v2090
      %v2092 = vmul.f32 %v2077, 1.442695
      %v2093 = vpow.pop %v2092
      %v2094 = vadd.f32 %v2079, 1.0
      %v2095 = vadd.f32 %v2081, 1.0
      %v2096 = vadd.f32 %v2083, 1.0
      %v2097 = vadd.f32 %v2085, 1.0
      %v2098 = vadd.f32 %v2087, 1.0
      %v2099 = vadd.f32 %v2089, 1.0
      %v2100 = vadd.f32 %v2091, 1.0
      %v2101 = vadd.f32 %v2093, 1.0
      %v2102 = vrcp.pop %v2094
      %v2103 = vmul.f32 1.0, %v2102
      %v2104 = vrcp.pop %v2095
      %v2105 = vmul.f32 1.0, %v2104
      %v2106 = vrcp.pop %v2096
      %v2107 = vmul.f32 1.0, %v2106
      %v2108 = vrcp.pop %v2097
      %v2109 = vmul.f32 1.0, %v2108
      %v2110 = vrcp.pop %v2098
      %v2111 = vmul.f32 1.0, %v2110
      %v2112 = vrcp.pop %v2099
      %v2113 = vmul.f32 1.0, %v2112
      %v2114 = vrcp.pop %v2100
      %v2115 = vmul.f32 1.0, %v2114
      %v2116 = vrcp.pop %v2101
      %v2117 = vmul.f32 1.0, %v2116
      %v2118 = vmul.f32 %v1910, %v2103
      %v2119 = vmul.f32 %v1911, %v2105
      %v2120 = vmul.f32 %v1912, %v2107
      %v2121 = vmul.f32 %v1913, %v2109
      %v2122 = vmul.f32 %v1914, %v2111
      %v2123 = vmul.f32 %v1915, %v2113
      %v2124 = vmul.f32 %v1916, %v2115
      %v2125 = vmul.f32 %v1917, %v2117
      %v2126 = vmul.f32 %v1918, %v2103
      %v2127 = vmul.f32 %v1919, %v2105
      %v2128 = vmul.f32 %v1920, %v2107
      %v2129 = vmul.f32 %v1921, %v2109
      %v2130 = vmul.f32 %v1922, %v2111
      %v2131 = vmul.f32 %v1923, %v2113
      %v2132 = vmul.f32 %v1924, %v2115
      %v2133 = vmul.f32 %v1925, %v2117
      %v2142 = vrot.slane %v2119, 7
      %v2143 = vsel %vm1864, %v2142, %v2118
      %v2144 = vrot.slane %v2120, 6
      %v2145 = vsel %vm1866, %v2144, %v2143
      %v2146 = vrot.slane %v2121, 5
      %v2147 = vsel %vm1868, %v2146, %v2145
      %v2148 = vrot.slane %v2122, 4
      %v2149 = vsel %vm1870, %v2148, %v2147
      %v2150 = vrot.slane %v2123, 3
      %v2151 = vsel %vm1872, %v2150, %v2149
      %v2152 = vrot.slane %v2124, 2
      %v2153 = vsel %vm1874, %v2152, %v2151
      %v2154 = vrot.slane %v2125, 1
      %v2155 = vsel %vm1876, %v2154, %v2153
      %v2165 = vrot.slane %v2127, 7
      %v2166 = vsel %vm1864, %v2165, %v2126
      %v2167 = vrot.slane %v2128, 6
      %v2168 = vsel %vm1866, %v2167, %v2166
      %v2169 = vrot.slane %v2129, 5
      %v2170 = vsel %vm1868, %v2169, %v2168
      %v2171 = vrot.slane %v2130, 4
      %v2172 = vsel %vm1870, %v2171, %v2170
      %v2173 = vrot.slane %v2131, 3
      %v2174 = vsel %vm1872, %v2173, %v2172
      %v2175 = vrot.slane %v2132, 2
      %v2176 = vsel %vm1874, %v2175, %v2174
      %v2177 = vrot.slane %v2133, 1
      %v2178 = vsel %vm1876, %v2177, %v2176
      %2179 = vrot.lane.b32.xlu0 %v2178, 1
      %v2180 = vpop.permute.xlu0 %2179
      %v2182 = vsel %vm1469, %v2155, %v2180
      %v2183 = vadd.f32 %v744, %v2182
      %vm2184 = vcmask 15360
      %2185 = vst.msk [vmem:[%s734] sm:$0xff] %vm2184, %v2183
      %p2186 = scmp.lt.s32.totalorder %s30, 1
      %s2187 = scalar_select %p2186, %s30, 1
      %p2188 = scmp.lt.s32.totalorder %s31, 0
      %s2189 = scalar_select %p2188, %s31, 0
      %s2190 = sadd.s32 %s2189, %s2187
      %s2191 = smul.addr %s2190, 8
      %s2192 = scalar_lea.vmem %s12, %s2191
      %s2193 = smul.u32 8, %s31
      %p2194 = scmp.lt.s32.totalorder %s30, 1
      %s2195 = scalar_select %p2194, %s30, 1
      %p2196 = scmp.lt.s32.totalorder %s2193, 7
      %s2197 = scalar_select %p2196, %s2193, 7
      %s2198 = smul.addr %s2195, 8
      %s2199 = sadd.s32 %s2197, %s2198
      %s2200 = smul.addr %s2199, 4
      %s2201 = scalar_lea.vmem %s13, %s2200
      %p2202 = scmp.lt.s32.totalorder %s30, 1
      %s2203 = scalar_select %p2202, %s30, 1
      %p2204 = scmp.lt.s32.totalorder %s31, 0
      %s2205 = scalar_select %p2204, %s31, 0
      %s2206 = sadd.s32 %s2205, %s2203
      %s2207 = smul.addr %s2206, 8
      %s2208 = scalar_lea.vmem %s14, %s2207
      // Predicated region
      $region69: #{gegnn_encoder_pallas.2} parent=67 // pred_check
        %p2209 = pneg %p367
      $region70: #{gegnn_encoder_pallas.2} parent=67 // pred_check_branch
        %2211 = sbr.rel (%p2209) target = $region72
      $region71: #{gegnn_encoder_pallas.2} parent=67 // pred_region
        _
      $region72: #{gegnn_encoder_pallas.2} parent=67 // pred_fallthru
        _
      // Predicated region
      $region73: #{gegnn_encoder_pallas.2} parent=67 // pred_check
        %p2212 = pneg %p395
      $region74: #{gegnn_encoder_pallas.2} parent=67 // pred_check_branch
        %2214 = sbr.rel (%p2212) target = $region76
      $region75: #{gegnn_encoder_pallas.2} parent=67 // pred_region
        %s2215 = smul.u32 8, %s31
      $region76: #{gegnn_encoder_pallas.2} parent=67 // pred_fallthru
        _
      // Predicated region
      $region77: #{gegnn_encoder_pallas.2} parent=67 // pred_check
        %p2216 = pneg %p423
      $region78: #{gegnn_encoder_pallas.2} parent=67 // pred_check_branch
        %2218 = sbr.rel (%p2216) target = $region80
      $region79: #{gegnn_encoder_pallas.2} parent=67 // pred_region
        _
      $region80: #{gegnn_encoder_pallas.2} parent=67 // pred_fallthru
        _
    $region68: #{gegnn_encoder_pallas.2} parent=5 // pred_fallthru
      _
    %p2219 = scmp.le.s32.totalorder 2, %s21
    // Predicated region
    $region81: #{gegnn_encoder_pallas.2} parent=5 // pred_check
      %p2220 = pneg %p2219
    $region82: #{gegnn_encoder_pallas.2} parent=5 // pred_check_branch
      %2222 = sbr.rel (%p2220) target = $region84
    $region83: #{gegnn_encoder_pallas.2} parent=5 // pred_region
      %s2223 = ssub.s32 %s21, 2
      // Predicated region
      $region85: #{gegnn_encoder_pallas.2} parent=83 // pred_check
        %p2224 = pneg %p373
      $region86: #{gegnn_encoder_pallas.2} parent=83 // pred_check_branch
        %2226 = sbr.rel (%p2224) target = $region88
      $region87: #{gegnn_encoder_pallas.2} parent=83 // pred_region
        %p2227 = scmp.lt.s32.totalorder %s32, 1
        %s2228 = scalar_select %p2227, %s32, 1
        %p2229 = scmp.lt.s32.totalorder %s33, 0
        %s2230 = scalar_select %p2229, %s33, 0
        %s2231 = sadd.s32 %s2230, %s2228
        %s2232 = smul.addr %s2231, 8
        %s2233 = scalar_lea.vmem %s12, %s2232
      $region88: #{gegnn_encoder_pallas.2} parent=83 // pred_fallthru
        _
      // Predicated region
      $region89: #{gegnn_encoder_pallas.2} parent=83 // pred_check
        %p2234 = pneg %p401
      $region90: #{gegnn_encoder_pallas.2} parent=83 // pred_check_branch
        %2236 = sbr.rel (%p2234) target = $region92
      $region91: #{gegnn_encoder_pallas.2} parent=83 // pred_region
        %s2237 = smul.u32 8, %s33
        %p2238 = scmp.lt.s32.totalorder %s32, 1
        %s2239 = scalar_select %p2238, %s32, 1
        %p2240 = scmp.lt.s32.totalorder %s2237, 7
        %s2241 = scalar_select %p2240, %s2237, 7
        %s2242 = smul.addr %s2239, 8
        %s2243 = sadd.s32 %s2241, %s2242
        %s2244 = smul.addr %s2243, 4
        %s2245 = scalar_lea.vmem %s13, %s2244
      $region92: #{gegnn_encoder_pallas.2} parent=83 // pred_fallthru
        _
      // Predicated region
      $region93: #{gegnn_encoder_pallas.2} parent=83 // pred_check
        %p2246 = pneg %p429
      $region94: #{gegnn_encoder_pallas.2} parent=83 // pred_check_branch
        %2248 = sbr.rel (%p2246) target = $region96
      $region95: #{gegnn_encoder_pallas.2} parent=83 // pred_region
        %p2249 = scmp.lt.s32.totalorder %s32, 1
        %s2250 = scalar_select %p2249, %s32, 1
        %p2251 = scmp.lt.s32.totalorder %s33, 0
        %s2252 = scalar_select %p2251, %s33, 0
        %s2253 = sadd.s32 %s2252, %s2250
        %s2254 = smul.addr %s2253, 8
        %s2255 = scalar_lea.vmem %s14, %s2254
      $region96: #{gegnn_encoder_pallas.2} parent=83 // pred_fallthru
        _
    $region84: #{gegnn_encoder_pallas.2} parent=5 // pred_fallthru
      _
  $region6: #{gegnn_encoder_pallas.2} parent=0 // loop_footer
    %s25 = sadd.s32 1, %s21
  $region7: #{gegnn_encoder_pallas.2} parent=0 // loop_footer_branch
    %20 = sbr.rel target = $region3
  $region8: #{gegnn_encoder_pallas.2} parent=0 // loop_exit
    _

</llo_original>
